<compile_context>
chip_gen: v7x
topology: tpu7x:2x2x1
jax: 0.10.0
libtpu: 0.0.40
codegen_flags: <defaults>
</compile_context>

<pallas_src>
import jax
import jax.numpy as jnp
from jax.experimental import pallas as pl
from jax.experimental.pallas import tpu as pltpu

INPUT_SIZE = 128          # must equal 128 for the torch forward to be consistent
OUTPUT_SIZE = 64
BATCH = 2
L = 128                   # fc1 width == conv sequence length
C3 = 64                   # conv3 output channels
FC2_IN = C3 * L           # 8192
FC2_OUT = 256
KT = 2048                 # fc2 weight chunk (bf16 chunk = 1 MiB)
NK = FC2_IN // KT         # 4 chunks, all DMAs issued up front
CPT = KT // L             # conv channels per fc2 chunk (16)


# ----------------------------------------------------------------------------
# Fused kernel: stream fc2 weight (manual DMA) | fc1 -> conv1/2/3 -> flatten
# overlapped with the stream | fc2 (per-chunk) -> relu -> fc3
# ----------------------------------------------------------------------------
def _fused_kernel(x_ref, w1_ref, b1_ref,
                  cs1_ref, cb1_ref, cs2_ref, cb2_ref, cs3_ref, cb3_ref,
                  w2_hbm, b2_ref, w3_ref, b3_ref,
                  o_ref,
                  w2_buf, dma_sem, flat_ref):
    # ------------------------------------------------------------------
    # 1. Kick off the fc2 weight stream first: the whole net is HBM-bound
    #    on these 4 MiB, so every cycle of it must overlap the front-end.
    # ------------------------------------------------------------------
    def w2_copy(c):
        return pltpu.make_async_copy(
            w2_hbm.at[pl.ds(c * KT, KT), :], w2_buf.at[c], dma_sem.at[c])

    for c in range(NK):
        w2_copy(c).start()

    # ------------------------------------------------------------------
    # 2. Front-end (runs while the weight chunks are in flight).
    # ------------------------------------------------------------------
    # fc1 + relu: (B,128) @ (128,128)
    h = jnp.dot(x_ref[...], w1_ref[...], preferred_element_type=jnp.float32)
    h = jnp.maximum(h + b1_ref[...], 0.0)                           # (B, L)

    # Batch-fused conv layout: lanes = [batch0 seq | batch1 seq] -> (Ci, B*L)
    h = jnp.concatenate([h[b:b + 1, :] for b in range(BATCH)], axis=1)  # (1, B*L)

    lane = jax.lax.broadcasted_iota(jnp.int32, (1, BATCH * L), 1)
    pos = lane % L
    left_edge = pos == 0          # per-sequence l=0   (also cross-batch leak)
    right_edge = pos == L - 1     # per-sequence l=L-1 (also cross-batch leak)

    def shifted(v):
        """x[l-1] and x[l+1] with zero padding per sequence: roll + edge mask."""
        vm1 = jnp.where(left_edge, 0.0, pltpu.roll(v, shift=1, axis=1))
        vp1 = jnp.where(right_edge, 0.0,
                        pltpu.roll(v, shift=BATCH * L - 1, axis=1))
        return vm1, vp1

    # conv1 (Ci=1): a K=3 matmul would be pure MXU overhead -> VPU path.
    m1, p1 = shifted(h)
    c1 = jnp.maximum(cs1_ref[:, 0:1] * m1 + cs1_ref[:, 1:2] * h
                     + cs1_ref[:, 2:3] * p1 + cb1_ref[...], 0.0)    # (16, B*L)

    def conv_relu(v, w_ref, b_ref, ci):
        """conv1d(k=3, padding=1) + relu as three accumulating MXU matmuls.

        v: (Ci, B*L).  w_ref: (Co, 3*Ci) = [tap0 | tap1 | tap2], tap0 * x[l-1].
        """
        vm1, vp1 = shifted(v)
        out = (jnp.dot(w_ref[:, 0:ci], vm1, preferred_element_type=jnp.float32)
               + jnp.dot(w_ref[:, ci:2 * ci], v, preferred_element_type=jnp.float32)
               + jnp.dot(w_ref[:, 2 * ci:3 * ci], vp1,
                         preferred_element_type=jnp.float32))
        return jnp.maximum(out + b_ref[...], 0.0)

    c2 = conv_relu(c1, cs2_ref, cb2_ref, 16)                        # (32, B*L)
    c3 = conv_relu(c2, cs3_ref, cb3_ref, 32)                        # (64, B*L)

    # C-major flatten (== torch.nn.Flatten on NCL) into the bf16 activation slab:
    #   flat[b, c*L + l] = conv3[b, c, l]
    # done as NK bulk (CPT, L) -> (1, KT) relayouts per batch (no row-by-row copies).
    for b in range(BATCH):
        for kt in range(NK):
            blk = c3[kt * CPT:(kt + 1) * CPT, b * L:(b + 1) * L]
            flat_ref[b:b + 1, kt * KT:(kt + 1) * KT] = (
                blk.astype(jnp.bfloat16).reshape(1, KT))

    # ------------------------------------------------------------------
    # 3. fc2: consume the weight chunks as they land (bf16 MXU, f32 acc).
    # ------------------------------------------------------------------
    acc = jnp.zeros((BATCH, FC2_OUT), jnp.float32)
    for c in range(NK):
        w2_copy(c).wait()
        acc = acc + jnp.dot(flat_ref[:, c * KT:(c + 1) * KT], w2_buf[c],
                            preferred_element_type=jnp.float32)

    # ------------------------------------------------------------------
    # 4. relu(fc2) -> fc3
    # ------------------------------------------------------------------
    h2 = jnp.maximum(acc + b2_ref[...], 0.0)
    y = jnp.dot(h2, w3_ref[...], preferred_element_type=jnp.float32) + b3_ref[...]
    o_ref[...] = y.astype(o_ref.dtype)


# ----------------------------------------------------------------------------
# Wrapper
# ----------------------------------------------------------------------------
def raman_predictor_forward(x, p):
    batch = x.shape[0]
    grid_spec = pltpu.PrefetchScalarGridSpec(
        num_scalar_prefetch=0,
        grid=(1,),                                                  # single step
        in_specs=[
            pl.BlockSpec((batch, INPUT_SIZE), lambda i: (0, 0)),    # x
            pl.BlockSpec(p["w1t"].shape, lambda i: (0, 0)),         # fc1 W^T
            pl.BlockSpec(p["b1r"].shape, lambda i: (0, 0)),         # fc1 b
            pl.BlockSpec(p["cs1"].shape, lambda i: (0, 0)),         # conv1 taps
            pl.BlockSpec(p["cb1"].shape, lambda i: (0, 0)),
            pl.BlockSpec(p["cs2"].shape, lambda i: (0, 0)),         # conv2 taps
            pl.BlockSpec(p["cb2"].shape, lambda i: (0, 0)),
            pl.BlockSpec(p["cs3"].shape, lambda i: (0, 0)),         # conv3 taps
            pl.BlockSpec(p["cb3"].shape, lambda i: (0, 0)),
            pl.BlockSpec(memory_space=pl.ANY),                      # fc2 W^T (HBM, manual DMA)
            pl.BlockSpec(p["b2r"].shape, lambda i: (0, 0)),         # fc2 b
            pl.BlockSpec(p["w3t"].shape, lambda i: (0, 0)),         # fc3 W^T
            pl.BlockSpec(p["b3r"].shape, lambda i: (0, 0)),         # fc3 b
        ],
        out_specs=pl.BlockSpec((batch, OUTPUT_SIZE), lambda i: (0, 0)),
        scratch_shapes=[
            pltpu.VMEM((NK, KT, FC2_OUT), jnp.bfloat16),            # streamed fc2 chunks
            pltpu.SemaphoreType.DMA((NK,)),                         # one sem per chunk
            pltpu.VMEM((batch, FC2_IN), jnp.bfloat16),              # flattened activations
        ])
    return pl.pallas_call(
        _fused_kernel,
        out_shape=jax.ShapeDtypeStruct((batch, OUTPUT_SIZE), jnp.float32),
        grid_spec=grid_spec,
        compiler_params=pltpu.CompilerParams(
            dimension_semantics=("arbitrary",)),
    )(x, p["w1t"], p["b1r"], p["cs1"], p["cb1"], p["cs2"], p["cb2"],
      p["cs3"], p["cb3"], p["w2t"], p["b2r"], p["w3t"], p["b3r"])


# ----------------------------------------------------------------------------
# Pure-JAX reference (PyTorch semantics, all f32) for validation
# ----------------------------------------------------------------------------
def ref_forward(x, pt):
    h = jnp.maximum(x @ pt["w1"].T + pt["b1"], 0.0)           # fc1 + relu
    h = h[:, None, :]                                         # unsqueeze(1) -> NCL
    for w, b in [(pt["cw1"], pt["cb1"]),
                 (pt["cw2"], pt["cb2"]),
                 (pt["cw3"], pt["cb3"])]:
        hp = jnp.pad(h, ((0, 0), (0, 0), (1, 1)))
        length = h.shape[-1]
        out = sum(jnp.einsum("oi,bil->bol", w[:, :, k], hp[:, :, k:k + length])
                  for k in range(3))
        h = jnp.maximum(out + b[None, :, None], 0.0)
    flat = h.reshape(h.shape[0], -1)                          # Flatten (C-major)
    h2 = jnp.maximum(flat @ pt["w2"].T + pt["b2"], 0.0)       # fc2 + relu
    return h2 @ pt["w3"].T + pt["b3"]                         # fc3


# ----------------------------------------------------------------------------
# Deterministic parameter init + run
# ----------------------------------------------------------------------------
if __name__ == "__main__":
    key = jax.random.PRNGKey(0)
    ks = jax.random.split(key, 13)

    def rnd(k, shape, scale=0.05):
        return jax.random.normal(k, shape, jnp.float32) * scale

    # PyTorch-shaped parameters
    pt = {
        "w1": rnd(ks[0], (128, INPUT_SIZE)), "b1": rnd(ks[1], (128,)),
        "cw1": rnd(ks[2], (16, 1, 3)),       "cb1": rnd(ks[3], (16,)),
        "cw2": rnd(ks[4], (32, 16, 3)),      "cb2": rnd(ks[5], (32,)),
        "cw3": rnd(ks[6], (64, 32, 3)),      "cb3": rnd(ks[7], (64,)),
        "w2": rnd(ks[8], (FC2_OUT, FC2_IN)), "b2": rnd(ks[9], (FC2_OUT,)),
        "w3": rnd(ks[10], (OUTPUT_SIZE, FC2_OUT)), "b3": rnd(ks[11], (OUTPUT_SIZE,)),
    }

    def stack_taps(w):   # (Co, Ci, 3) -> (Co, 3*Ci) = [tap0 | tap1 | tap2]
        return jnp.concatenate([w[:, :, 0], w[:, :, 1], w[:, :, 2]], axis=1)

    # Kernel-layout parameters
    pk = {
        "w1t": pt["w1"].T,                       # (in, out)
        "b1r": pt["b1"][None, :],                # (1, 128)
        "cs1": stack_taps(pt["cw1"]),            # (16, 3)
        "cb1": pt["cb1"][:, None],               # (16, 1)
        "cs2": stack_taps(pt["cw2"]),            # (32, 48)
        "cb2": pt["cb2"][:, None],               # (32, 1)
        "cs3": stack_taps(pt["cw3"]),            # (64, 96)
        "cb3": pt["cb3"][:, None],               # (64, 1)
        "w2t": pt["w2"].T.astype(jnp.bfloat16),  # (8192, 256), streamed in bf16
        "b2r": pt["b2"][None, :],                # (1, 256)
        "w3t": pt["w3"].T,                       # (256, out)
        "b3r": pt["b3"][None, :],                # (1, out)
    }

    x = jax.random.normal(ks[12], (BATCH, INPUT_SIZE), jnp.float32)

    y = jax.block_until_ready(raman_predictor_forward(x, pk))
    y_ref = ref_forward(x, pt)

    assert y.shape == (BATCH, OUTPUT_SIZE)
    # fc2 weights AND flattened activations go through bf16 on the MXU, so the
    # tolerance vs the all-f32 reference is relaxed accordingly.
    err = float(jnp.max(jnp.abs(y - y_ref)))
    assert jnp.allclose(y, y_ref, rtol=2e-2, atol=5e-3), (
        f"mismatch: max abs err {err}")

    print("KERNEL_OK")
</pallas_src>

<mosaic_0001>
module attributes {stable_mosaic.version = 11 : i64} {
  func.func @_fused_kernel(%arg0: i32, %arg1: memref<2x128xf32, #tpu.memory_space<vmem>>, %arg2: memref<128x128xf32, #tpu.memory_space<vmem>>, %arg3: memref<1x128xf32, #tpu.memory_space<vmem>>, %arg4: memref<16x3xf32, #tpu.memory_space<vmem>>, %arg5: memref<16x1xf32, #tpu.memory_space<vmem>>, %arg6: memref<32x48xf32, #tpu.memory_space<vmem>>, %arg7: memref<32x1xf32, #tpu.memory_space<vmem>>, %arg8: memref<64x96xf32, #tpu.memory_space<vmem>>, %arg9: memref<64x1xf32, #tpu.memory_space<vmem>>, %arg10: memref<8192x256xbf16, #tpu.memory_space<any>>, %arg11: memref<1x256xf32, #tpu.memory_space<vmem>>, %arg12: memref<256x64xf32, #tpu.memory_space<vmem>>, %arg13: memref<1x64xf32, #tpu.memory_space<vmem>>, %arg14: memref<2x64xf32, #tpu.memory_space<vmem>>, %arg15: memref<4x2048x256xbf16, #tpu.memory_space<vmem>>, %arg16: memref<4x!tpu.dma_semaphore, #tpu.memory_space<semaphore_mem>>, %arg17: memref<2x8192xbf16, #tpu.memory_space<vmem>>) attributes {dimension_semantics = [#tpu.dimension_semantics<arbitrary>], iteration_bounds = array<i64: 1>, scalar_prefetch = 0 : i64, scratch_operands = 3 : i64, tpu.core_type = #tpu.core_type<tc>, window_params = [{pipeline_mode = #tpu.pipeline_mode<synchronous>, transform_indices = @transform_0, window_bounds = array<i64: 2, 128>}, {pipeline_mode = #tpu.pipeline_mode<synchronous>, transform_indices = @transform_1, window_bounds = array<i64: 128, 128>}, {pipeline_mode = #tpu.pipeline_mode<synchronous>, transform_indices = @transform_2, window_bounds = array<i64: 1, 128>}, {pipeline_mode = #tpu.pipeline_mode<synchronous>, transform_indices = @transform_3, window_bounds = array<i64: 16, 3>}, {pipeline_mode = #tpu.pipeline_mode<synchronous>, transform_indices = @transform_4, window_bounds = array<i64: 16, 1>}, {pipeline_mode = #tpu.pipeline_mode<synchronous>, transform_indices = @transform_5, window_bounds = array<i64: 32, 48>}, {pipeline_mode = #tpu.pipeline_mode<synchronous>, transform_indices = @transform_6, window_bounds = array<i64: 32, 1>}, {pipeline_mode = #tpu.pipeline_mode<synchronous>, transform_indices = @transform_7, window_bounds = array<i64: 64, 96>}, {pipeline_mode = #tpu.pipeline_mode<synchronous>, transform_indices = @transform_8, window_bounds = array<i64: 64, 1>}, {}, {pipeline_mode = #tpu.pipeline_mode<synchronous>, transform_indices = @transform_10, window_bounds = array<i64: 1, 256>}, {pipeline_mode = #tpu.pipeline_mode<synchronous>, transform_indices = @transform_11, window_bounds = array<i64: 256, 64>}, {pipeline_mode = #tpu.pipeline_mode<synchronous>, transform_indices = @transform_12, window_bounds = array<i64: 1, 64>}, {pipeline_mode = #tpu.pipeline_mode<synchronous>, transform_indices = @transform_13, window_bounds = array<i64: 2, 64>}]} {
    %c0_i32 = arith.constant 0 : i32
    %c0_i32_0 = arith.constant 0 : i32
    %c0_i32_1 = arith.constant 0 : i32
    %c0_i32_2 = arith.constant 0 : i32
    %0 = tpu.memref_slice %arg10[%c0_i32_1, %c0_i32_2] : memref<8192x256xbf16, #tpu.memory_space<any>> -> memref<2048x256xbf16, #tpu.memory_space<any>>
    %c0_i32_3 = arith.constant 0 : i32
    %c0_i32_4 = arith.constant 0 : i32
    %1 = tpu.memref_slice %arg15[%c0_i32, %c0_i32_3, %c0_i32_4] : memref<4x2048x256xbf16, #tpu.memory_space<vmem>> -> memref<1x2048x256xbf16, #tpu.memory_space<vmem>>
    %2 = tpu.memref_squeeze %1 : memref<1x2048x256xbf16, #tpu.memory_space<vmem>> -> memref<2048x256xbf16, #tpu.memory_space<vmem>>
    %3 = tpu.memref_slice %arg16[%c0_i32_0] : memref<4x!tpu.dma_semaphore, #tpu.memory_space<semaphore_mem>> -> memref<1x!tpu.dma_semaphore, #tpu.memory_space<semaphore_mem>>
    %4 = tpu.memref_squeeze %3 : memref<1x!tpu.dma_semaphore, #tpu.memory_space<semaphore_mem>> -> memref<!tpu.dma_semaphore, #tpu.memory_space<semaphore_mem>>
    tpu.enqueue_dma source(%0 : memref<2048x256xbf16, #tpu.memory_space<any>>) target(%2 : memref<2048x256xbf16, #tpu.memory_space<vmem>>) target_semaphore(%4 : memref<!tpu.dma_semaphore, #tpu.memory_space<semaphore_mem>>)
    %c1_i32 = arith.constant 1 : i32
    %c1_i32_5 = arith.constant 1 : i32
    %c2048_i32 = arith.constant 2048 : i32
    %c0_i32_6 = arith.constant 0 : i32
    %5 = tpu.memref_slice %arg10[%c2048_i32, %c0_i32_6] : memref<8192x256xbf16, #tpu.memory_space<any>> -> memref<2048x256xbf16, #tpu.memory_space<any>>
    %c0_i32_7 = arith.constant 0 : i32
    %c0_i32_8 = arith.constant 0 : i32
    %6 = tpu.memref_slice %arg15[%c1_i32, %c0_i32_7, %c0_i32_8] : memref<4x2048x256xbf16, #tpu.memory_space<vmem>> -> memref<1x2048x256xbf16, #tpu.memory_space<vmem>>
    %7 = tpu.memref_squeeze %6 : memref<1x2048x256xbf16, #tpu.memory_space<vmem>> -> memref<2048x256xbf16, #tpu.memory_space<vmem>>
    %8 = tpu.memref_slice %arg16[%c1_i32_5] : memref<4x!tpu.dma_semaphore, #tpu.memory_space<semaphore_mem>> -> memref<1x!tpu.dma_semaphore, #tpu.memory_space<semaphore_mem>>
    %9 = tpu.memref_squeeze %8 : memref<1x!tpu.dma_semaphore, #tpu.memory_space<semaphore_mem>> -> memref<!tpu.dma_semaphore, #tpu.memory_space<semaphore_mem>>
    tpu.enqueue_dma source(%5 : memref<2048x256xbf16, #tpu.memory_space<any>>) target(%7 : memref<2048x256xbf16, #tpu.memory_space<vmem>>) target_semaphore(%9 : memref<!tpu.dma_semaphore, #tpu.memory_space<semaphore_mem>>)
    %c2_i32 = arith.constant 2 : i32
    %c2_i32_9 = arith.constant 2 : i32
    %c4096_i32 = arith.constant 4096 : i32
    %c0_i32_10 = arith.constant 0 : i32
    %10 = tpu.memref_slice %arg10[%c4096_i32, %c0_i32_10] : memref<8192x256xbf16, #tpu.memory_space<any>> -> memref<2048x256xbf16, #tpu.memory_space<any>>
    %c0_i32_11 = arith.constant 0 : i32
    %c0_i32_12 = arith.constant 0 : i32
    %11 = tpu.memref_slice %arg15[%c2_i32, %c0_i32_11, %c0_i32_12] : memref<4x2048x256xbf16, #tpu.memory_space<vmem>> -> memref<1x2048x256xbf16, #tpu.memory_space<vmem>>
    %12 = tpu.memref_squeeze %11 : memref<1x2048x256xbf16, #tpu.memory_space<vmem>> -> memref<2048x256xbf16, #tpu.memory_space<vmem>>
    %13 = tpu.memref_slice %arg16[%c2_i32_9] : memref<4x!tpu.dma_semaphore, #tpu.memory_space<semaphore_mem>> -> memref<1x!tpu.dma_semaphore, #tpu.memory_space<semaphore_mem>>
    %14 = tpu.memref_squeeze %13 : memref<1x!tpu.dma_semaphore, #tpu.memory_space<semaphore_mem>> -> memref<!tpu.dma_semaphore, #tpu.memory_space<semaphore_mem>>
    tpu.enqueue_dma source(%10 : memref<2048x256xbf16, #tpu.memory_space<any>>) target(%12 : memref<2048x256xbf16, #tpu.memory_space<vmem>>) target_semaphore(%14 : memref<!tpu.dma_semaphore, #tpu.memory_space<semaphore_mem>>)
    %c3_i32 = arith.constant 3 : i32
    %c3_i32_13 = arith.constant 3 : i32
    %c6144_i32 = arith.constant 6144 : i32
    %c0_i32_14 = arith.constant 0 : i32
    %15 = tpu.memref_slice %arg10[%c6144_i32, %c0_i32_14] : memref<8192x256xbf16, #tpu.memory_space<any>> -> memref<2048x256xbf16, #tpu.memory_space<any>>
    %c0_i32_15 = arith.constant 0 : i32
    %c0_i32_16 = arith.constant 0 : i32
    %16 = tpu.memref_slice %arg15[%c3_i32, %c0_i32_15, %c0_i32_16] : memref<4x2048x256xbf16, #tpu.memory_space<vmem>> -> memref<1x2048x256xbf16, #tpu.memory_space<vmem>>
    %17 = tpu.memref_squeeze %16 : memref<1x2048x256xbf16, #tpu.memory_space<vmem>> -> memref<2048x256xbf16, #tpu.memory_space<vmem>>
    %18 = tpu.memref_slice %arg16[%c3_i32_13] : memref<4x!tpu.dma_semaphore, #tpu.memory_space<semaphore_mem>> -> memref<1x!tpu.dma_semaphore, #tpu.memory_space<semaphore_mem>>
    %19 = tpu.memref_squeeze %18 : memref<1x!tpu.dma_semaphore, #tpu.memory_space<semaphore_mem>> -> memref<!tpu.dma_semaphore, #tpu.memory_space<semaphore_mem>>
    tpu.enqueue_dma source(%15 : memref<2048x256xbf16, #tpu.memory_space<any>>) target(%17 : memref<2048x256xbf16, #tpu.memory_space<vmem>>) target_semaphore(%19 : memref<!tpu.dma_semaphore, #tpu.memory_space<semaphore_mem>>)
    %c0 = arith.constant 0 : index
    %c0_17 = arith.constant 0 : index
    %20 = vector.load %arg1[%c0, %c0_17] : memref<2x128xf32, #tpu.memory_space<vmem>>, vector<2x128xf32>
    %c0_18 = arith.constant 0 : index
    %c0_19 = arith.constant 0 : index
    %21 = vector.load %arg2[%c0_18, %c0_19] : memref<128x128xf32, #tpu.memory_space<vmem>>, vector<128x128xf32>
    %cst = arith.constant dense<0.000000e+00> : vector<2x128xf32>
    %22 = tpu.matmul %20, %21, %cst {dimension_numbers = #tpu.dot_dimension_numbers<[1], [0], [0], [1], [0, 0, 1, 1], [], []>} : vector<2x128xf32>, vector<128x128xf32>, vector<2x128xf32> -> vector<2x128xf32>
    %c0_20 = arith.constant 0 : index
    %c0_21 = arith.constant 0 : index
    %23 = vector.load %arg3[%c0_20, %c0_21] : memref<1x128xf32, #tpu.memory_space<vmem>>, vector<1x128xf32>
    %24 = vector.broadcast %23 : vector<1x128xf32> to vector<2x128xf32>
    %25 = arith.addf %22, %24 : vector<2x128xf32>
    %cst_22 = arith.constant 0.000000e+00 : f32
    %26 = vector.broadcast %cst_22 : f32 to vector<2x128xf32>
    %27 = arith.maximumf %25, %26 : vector<2x128xf32>
    %28 = vector.extract_strided_slice %27 {offsets = [0, 0], sizes = [1, 128], strides = [1, 1]} : vector<2x128xf32> to vector<1x128xf32>
    %29 = vector.extract_strided_slice %27 {offsets = [1, 0], sizes = [1, 128], strides = [1, 1]} : vector<2x128xf32> to vector<1x128xf32>
    %30 = tpu.concatenate %28, %29 in 1 : vector<1x128xf32>, vector<1x128xf32> -> vector<1x256xf32>
    %31 = tpu.iota {dimensions = array<i32: 1>} : vector<1x256xi32>
    %c128_i32 = arith.constant 128 : i32
    %c0_i32_23 = arith.constant 0 : i32
    %32 = arith.cmpi eq, %c128_i32, %c0_i32_23 : i32
    %c1_i32_24 = arith.constant 1 : i32
    %33 = arith.select %32, %c1_i32_24, %c128_i32 : i32
    %34 = vector.broadcast %33 : i32 to vector<1x256xi32>
    %35 = arith.remsi %31, %34 : vector<1x256xi32>
    %c0_i32_25 = arith.constant 0 : i32
    %36 = vector.broadcast %c0_i32_25 : i32 to vector<1x256xi32>
    %37 = arith.cmpi ne, %35, %36 : vector<1x256xi32>
    %c0_i32_26 = arith.constant 0 : i32
    %38 = vector.broadcast %c0_i32_26 : i32 to vector<1x256xi32>
    %39 = arith.cmpi slt, %35, %38 : vector<1x256xi32>
    %c0_i32_27 = arith.constant 0 : i32
    %40 = arith.cmpi slt, %33, %c0_i32_27 : i32
    %41 = vector.broadcast %40 : i1 to vector<1x256xi1>
    %42 = vector.broadcast %41 : vector<1x256xi1> to vector<1x256xi1>
    %43 = arith.xori %39, %42 : vector<1x256xi1>
    %44 = arith.andi %43, %37 : vector<1x256xi1>
    %45 = vector.broadcast %33 : i32 to vector<1x256xi32>
    %46 = arith.addi %35, %45 : vector<1x256xi32>
    %47 = arith.select %44, %46, %35 : vector<1x256xi1>, vector<1x256xi32>
    %c0_i32_28 = arith.constant 0 : i32
    %48 = vector.broadcast %c0_i32_28 : i32 to vector<1x256xi32>
    %49 = arith.cmpi eq, %47, %48 : vector<1x256xi32>
    %c127_i32 = arith.constant 127 : i32
    %50 = vector.broadcast %c127_i32 : i32 to vector<1x256xi32>
    %51 = arith.cmpi eq, %47, %50 : vector<1x256xi32>
    %c1_i32_29 = arith.constant 1 : i32
    %52 = tpu.dynamic_rotate %30 by %c1_i32_29 dim 1 : vector<1x256xf32>, i32 -> vector<1x256xf32>
    %cst_30 = arith.constant 0.000000e+00 : f32
    %53 = vector.broadcast %cst_30 : f32 to vector<1x256xf32>
    %54 = arith.select %49, %53, %52 : vector<1x256xi1>, vector<1x256xf32>
    %c255_i32 = arith.constant 255 : i32
    %55 = tpu.dynamic_rotate %30 by %c255_i32 dim 1 : vector<1x256xf32>, i32 -> vector<1x256xf32>
    %cst_31 = arith.constant 0.000000e+00 : f32
    %56 = vector.broadcast %cst_31 : f32 to vector<1x256xf32>
    %57 = arith.select %51, %56, %55 : vector<1x256xi1>, vector<1x256xf32>
    %c0_32 = arith.constant 0 : index
    %c0_33 = arith.constant 0 : index
    %58 = vector.load %arg4[%c0_32, %c0_33] : memref<16x3xf32, #tpu.memory_space<vmem>>, vector<16x1xf32>
    %59 = vector.broadcast %58 : vector<16x1xf32> to vector<16x256xf32>
    %60 = vector.broadcast %54 : vector<1x256xf32> to vector<16x256xf32>
    %61 = arith.mulf %59, %60 : vector<16x256xf32>
    %c0_34 = arith.constant 0 : index
    %c1 = arith.constant 1 : index
    %62 = vector.load %arg4[%c0_34, %c1] : memref<16x3xf32, #tpu.memory_space<vmem>>, vector<16x1xf32>
    %63 = vector.broadcast %62 : vector<16x1xf32> to vector<16x256xf32>
    %64 = vector.broadcast %30 : vector<1x256xf32> to vector<16x256xf32>
    %65 = arith.mulf %63, %64 : vector<16x256xf32>
    %66 = arith.addf %61, %65 : vector<16x256xf32>
    %c0_35 = arith.constant 0 : index
    %c2 = arith.constant 2 : index
    %67 = vector.load %arg4[%c0_35, %c2] : memref<16x3xf32, #tpu.memory_space<vmem>>, vector<16x1xf32>
    %68 = vector.broadcast %67 : vector<16x1xf32> to vector<16x256xf32>
    %69 = vector.broadcast %57 : vector<1x256xf32> to vector<16x256xf32>
    %70 = arith.mulf %68, %69 : vector<16x256xf32>
    %71 = arith.addf %66, %70 : vector<16x256xf32>
    %c0_36 = arith.constant 0 : index
    %c0_37 = arith.constant 0 : index
    %72 = vector.load %arg5[%c0_36, %c0_37] : memref<16x1xf32, #tpu.memory_space<vmem>>, vector<16x1xf32>
    %73 = vector.broadcast %72 : vector<16x1xf32> to vector<16x256xf32>
    %74 = arith.addf %71, %73 : vector<16x256xf32>
    %cst_38 = arith.constant 0.000000e+00 : f32
    %75 = vector.broadcast %cst_38 : f32 to vector<16x256xf32>
    %76 = arith.maximumf %74, %75 : vector<16x256xf32>
    %c1_i32_39 = arith.constant 1 : i32
    %77 = tpu.dynamic_rotate %76 by %c1_i32_39 dim 1 : vector<16x256xf32>, i32 -> vector<16x256xf32>
    %cst_40 = arith.constant 0.000000e+00 : f32
    %78 = vector.shape_cast %49 : vector<1x256xi1> to vector<1x256xi1>
    %79 = vector.broadcast %78 : vector<1x256xi1> to vector<16x256xi1>
    %80 = vector.broadcast %cst_40 : f32 to vector<16x256xf32>
    %81 = arith.select %79, %80, %77 : vector<16x256xi1>, vector<16x256xf32>
    %c255_i32_41 = arith.constant 255 : i32
    %82 = tpu.dynamic_rotate %76 by %c255_i32_41 dim 1 : vector<16x256xf32>, i32 -> vector<16x256xf32>
    %cst_42 = arith.constant 0.000000e+00 : f32
    %83 = vector.shape_cast %51 : vector<1x256xi1> to vector<1x256xi1>
    %84 = vector.broadcast %83 : vector<1x256xi1> to vector<16x256xi1>
    %85 = vector.broadcast %cst_42 : f32 to vector<16x256xf32>
    %86 = arith.select %84, %85, %82 : vector<16x256xi1>, vector<16x256xf32>
    %c0_43 = arith.constant 0 : index
    %c0_44 = arith.constant 0 : index
    %87 = vector.load %arg6[%c0_43, %c0_44] : memref<32x48xf32, #tpu.memory_space<vmem>>, vector<32x16xf32>
    %cst_45 = arith.constant dense<0.000000e+00> : vector<32x256xf32>
    %88 = tpu.matmul %87, %81, %cst_45 {dimension_numbers = #tpu.dot_dimension_numbers<[1], [0], [0], [1], [0, 0, 1, 1], [], []>} : vector<32x16xf32>, vector<16x256xf32>, vector<32x256xf32> -> vector<32x256xf32>
    %c0_46 = arith.constant 0 : index
    %c16 = arith.constant 16 : index
    %89 = vector.load %arg6[%c0_46, %c16] : memref<32x48xf32, #tpu.memory_space<vmem>>, vector<32x16xf32>
    %cst_47 = arith.constant dense<0.000000e+00> : vector<32x256xf32>
    %90 = tpu.matmul %89, %76, %cst_47 {dimension_numbers = #tpu.dot_dimension_numbers<[1], [0], [0], [1], [0, 0, 1, 1], [], []>} : vector<32x16xf32>, vector<16x256xf32>, vector<32x256xf32> -> vector<32x256xf32>
    %91 = arith.addf %88, %90 : vector<32x256xf32>
    %c0_48 = arith.constant 0 : index
    %c32 = arith.constant 32 : index
    %92 = vector.load %arg6[%c0_48, %c32] : memref<32x48xf32, #tpu.memory_space<vmem>>, vector<32x16xf32>
    %cst_49 = arith.constant dense<0.000000e+00> : vector<32x256xf32>
    %93 = tpu.matmul %92, %86, %cst_49 {dimension_numbers = #tpu.dot_dimension_numbers<[1], [0], [0], [1], [0, 0, 1, 1], [], []>} : vector<32x16xf32>, vector<16x256xf32>, vector<32x256xf32> -> vector<32x256xf32>
    %94 = arith.addf %91, %93 : vector<32x256xf32>
    %c0_50 = arith.constant 0 : index
    %c0_51 = arith.constant 0 : index
    %95 = vector.load %arg7[%c0_50, %c0_51] : memref<32x1xf32, #tpu.memory_space<vmem>>, vector<32x1xf32>
    %96 = vector.broadcast %95 : vector<32x1xf32> to vector<32x256xf32>
    %97 = arith.addf %94, %96 : vector<32x256xf32>
    %cst_52 = arith.constant 0.000000e+00 : f32
    %98 = vector.broadcast %cst_52 : f32 to vector<32x256xf32>
    %99 = arith.maximumf %97, %98 : vector<32x256xf32>
    %c1_i32_53 = arith.constant 1 : i32
    %100 = tpu.dynamic_rotate %99 by %c1_i32_53 dim 1 : vector<32x256xf32>, i32 -> vector<32x256xf32>
    %cst_54 = arith.constant 0.000000e+00 : f32
    %101 = vector.shape_cast %49 : vector<1x256xi1> to vector<1x256xi1>
    %102 = vector.broadcast %101 : vector<1x256xi1> to vector<32x256xi1>
    %103 = vector.broadcast %cst_54 : f32 to vector<32x256xf32>
    %104 = arith.select %102, %103, %100 : vector<32x256xi1>, vector<32x256xf32>
    %c255_i32_55 = arith.constant 255 : i32
    %105 = tpu.dynamic_rotate %99 by %c255_i32_55 dim 1 : vector<32x256xf32>, i32 -> vector<32x256xf32>
    %cst_56 = arith.constant 0.000000e+00 : f32
    %106 = vector.shape_cast %51 : vector<1x256xi1> to vector<1x256xi1>
    %107 = vector.broadcast %106 : vector<1x256xi1> to vector<32x256xi1>
    %108 = vector.broadcast %cst_56 : f32 to vector<32x256xf32>
    %109 = arith.select %107, %108, %105 : vector<32x256xi1>, vector<32x256xf32>
    %c0_57 = arith.constant 0 : index
    %c0_58 = arith.constant 0 : index
    %110 = vector.load %arg8[%c0_57, %c0_58] : memref<64x96xf32, #tpu.memory_space<vmem>>, vector<64x32xf32>
    %cst_59 = arith.constant dense<0.000000e+00> : vector<64x256xf32>
    %111 = tpu.matmul %110, %104, %cst_59 {dimension_numbers = #tpu.dot_dimension_numbers<[1], [0], [0], [1], [0, 0, 1, 1], [], []>} : vector<64x32xf32>, vector<32x256xf32>, vector<64x256xf32> -> vector<64x256xf32>
    %c0_60 = arith.constant 0 : index
    %c32_61 = arith.constant 32 : index
    %112 = vector.load %arg8[%c0_60, %c32_61] : memref<64x96xf32, #tpu.memory_space<vmem>>, vector<64x32xf32>
    %cst_62 = arith.constant dense<0.000000e+00> : vector<64x256xf32>
    %113 = tpu.matmul %112, %99, %cst_62 {dimension_numbers = #tpu.dot_dimension_numbers<[1], [0], [0], [1], [0, 0, 1, 1], [], []>} : vector<64x32xf32>, vector<32x256xf32>, vector<64x256xf32> -> vector<64x256xf32>
    %114 = arith.addf %111, %113 : vector<64x256xf32>
    %c0_63 = arith.constant 0 : index
    %c64 = arith.constant 64 : index
    %115 = vector.load %arg8[%c0_63, %c64] : memref<64x96xf32, #tpu.memory_space<vmem>>, vector<64x32xf32>
    %cst_64 = arith.constant dense<0.000000e+00> : vector<64x256xf32>
    %116 = tpu.matmul %115, %109, %cst_64 {dimension_numbers = #tpu.dot_dimension_numbers<[1], [0], [0], [1], [0, 0, 1, 1], [], []>} : vector<64x32xf32>, vector<32x256xf32>, vector<64x256xf32> -> vector<64x256xf32>
    %117 = arith.addf %114, %116 : vector<64x256xf32>
    %c0_65 = arith.constant 0 : index
    %c0_66 = arith.constant 0 : index
    %118 = vector.load %arg9[%c0_65, %c0_66] : memref<64x1xf32, #tpu.memory_space<vmem>>, vector<64x1xf32>
    %119 = vector.broadcast %118 : vector<64x1xf32> to vector<64x256xf32>
    %120 = arith.addf %117, %119 : vector<64x256xf32>
    %cst_67 = arith.constant 0.000000e+00 : f32
    %121 = vector.broadcast %cst_67 : f32 to vector<64x256xf32>
    %122 = arith.maximumf %120, %121 : vector<64x256xf32>
    %123 = vector.extract_strided_slice %122 {offsets = [0, 0], sizes = [16, 128], strides = [1, 1]} : vector<64x256xf32> to vector<16x128xf32>
    %124 = arith.truncf %123 : vector<16x128xf32> to vector<16x128xbf16>
    %125 = vector.shape_cast %124 : vector<16x128xbf16> to vector<1x2048xbf16>
    %c0_68 = arith.constant 0 : index
    %c0_69 = arith.constant 0 : index
    %126 = vector.load %arg17[%c0_68, %c0_69] : memref<2x8192xbf16, #tpu.memory_space<vmem>>, vector<1x2048xbf16>
    tpu.vector_store %arg17[%c0_68, %c0_69], %125 {strides = array<i32>} : memref<2x8192xbf16, #tpu.memory_space<vmem>>, vector<1x2048xbf16>,
    %127 = vector.extract_strided_slice %122 {offsets = [16, 0], sizes = [16, 128], strides = [1, 1]} : vector<64x256xf32> to vector<16x128xf32>
    %128 = arith.truncf %127 : vector<16x128xf32> to vector<16x128xbf16>
    %129 = vector.shape_cast %128 : vector<16x128xbf16> to vector<1x2048xbf16>
    %c0_70 = arith.constant 0 : index
    %c2048 = arith.constant 2048 : index
    %130 = vector.load %arg17[%c0_70, %c2048] : memref<2x8192xbf16, #tpu.memory_space<vmem>>, vector<1x2048xbf16>
    tpu.vector_store %arg17[%c0_70, %c2048], %129 {strides = array<i32>} : memref<2x8192xbf16, #tpu.memory_space<vmem>>, vector<1x2048xbf16>,
    %131 = vector.extract_strided_slice %122 {offsets = [32, 0], sizes = [16, 128], strides = [1, 1]} : vector<64x256xf32> to vector<16x128xf32>
    %132 = arith.truncf %131 : vector<16x128xf32> to vector<16x128xbf16>
    %133 = vector.shape_cast %132 : vector<16x128xbf16> to vector<1x2048xbf16>
    %c0_71 = arith.constant 0 : index
    %c4096 = arith.constant 4096 : index
    %134 = vector.load %arg17[%c0_71, %c4096] : memref<2x8192xbf16, #tpu.memory_space<vmem>>, vector<1x2048xbf16>
    tpu.vector_store %arg17[%c0_71, %c4096], %133 {strides = array<i32>} : memref<2x8192xbf16, #tpu.memory_space<vmem>>, vector<1x2048xbf16>,
    %135 = vector.extract_strided_slice %122 {offsets = [48, 0], sizes = [16, 128], strides = [1, 1]} : vector<64x256xf32> to vector<16x128xf32>
    %136 = arith.truncf %135 : vector<16x128xf32> to vector<16x128xbf16>
    %137 = vector.shape_cast %136 : vector<16x128xbf16> to vector<1x2048xbf16>
    %c0_72 = arith.constant 0 : index
    %c6144 = arith.constant 6144 : index
    %138 = vector.load %arg17[%c0_72, %c6144] : memref<2x8192xbf16, #tpu.memory_space<vmem>>, vector<1x2048xbf16>
    tpu.vector_store %arg17[%c0_72, %c6144], %137 {strides = array<i32>} : memref<2x8192xbf16, #tpu.memory_space<vmem>>, vector<1x2048xbf16>,
    %139 = vector.extract_strided_slice %122 {offsets = [0, 128], sizes = [16, 128], strides = [1, 1]} : vector<64x256xf32> to vector<16x128xf32>
    %140 = arith.truncf %139 : vector<16x128xf32> to vector<16x128xbf16>
    %141 = vector.shape_cast %140 : vector<16x128xbf16> to vector<1x2048xbf16>
    %c1_73 = arith.constant 1 : index
    %c0_74 = arith.constant 0 : index
    %142 = vector.load %arg17[%c1_73, %c0_74] : memref<2x8192xbf16, #tpu.memory_space<vmem>>, vector<1x2048xbf16>
    tpu.vector_store %arg17[%c1_73, %c0_74], %141 {strides = array<i32>} : memref<2x8192xbf16, #tpu.memory_space<vmem>>, vector<1x2048xbf16>,
    %143 = vector.extract_strided_slice %122 {offsets = [16, 128], sizes = [16, 128], strides = [1, 1]} : vector<64x256xf32> to vector<16x128xf32>
    %144 = arith.truncf %143 : vector<16x128xf32> to vector<16x128xbf16>
    %145 = vector.shape_cast %144 : vector<16x128xbf16> to vector<1x2048xbf16>
    %c1_75 = arith.constant 1 : index
    %c2048_76 = arith.constant 2048 : index
    %146 = vector.load %arg17[%c1_75, %c2048_76] : memref<2x8192xbf16, #tpu.memory_space<vmem>>, vector<1x2048xbf16>
    tpu.vector_store %arg17[%c1_75, %c2048_76], %145 {strides = array<i32>} : memref<2x8192xbf16, #tpu.memory_space<vmem>>, vector<1x2048xbf16>,
    %147 = vector.extract_strided_slice %122 {offsets = [32, 128], sizes = [16, 128], strides = [1, 1]} : vector<64x256xf32> to vector<16x128xf32>
    %148 = arith.truncf %147 : vector<16x128xf32> to vector<16x128xbf16>
    %149 = vector.shape_cast %148 : vector<16x128xbf16> to vector<1x2048xbf16>
    %c1_77 = arith.constant 1 : index
    %c4096_78 = arith.constant 4096 : index
    %150 = vector.load %arg17[%c1_77, %c4096_78] : memref<2x8192xbf16, #tpu.memory_space<vmem>>, vector<1x2048xbf16>
    tpu.vector_store %arg17[%c1_77, %c4096_78], %149 {strides = array<i32>} : memref<2x8192xbf16, #tpu.memory_space<vmem>>, vector<1x2048xbf16>,
    %151 = vector.extract_strided_slice %122 {offsets = [48, 128], sizes = [16, 128], strides = [1, 1]} : vector<64x256xf32> to vector<16x128xf32>
    %152 = arith.truncf %151 : vector<16x128xf32> to vector<16x128xbf16>
    %153 = vector.shape_cast %152 : vector<16x128xbf16> to vector<1x2048xbf16>
    %c1_79 = arith.constant 1 : index
    %c6144_80 = arith.constant 6144 : index
    %154 = vector.load %arg17[%c1_79, %c6144_80] : memref<2x8192xbf16, #tpu.memory_space<vmem>>, vector<1x2048xbf16>
    tpu.vector_store %arg17[%c1_79, %c6144_80], %153 {strides = array<i32>} : memref<2x8192xbf16, #tpu.memory_space<vmem>>, vector<1x2048xbf16>,
    %cst_81 = arith.constant 0.000000e+00 : f32
    %155 = vector.broadcast %cst_81 : f32 to vector<2x256xf32>
    %c0_i32_82 = arith.constant 0 : i32
    %c0_i32_83 = arith.constant 0 : i32
    %c0_i32_84 = arith.constant 0 : i32
    %c0_i32_85 = arith.constant 0 : i32
    %156 = tpu.memref_slice %arg10[%c0_i32_84, %c0_i32_85] : memref<8192x256xbf16, #tpu.memory_space<any>> -> memref<2048x256xbf16, #tpu.memory_space<any>>
    %c0_i32_86 = arith.constant 0 : i32
    %c0_i32_87 = arith.constant 0 : i32
    %157 = tpu.memref_slice %arg15[%c0_i32_82, %c0_i32_86, %c0_i32_87] : memref<4x2048x256xbf16, #tpu.memory_space<vmem>> -> memref<1x2048x256xbf16, #tpu.memory_space<vmem>>
    %158 = tpu.memref_squeeze %157 : memref<1x2048x256xbf16, #tpu.memory_space<vmem>> -> memref<2048x256xbf16, #tpu.memory_space<vmem>>
    %159 = tpu.memref_slice %arg16[%c0_i32_83] : memref<4x!tpu.dma_semaphore, #tpu.memory_space<semaphore_mem>> -> memref<1x!tpu.dma_semaphore, #tpu.memory_space<semaphore_mem>>
    %160 = tpu.memref_squeeze %159 : memref<1x!tpu.dma_semaphore, #tpu.memory_space<semaphore_mem>> -> memref<!tpu.dma_semaphore, #tpu.memory_space<semaphore_mem>>
    tpu.wait_dma2 semaphore(%160 : memref<!tpu.dma_semaphore, #tpu.memory_space<semaphore_mem>>) src(%156 : memref<2048x256xbf16, #tpu.memory_space<any>>) dst(%158 : memref<2048x256xbf16, #tpu.memory_space<vmem>>)
    %c0_88 = arith.constant 0 : index
    %c0_89 = arith.constant 0 : index
    %161 = vector.load %arg17[%c0_88, %c0_89] : memref<2x8192xbf16, #tpu.memory_space<vmem>>, vector<2x2048xbf16>
    %c0_90 = arith.constant 0 : index
    %c0_91 = arith.constant 0 : index
    %c0_92 = arith.constant 0 : index
    %162 = vector.load %arg15[%c0_90, %c0_91, %c0_92] : memref<4x2048x256xbf16, #tpu.memory_space<vmem>>, vector<1x2048x256xbf16>
    %163 = vector.shape_cast %162 : vector<1x2048x256xbf16> to vector<2048x256xbf16>
    %cst_93 = arith.constant dense<0.000000e+00> : vector<2x256xf32>
    %164 = tpu.matmul %161, %163, %cst_93 {dimension_numbers = #tpu.dot_dimension_numbers<[1], [0], [0], [1], [0, 0, 1, 1], [], []>} : vector<2x2048xbf16>, vector<2048x256xbf16>, vector<2x256xf32> -> vector<2x256xf32>
    %165 = arith.addf %155, %164 : vector<2x256xf32>
    %c1_i32_94 = arith.constant 1 : i32
    %c1_i32_95 = arith.constant 1 : i32
    %c2048_i32_96 = arith.constant 2048 : i32
    %c0_i32_97 = arith.constant 0 : i32
    %166 = tpu.memref_slice %arg10[%c2048_i32_96, %c0_i32_97] : memref<8192x256xbf16, #tpu.memory_space<any>> -> memref<2048x256xbf16, #tpu.memory_space<any>>
    %c0_i32_98 = arith.constant 0 : i32
    %c0_i32_99 = arith.constant 0 : i32
    %167 = tpu.memref_slice %arg15[%c1_i32_94, %c0_i32_98, %c0_i32_99] : memref<4x2048x256xbf16, #tpu.memory_space<vmem>> -> memref<1x2048x256xbf16, #tpu.memory_space<vmem>>
    %168 = tpu.memref_squeeze %167 : memref<1x2048x256xbf16, #tpu.memory_space<vmem>> -> memref<2048x256xbf16, #tpu.memory_space<vmem>>
    %169 = tpu.memref_slice %arg16[%c1_i32_95] : memref<4x!tpu.dma_semaphore, #tpu.memory_space<semaphore_mem>> -> memref<1x!tpu.dma_semaphore, #tpu.memory_space<semaphore_mem>>
    %170 = tpu.memref_squeeze %169 : memref<1x!tpu.dma_semaphore, #tpu.memory_space<semaphore_mem>> -> memref<!tpu.dma_semaphore, #tpu.memory_space<semaphore_mem>>
    tpu.wait_dma2 semaphore(%170 : memref<!tpu.dma_semaphore, #tpu.memory_space<semaphore_mem>>) src(%166 : memref<2048x256xbf16, #tpu.memory_space<any>>) dst(%168 : memref<2048x256xbf16, #tpu.memory_space<vmem>>)
    %c0_100 = arith.constant 0 : index
    %c2048_101 = arith.constant 2048 : index
    %171 = vector.load %arg17[%c0_100, %c2048_101] : memref<2x8192xbf16, #tpu.memory_space<vmem>>, vector<2x2048xbf16>
    %c1_102 = arith.constant 1 : index
    %c0_103 = arith.constant 0 : index
    %c0_104 = arith.constant 0 : index
    %172 = vector.load %arg15[%c1_102, %c0_103, %c0_104] : memref<4x2048x256xbf16, #tpu.memory_space<vmem>>, vector<1x2048x256xbf16>
    %173 = vector.shape_cast %172 : vector<1x2048x256xbf16> to vector<2048x256xbf16>
    %cst_105 = arith.constant dense<0.000000e+00> : vector<2x256xf32>
    %174 = tpu.matmul %171, %173, %cst_105 {dimension_numbers = #tpu.dot_dimension_numbers<[1], [0], [0], [1], [0, 0, 1, 1], [], []>} : vector<2x2048xbf16>, vector<2048x256xbf16>, vector<2x256xf32> -> vector<2x256xf32>
    %175 = arith.addf %165, %174 : vector<2x256xf32>
    %c2_i32_106 = arith.constant 2 : i32
    %c2_i32_107 = arith.constant 2 : i32
    %c4096_i32_108 = arith.constant 4096 : i32
    %c0_i32_109 = arith.constant 0 : i32
    %176 = tpu.memref_slice %arg10[%c4096_i32_108, %c0_i32_109] : memref<8192x256xbf16, #tpu.memory_space<any>> -> memref<2048x256xbf16, #tpu.memory_space<any>>
    %c0_i32_110 = arith.constant 0 : i32
    %c0_i32_111 = arith.constant 0 : i32
    %177 = tpu.memref_slice %arg15[%c2_i32_106, %c0_i32_110, %c0_i32_111] : memref<4x2048x256xbf16, #tpu.memory_space<vmem>> -> memref<1x2048x256xbf16, #tpu.memory_space<vmem>>
    %178 = tpu.memref_squeeze %177 : memref<1x2048x256xbf16, #tpu.memory_space<vmem>> -> memref<2048x256xbf16, #tpu.memory_space<vmem>>
    %179 = tpu.memref_slice %arg16[%c2_i32_107] : memref<4x!tpu.dma_semaphore, #tpu.memory_space<semaphore_mem>> -> memref<1x!tpu.dma_semaphore, #tpu.memory_space<semaphore_mem>>
    %180 = tpu.memref_squeeze %179 : memref<1x!tpu.dma_semaphore, #tpu.memory_space<semaphore_mem>> -> memref<!tpu.dma_semaphore, #tpu.memory_space<semaphore_mem>>
    tpu.wait_dma2 semaphore(%180 : memref<!tpu.dma_semaphore, #tpu.memory_space<semaphore_mem>>) src(%176 : memref<2048x256xbf16, #tpu.memory_space<any>>) dst(%178 : memref<2048x256xbf16, #tpu.memory_space<vmem>>)
    %c0_112 = arith.constant 0 : index
    %c4096_113 = arith.constant 4096 : index
    %181 = vector.load %arg17[%c0_112, %c4096_113] : memref<2x8192xbf16, #tpu.memory_space<vmem>>, vector<2x2048xbf16>
    %c2_114 = arith.constant 2 : index
    %c0_115 = arith.constant 0 : index
    %c0_116 = arith.constant 0 : index
    %182 = vector.load %arg15[%c2_114, %c0_115, %c0_116] : memref<4x2048x256xbf16, #tpu.memory_space<vmem>>, vector<1x2048x256xbf16>
    %183 = vector.shape_cast %182 : vector<1x2048x256xbf16> to vector<2048x256xbf16>
    %cst_117 = arith.constant dense<0.000000e+00> : vector<2x256xf32>
    %184 = tpu.matmul %181, %183, %cst_117 {dimension_numbers = #tpu.dot_dimension_numbers<[1], [0], [0], [1], [0, 0, 1, 1], [], []>} : vector<2x2048xbf16>, vector<2048x256xbf16>, vector<2x256xf32> -> vector<2x256xf32>
    %185 = arith.addf %175, %184 : vector<2x256xf32>
    %c3_i32_118 = arith.constant 3 : i32
    %c3_i32_119 = arith.constant 3 : i32
    %c6144_i32_120 = arith.constant 6144 : i32
    %c0_i32_121 = arith.constant 0 : i32
    %186 = tpu.memref_slice %arg10[%c6144_i32_120, %c0_i32_121] : memref<8192x256xbf16, #tpu.memory_space<any>> -> memref<2048x256xbf16, #tpu.memory_space<any>>
    %c0_i32_122 = arith.constant 0 : i32
    %c0_i32_123 = arith.constant 0 : i32
    %187 = tpu.memref_slice %arg15[%c3_i32_118, %c0_i32_122, %c0_i32_123] : memref<4x2048x256xbf16, #tpu.memory_space<vmem>> -> memref<1x2048x256xbf16, #tpu.memory_space<vmem>>
    %188 = tpu.memref_squeeze %187 : memref<1x2048x256xbf16, #tpu.memory_space<vmem>> -> memref<2048x256xbf16, #tpu.memory_space<vmem>>
    %189 = tpu.memref_slice %arg16[%c3_i32_119] : memref<4x!tpu.dma_semaphore, #tpu.memory_space<semaphore_mem>> -> memref<1x!tpu.dma_semaphore, #tpu.memory_space<semaphore_mem>>
    %190 = tpu.memref_squeeze %189 : memref<1x!tpu.dma_semaphore, #tpu.memory_space<semaphore_mem>> -> memref<!tpu.dma_semaphore, #tpu.memory_space<semaphore_mem>>
    tpu.wait_dma2 semaphore(%190 : memref<!tpu.dma_semaphore, #tpu.memory_space<semaphore_mem>>) src(%186 : memref<2048x256xbf16, #tpu.memory_space<any>>) dst(%188 : memref<2048x256xbf16, #tpu.memory_space<vmem>>)
    %c0_124 = arith.constant 0 : index
    %c6144_125 = arith.constant 6144 : index
    %191 = vector.load %arg17[%c0_124, %c6144_125] : memref<2x8192xbf16, #tpu.memory_space<vmem>>, vector<2x2048xbf16>
    %c3 = arith.constant 3 : index
    %c0_126 = arith.constant 0 : index
    %c0_127 = arith.constant 0 : index
    %192 = vector.load %arg15[%c3, %c0_126, %c0_127] : memref<4x2048x256xbf16, #tpu.memory_space<vmem>>, vector<1x2048x256xbf16>
    %193 = vector.shape_cast %192 : vector<1x2048x256xbf16> to vector<2048x256xbf16>
    %cst_128 = arith.constant dense<0.000000e+00> : vector<2x256xf32>
    %194 = tpu.matmul %191, %193, %cst_128 {dimension_numbers = #tpu.dot_dimension_numbers<[1], [0], [0], [1], [0, 0, 1, 1], [], []>} : vector<2x2048xbf16>, vector<2048x256xbf16>, vector<2x256xf32> -> vector<2x256xf32>
    %195 = arith.addf %185, %194 : vector<2x256xf32>
    %c0_129 = arith.constant 0 : index
    %c0_130 = arith.constant 0 : index
    %196 = vector.load %arg11[%c0_129, %c0_130] : memref<1x256xf32, #tpu.memory_space<vmem>>, vector<1x256xf32>
    %197 = vector.broadcast %196 : vector<1x256xf32> to vector<2x256xf32>
    %198 = arith.addf %195, %197 : vector<2x256xf32>
    %cst_131 = arith.constant 0.000000e+00 : f32
    %199 = vector.broadcast %cst_131 : f32 to vector<2x256xf32>
    %200 = arith.maximumf %198, %199 : vector<2x256xf32>
    %c0_132 = arith.constant 0 : index
    %c0_133 = arith.constant 0 : index
    %201 = vector.load %arg12[%c0_132, %c0_133] : memref<256x64xf32, #tpu.memory_space<vmem>>, vector<256x64xf32>
    %cst_134 = arith.constant dense<0.000000e+00> : vector<2x64xf32>
    %202 = tpu.matmul %200, %201, %cst_134 {dimension_numbers = #tpu.dot_dimension_numbers<[1], [0], [0], [1], [0, 0, 1, 1], [], []>} : vector<2x256xf32>, vector<256x64xf32>, vector<2x64xf32> -> vector<2x64xf32>
    %c0_135 = arith.constant 0 : index
    %c0_136 = arith.constant 0 : index
    %203 = vector.load %arg13[%c0_135, %c0_136] : memref<1x64xf32, #tpu.memory_space<vmem>>, vector<1x64xf32>
    %204 = vector.broadcast %203 : vector<1x64xf32> to vector<2x64xf32>
    %205 = arith.addf %202, %204 : vector<2x64xf32>
    %c0_137 = arith.constant 0 : index
    %c0_138 = arith.constant 0 : index
    %206 = vector.load %arg14[%c0_137, %c0_138] : memref<2x64xf32, #tpu.memory_space<vmem>>, vector<2x64xf32>
    tpu.vector_store %arg14[%c0_137, %c0_138], %205 {strides = array<i32>} : memref<2x64xf32, #tpu.memory_space<vmem>>, vector<2x64xf32>,
    return
  }
  func.func @transform_0(%arg0: i32) -> (i32, i32) {
    %c0_i32 = arith.constant 0 : i32
    %c0_i32_0 = arith.constant 0 : i32
    %c0_i32_1 = arith.constant 0 : i32
    return %c0_i32, %c0_i32_0 : i32, i32
  }
  func.func @transform_1(%arg0: i32) -> (i32, i32) {
    %c0_i32 = arith.constant 0 : i32
    %c0_i32_0 = arith.constant 0 : i32
    %c0_i32_1 = arith.constant 0 : i32
    return %c0_i32, %c0_i32_0 : i32, i32
  }
  func.func @transform_2(%arg0: i32) -> (i32, i32) {
    %c0_i32 = arith.constant 0 : i32
    %c0_i32_0 = arith.constant 0 : i32
    %c0_i32_1 = arith.constant 0 : i32
    return %c0_i32, %c0_i32_0 : i32, i32
  }
  func.func @transform_3(%arg0: i32) -> (i32, i32) {
    %c0_i32 = arith.constant 0 : i32
    %c0_i32_0 = arith.constant 0 : i32
    %c0_i32_1 = arith.constant 0 : i32
    return %c0_i32, %c0_i32_0 : i32, i32
  }
  func.func @transform_4(%arg0: i32) -> (i32, i32) {
    %c0_i32 = arith.constant 0 : i32
    %c0_i32_0 = arith.constant 0 : i32
    %c0_i32_1 = arith.constant 0 : i32
    return %c0_i32, %c0_i32_0 : i32, i32
  }
  func.func @transform_5(%arg0: i32) -> (i32, i32) {
    %c0_i32 = arith.constant 0 : i32
    %c0_i32_0 = arith.constant 0 : i32
    %c0_i32_1 = arith.constant 0 : i32
    return %c0_i32, %c0_i32_0 : i32, i32
  }
  func.func @transform_6(%arg0: i32) -> (i32, i32) {
    %c0_i32 = arith.constant 0 : i32
    %c0_i32_0 = arith.constant 0 : i32
    %c0_i32_1 = arith.constant 0 : i32
    return %c0_i32, %c0_i32_0 : i32, i32
  }
  func.func @transform_7(%arg0: i32) -> (i32, i32) {
    %c0_i32 = arith.constant 0 : i32
    %c0_i32_0 = arith.constant 0 : i32
    %c0_i32_1 = arith.constant 0 : i32
    return %c0_i32, %c0_i32_0 : i32, i32
  }
  func.func @transform_8(%arg0: i32) -> (i32, i32) {
    %c0_i32 = arith.constant 0 : i32
    %c0_i32_0 = arith.constant 0 : i32
    %c0_i32_1 = arith.constant 0 : i32
    return %c0_i32, %c0_i32_0 : i32, i32
  }
  func.func @transform_10(%arg0: i32) -> (i32, i32) {
    %c0_i32 = arith.constant 0 : i32
    %c0_i32_0 = arith.constant 0 : i32
    %c0_i32_1 = arith.constant 0 : i32
    return %c0_i32, %c0_i32_0 : i32, i32
  }
  func.func @transform_11(%arg0: i32) -> (i32, i32) {
    %c0_i32 = arith.constant 0 : i32
    %c0_i32_0 = arith.constant 0 : i32
    %c0_i32_1 = arith.constant 0 : i32
    return %c0_i32, %c0_i32_0 : i32, i32
  }
  func.func @transform_12(%arg0: i32) -> (i32, i32) {
    %c0_i32 = arith.constant 0 : i32
    %c0_i32_0 = arith.constant 0 : i32
    %c0_i32_1 = arith.constant 0 : i32
    return %c0_i32, %c0_i32_0 : i32, i32
  }
  func.func @transform_13(%arg0: i32) -> (i32, i32) {
    %c0_i32 = arith.constant 0 : i32
    %c0_i32_0 = arith.constant 0 : i32
    %c0_i32_1 = arith.constant 0 : i32
    return %c0_i32, %c0_i32_0 : i32, i32
  }
}

</mosaic_0001>

<llo_original>
// kernel: tpu_custom_call.1
$region0: #{tpu_custom_call.1}
  #allocation0 [shape = 'u32[]', space=smem, size = 0x4, offset = 0x4, fixed_abs, tag = 'smem constant byte address 0x4 - core index']
  #allocation1 [shape = 'u32[144,128]{1,0:T(1,128)}', space=vmem, size = 0x12000, scoped, tag = 'internal scratch']
  #allocation2 [shape = 'bf16[4,2048,256]{2,1,0:T(16,128)(2,1)}', space=vmem, size = 0x400000, scoped, tag = 'scratch operand']
  #allocation3 [shape = 's32[4]{0}', space=sflag, size = 0x10, scoped, tag = 'scratch operand']
  #allocation4 [shape = 'bf16[2,8192]{1,0:T(2,128)(2,1)}', space=vmem, size = 0x8000, scoped, tag = 'scratch operand']
  #allocation18 [shape = 's32[]', space=sflag, size = 0x4, offset = 0, fixed_abs, tag = 'sflag constant byte address 0x0 - dummy sync flag']
  #allocation20 [shape = 's32[]', space=sflag, size = 0x4, offset = 0, fixed_abs, tag = 'sflag constant byte address 0x0 - dummy sync flag']
  #allocation22 [shape = 's32[]', space=sflag, size = 0x4, offset = 0, fixed_abs, tag = 'sflag constant byte address 0x0 - dummy sync flag']
  #allocation24 [shape = 's32[]', space=sflag, size = 0x4, offset = 0, fixed_abs, tag = 'sflag constant byte address 0x0 - dummy sync flag']
  %s0 = inlined_call_operand.hbm [shape: f32[2,128], index: 0, kind: input, shape index: {}]
  %s1 = inlined_call_operand.hbm [shape: f32[128,128], index: 1, kind: input, shape index: {}]
  %s2 = inlined_call_operand.hbm [shape: f32[1,128], index: 2, kind: input, shape index: {}]
  %s3 = inlined_call_operand.vmem [shape: f32[16,3], index: 3, kind: input, shape index: {}]
  %s4 = inlined_call_operand.vmem [shape: f32[16,1], index: 4, kind: input, shape index: {}]
  %s5 = inlined_call_operand.hbm [shape: f32[32,48], index: 5, kind: input, shape index: {}]
  %s6 = inlined_call_operand.vmem [shape: f32[32,1], index: 6, kind: input, shape index: {}]
  %s7 = inlined_call_operand.hbm [shape: f32[64,96], index: 7, kind: input, shape index: {}]
  %s8 = inlined_call_operand.vmem [shape: f32[64,1], index: 8, kind: input, shape index: {}]
  %s9 = inlined_call_operand.hbm [shape: bf16[8192,256], index: 9, kind: input, shape index: {}]
  %s10 = inlined_call_operand.hbm [shape: f32[1,256], index: 10, kind: input, shape index: {}]
  %s11 = inlined_call_operand.vmem [shape: f32[256,64], index: 11, kind: input, shape index: {}]
  %s12 = inlined_call_operand.hbm [shape: f32[1,64], index: 12, kind: input, shape index: {}]
  %s13 = inlined_call_operand.hbm [shape: f32[2,64], index: 13, kind: output, shape index: {}]
  %s14 = sld [smem:[#allocation0]]
  $region86: #{tpu_custom_call.1} parent=0
    _
  %s16 = ssub.s32 1, %s14
  %s17 = scalar_select 0, %s16, %s14
  $region1: #{tpu_custom_call.1} parent=0
    #allocation5 [shape = 'u8[1024]{0}', space=vmem, size = 0x400, scoped, tag = 'input window, operand 0, single buffered']
    #allocation6 [shape = 's32[1]{0}', space=sflag, size = 0x4, scoped, tag = 'scoped memory for tpu_custom_call.1']
    #allocation7 [shape = 's32[1]{0}', space=sflag, size = 0x4, scoped, tag = 'scoped memory for tpu_custom_call.1']
    #allocation8 [shape = 'u8[65536]{0}', space=vmem, size = 0x10000, scoped, tag = 'input window, operand 1, single buffered']
    #allocation9 [shape = 's32[1]{0}', space=sflag, size = 0x4, scoped, tag = 'scoped memory for tpu_custom_call.1']
    #allocation10 [shape = 'u8[512]{0}', space=vmem, size = 0x400, scoped, tag = 'input window, operand 2, single buffered']
    #allocation11 [shape = 'u8[16384]{0}', space=vmem, size = 0x4000, scoped, tag = 'input window, operand 5, single buffered']
    #allocation12 [shape = 's32[1]{0}', space=sflag, size = 0x4, scoped, tag = 'scoped memory for tpu_custom_call.1']
    #allocation13 [shape = 'u8[32768]{0}', space=vmem, size = 0x8000, scoped, tag = 'input window, operand 7, single buffered']
    #allocation14 [shape = 'u8[1024]{0}', space=vmem, size = 0x400, scoped, tag = 'input window, operand 10, single buffered']
    #allocation15 [shape = 's32[1]{0}', space=sflag, size = 0x4, scoped, tag = 'scoped memory for tpu_custom_call.1']
    #allocation16 [shape = 'u8[512]{0}', space=vmem, size = 0x400, scoped, tag = 'input window, operand 12, single buffered']
    #allocation17 [shape = 'u8[1024]{0}', space=vmem, size = 0x400, scoped, tag = 'output window, operand 0, single buffered']
    #allocation19 [shape = 'u32[9]{0}', space=smem, size = 0x24, scoped, tag = 'DMA stride descriptor']
    #allocation21 [shape = 'u32[9]{0}', space=smem, size = 0x24, scoped, tag = 'DMA stride descriptor']
    #allocation23 [shape = 'u32[9]{0}', space=smem, size = 0x24, scoped, tag = 'DMA stride descriptor']
    #allocation25 [shape = 'u32[9]{0}', space=smem, size = 0x24, scoped, tag = 'DMA stride descriptor']
    %18 = vsyncpa [#allocation6], 0
    %19 = vsyncpa [#allocation9], 0
    %20 = vsyncpa [#allocation12], 0
    %21 = vsyncpa [#allocation15], 0
    %22 = vsyncpa [#allocation7], 0
    // Predicated region
    $region2: #{tpu_custom_call.1} parent=1 // pred_check
      _
    $region3: #{tpu_custom_call.1} parent=1 // pred_check_branch
      %24 = sbr.rel (0) target = $region5
    $region4: #{tpu_custom_call.1} parent=1 // pred_region
      %s26 = ssub.s32 32, 32
      %27 = vsyncadd [#allocation6], %s26
      %s29 = sshll.u32 [#allocation5], 4
      %s30 = int_to_ptr.vmem [resolvable:$true] %s29
      %32 = dma.hbm_to_vmem [thread:$0]  %s0, 32, %s30, [#allocation6]
    $region5: #{tpu_custom_call.1} parent=1 // pred_fallthru
      _
    // Predicated region
    $region6: #{tpu_custom_call.1} parent=1 // pred_check
      _
    $region7: #{tpu_custom_call.1} parent=1 // pred_check_branch
      %34 = sbr.rel (0) target = $region9
    $region8: #{tpu_custom_call.1} parent=1 // pred_region
      %s36 = ssub.s32 2048, 2048
      %37 = vsyncadd [#allocation9], %s36
      %s38 = sshll.u32 [#allocation8], 4
      %s39 = int_to_ptr.vmem [resolvable:$true] %s38
      %44 = dma.hbm_to_vmem [thread:$0]  %s1, 2048, %s39, [#allocation9], 128, 128, 8
    $region9: #{tpu_custom_call.1} parent=1 // pred_fallthru
      _
    // Predicated region
    $region10: #{tpu_custom_call.1} parent=1 // pred_check
      _
    $region11: #{tpu_custom_call.1} parent=1 // pred_check_branch
      %46 = sbr.rel (0) target = $region13
    $region12: #{tpu_custom_call.1} parent=1 // pred_region
      %s48 = ssub.s32 16, 16
      %49 = vsyncadd [#allocation9], %s48
      %s51 = sshll.u32 [#allocation10], 4
      %s52 = int_to_ptr.vmem [resolvable:$true] %s51
      %54 = dma.hbm_to_vmem [thread:$0]  %s2, 16, %s52, [#allocation9]
    $region13: #{tpu_custom_call.1} parent=1 // pred_fallthru
      _
    // Predicated region
    $region14: #{tpu_custom_call.1} parent=1 // pred_check
      _
    $region15: #{tpu_custom_call.1} parent=1 // pred_check_branch
      %56 = sbr.rel (0) target = $region17
    $region16: #{tpu_custom_call.1} parent=1 // pred_region
      _
    $region17: #{tpu_custom_call.1} parent=1 // pred_fallthru
      _
    // Predicated region
    $region18: #{tpu_custom_call.1} parent=1 // pred_check
      _
    $region19: #{tpu_custom_call.1} parent=1 // pred_check_branch
      %58 = sbr.rel (0) target = $region21
    $region20: #{tpu_custom_call.1} parent=1 // pred_region
      _
    $region21: #{tpu_custom_call.1} parent=1 // pred_fallthru
      _
    // Predicated region
    $region22: #{tpu_custom_call.1} parent=1 // pred_check
      _
    $region23: #{tpu_custom_call.1} parent=1 // pred_check_branch
      %60 = sbr.rel (0) target = $region25
    $region24: #{tpu_custom_call.1} parent=1 // pred_region
      %s62 = ssub.s32 512, 512
      %63 = vsyncadd [#allocation12], %s62
      %s64 = sshll.u32 [#allocation11], 4
      %s65 = int_to_ptr.vmem [resolvable:$true] %s64
      %70 = dma.hbm_to_vmem [thread:$0]  %s5, 512, %s65, [#allocation12], 128, 128, 8
    $region25: #{tpu_custom_call.1} parent=1 // pred_fallthru
      _
    // Predicated region
    $region26: #{tpu_custom_call.1} parent=1 // pred_check
      _
    $region27: #{tpu_custom_call.1} parent=1 // pred_check_branch
      %72 = sbr.rel (0) target = $region29
    $region28: #{tpu_custom_call.1} parent=1 // pred_region
      _
    $region29: #{tpu_custom_call.1} parent=1 // pred_fallthru
      _
    // Predicated region
    $region30: #{tpu_custom_call.1} parent=1 // pred_check
      _
    $region31: #{tpu_custom_call.1} parent=1 // pred_check_branch
      %74 = sbr.rel (0) target = $region33
    $region32: #{tpu_custom_call.1} parent=1 // pred_region
      %s76 = ssub.s32 1024, 1024
      %77 = vsyncadd [#allocation12], %s76
      %s78 = sshll.u32 [#allocation13], 4
      %s79 = int_to_ptr.vmem [resolvable:$true] %s78
      %84 = dma.hbm_to_vmem [thread:$0]  %s7, 1024, %s79, [#allocation12], 128, 128, 8
    $region33: #{tpu_custom_call.1} parent=1 // pred_fallthru
      _
    // Predicated region
    $region34: #{tpu_custom_call.1} parent=1 // pred_check
      _
    $region35: #{tpu_custom_call.1} parent=1 // pred_check_branch
      %86 = sbr.rel (0) target = $region37
    $region36: #{tpu_custom_call.1} parent=1 // pred_region
      _
    $region37: #{tpu_custom_call.1} parent=1 // pred_fallthru
      _
    // Predicated region
    $region38: #{tpu_custom_call.1} parent=1 // pred_check
      _
    $region39: #{tpu_custom_call.1} parent=1 // pred_check_branch
      %88 = sbr.rel (0) target = $region41
    $region40: #{tpu_custom_call.1} parent=1 // pred_region
      %s90 = ssub.s32 32, 32
      %91 = vsyncadd [#allocation15], %s90
      %s93 = sshll.u32 [#allocation14], 4
      %s94 = int_to_ptr.vmem [resolvable:$true] %s93
      %96 = dma.hbm_to_vmem [thread:$0]  %s10, 32, %s94, [#allocation15]
    $region41: #{tpu_custom_call.1} parent=1 // pred_fallthru
      _
    // Predicated region
    $region42: #{tpu_custom_call.1} parent=1 // pred_check
      _
    $region43: #{tpu_custom_call.1} parent=1 // pred_check_branch
      %98 = sbr.rel (0) target = $region45
    $region44: #{tpu_custom_call.1} parent=1 // pred_region
      _
    $region45: #{tpu_custom_call.1} parent=1 // pred_fallthru
      _
    // Predicated region
    $region46: #{tpu_custom_call.1} parent=1 // pred_check
      _
    $region47: #{tpu_custom_call.1} parent=1 // pred_check_branch
      %100 = sbr.rel (0) target = $region49
    $region48: #{tpu_custom_call.1} parent=1 // pred_region
      %s102 = ssub.s32 16, 16
      %103 = vsyncadd [#allocation15], %s102
      %s105 = sshll.u32 [#allocation16], 4
      %s106 = int_to_ptr.vmem [resolvable:$true] %s105
      %108 = dma.hbm_to_vmem [thread:$0]  %s12, 16, %s106, [#allocation15]
    $region49: #{tpu_custom_call.1} parent=1 // pred_fallthru
      _
    // Predicated region
    $region50: #{tpu_custom_call.1} parent=1 // pred_check
      _
    $region51: #{tpu_custom_call.1} parent=1 // pred_check_branch
      %110 = sbr.rel (0) target = $region53
    $region52: #{tpu_custom_call.1} parent=1 // pred_region
      %111 = dma.done [#allocation6], 32
    $region53: #{tpu_custom_call.1} parent=1 // pred_fallthru
      _
    // Predicated region
    $region54: #{tpu_custom_call.1} parent=1 // pred_check
      _
    $region55: #{tpu_custom_call.1} parent=1 // pred_check_branch
      %113 = sbr.rel (0) target = $region57
    $region56: #{tpu_custom_call.1} parent=1 // pred_region
      %114 = dma.done [#allocation9], 2048
    $region57: #{tpu_custom_call.1} parent=1 // pred_fallthru
      _
    // Predicated region
    $region58: #{tpu_custom_call.1} parent=1 // pred_check
      _
    $region59: #{tpu_custom_call.1} parent=1 // pred_check_branch
      %116 = sbr.rel (0) target = $region61
    $region60: #{tpu_custom_call.1} parent=1 // pred_region
      %117 = dma.done [#allocation9], 16
    $region61: #{tpu_custom_call.1} parent=1 // pred_fallthru
      _
    // Predicated region
    $region62: #{tpu_custom_call.1} parent=1 // pred_check
      _
    $region63: #{tpu_custom_call.1} parent=1 // pred_check_branch
      %119 = sbr.rel (0) target = $region65
    $region64: #{tpu_custom_call.1} parent=1 // pred_region
      %120 = dma.done [#allocation12], 512
    $region65: #{tpu_custom_call.1} parent=1 // pred_fallthru
      _
    // Predicated region
    $region66: #{tpu_custom_call.1} parent=1 // pred_check
      _
    $region67: #{tpu_custom_call.1} parent=1 // pred_check_branch
      %122 = sbr.rel (0) target = $region69
    $region68: #{tpu_custom_call.1} parent=1 // pred_region
      %123 = dma.done [#allocation12], 1024
    $region69: #{tpu_custom_call.1} parent=1 // pred_fallthru
      _
    // Predicated region
    $region70: #{tpu_custom_call.1} parent=1 // pred_check
      _
    $region71: #{tpu_custom_call.1} parent=1 // pred_check_branch
      %125 = sbr.rel (0) target = $region73
    $region72: #{tpu_custom_call.1} parent=1 // pred_region
      %126 = dma.done [#allocation15], 32
    $region73: #{tpu_custom_call.1} parent=1 // pred_fallthru
      _
    // Predicated region
    $region74: #{tpu_custom_call.1} parent=1 // pred_check
      _
    $region75: #{tpu_custom_call.1} parent=1 // pred_check_branch
      %128 = sbr.rel (0) target = $region77
    $region76: #{tpu_custom_call.1} parent=1 // pred_region
      %129 = dma.done [#allocation15], 16
    $region77: #{tpu_custom_call.1} parent=1 // pred_fallthru
      _
    %s131 = sshll.u32 1, 14
    %s132 = sxor.u32 4294967295, %s131
    %s134 = sld [smem:[#allocation0]]
    %s135 = sadd.s32 2, %s134
    %s137 = sshll.u32 7, 26
    %s138 = sxor.u32 4294967295, %s137
    %s139 = sand.u32 0, %s138
    %s140 = sshll.u32 %s135, 26
    %s141 = sor.u32 %s139, %s140
    %s142 = sshll.u32 [#allocation2], 4
    %s143 = int_to_ptr.vmem [resolvable:$true] %s142
    %146 = sst [smem:[#allocation19]] 256
    %s147 = scalar_lea.smem [#allocation19], 1
    %148 = sst [smem:[%s147]] 256
    %s149 = scalar_lea.smem [#allocation19], 2
    %150 = sst [smem:[%s149]] 2
    %s151 = scalar_lea.smem [#allocation19], 3
    %152 = sst [smem:[%s151]] 64
    %s153 = scalar_lea.smem [#allocation19], 4
    %154 = sst [smem:[%s153]] 128
    %s155 = scalar_lea.smem [#allocation19], 5
    %156 = sst [smem:[%s155]] 2
    %s157 = scalar_lea.smem [#allocation19], 6
    %158 = sst [smem:[%s157]] 128
    %s159 = scalar_lea.smem [#allocation19], 7
    %160 = sst [smem:[%s159]] 64
    %s161 = scalar_lea.smem [#allocation19], 8
    %162 = sst [smem:[%s161]] 4
    %164 = dma.general %s9, 32768, %s143, [#allocation3], [#allocation18], [#allocation19], %s141, 0
    %s165 = scalar_lea.hbm %s9, 32768
    %s166 = scalar_lea.vmem [#allocation2], 2048
    %s167 = scalar_lea.sflag [#allocation3], 1
    %s169 = sshll.u32 1, 14
    %s170 = sxor.u32 4294967295, %s169
    %s172 = sadd.s32 2, %s134
    %s174 = sshll.u32 7, 26
    %s175 = sxor.u32 4294967295, %s174
    %s176 = sand.u32 0, %s175
    %s177 = sshll.u32 %s172, 26
    %s178 = sor.u32 %s176, %s177
    %s179 = sshll.u32 %s166, 4
    %s180 = int_to_ptr.vmem [resolvable:$true] %s179
    %183 = sst [smem:[#allocation21]] 256
    %s184 = scalar_lea.smem [#allocation21], 1
    %185 = sst [smem:[%s184]] 256
    %s186 = scalar_lea.smem [#allocation21], 2
    %187 = sst [smem:[%s186]] 2
    %s188 = scalar_lea.smem [#allocation21], 3
    %189 = sst [smem:[%s188]] 64
    %s190 = scalar_lea.smem [#allocation21], 4
    %191 = sst [smem:[%s190]] 128
    %s192 = scalar_lea.smem [#allocation21], 5
    %193 = sst [smem:[%s192]] 2
    %s194 = scalar_lea.smem [#allocation21], 6
    %195 = sst [smem:[%s194]] 128
    %s196 = scalar_lea.smem [#allocation21], 7
    %197 = sst [smem:[%s196]] 64
    %s198 = scalar_lea.smem [#allocation21], 8
    %199 = sst [smem:[%s198]] 4
    %201 = dma.general %s165, 32768, %s180, %s167, [#allocation20], [#allocation21], %s178, 0
    %s202 = scalar_lea.hbm %s9, 65536
    %s203 = scalar_lea.vmem [#allocation2], 4096
    %s204 = scalar_lea.sflag [#allocation3], 2
    %s206 = sshll.u32 1, 14
    %s207 = sxor.u32 4294967295, %s206
    %s209 = sadd.s32 2, %s134
    %s211 = sshll.u32 7, 26
    %s212 = sxor.u32 4294967295, %s211
    %s213 = sand.u32 0, %s212
    %s214 = sshll.u32 %s209, 26
    %s215 = sor.u32 %s213, %s214
    %s216 = sshll.u32 %s203, 4
    %s217 = int_to_ptr.vmem [resolvable:$true] %s216
    %220 = sst [smem:[#allocation23]] 256
    %s221 = scalar_lea.smem [#allocation23], 1
    %222 = sst [smem:[%s221]] 256
    %s223 = scalar_lea.smem [#allocation23], 2
    %224 = sst [smem:[%s223]] 2
    %s225 = scalar_lea.smem [#allocation23], 3
    %226 = sst [smem:[%s225]] 64
    %s227 = scalar_lea.smem [#allocation23], 4
    %228 = sst [smem:[%s227]] 128
    %s229 = scalar_lea.smem [#allocation23], 5
    %230 = sst [smem:[%s229]] 2
    %s231 = scalar_lea.smem [#allocation23], 6
    %232 = sst [smem:[%s231]] 128
    %s233 = scalar_lea.smem [#allocation23], 7
    %234 = sst [smem:[%s233]] 64
    %s235 = scalar_lea.smem [#allocation23], 8
    %236 = sst [smem:[%s235]] 4
    %238 = dma.general %s202, 32768, %s217, %s204, [#allocation22], [#allocation23], %s215, 0
    %s239 = scalar_lea.hbm %s9, 98304
    %s240 = scalar_lea.vmem [#allocation2], 6144
    %s241 = scalar_lea.sflag [#allocation3], 3
    %s243 = sshll.u32 1, 14
    %s244 = sxor.u32 4294967295, %s243
    %s246 = sadd.s32 2, %s134
    %s248 = sshll.u32 7, 26
    %s249 = sxor.u32 4294967295, %s248
    %s250 = sand.u32 0, %s249
    %s251 = sshll.u32 %s246, 26
    %s252 = sor.u32 %s250, %s251
    %s253 = sshll.u32 %s240, 4
    %s254 = int_to_ptr.vmem [resolvable:$true] %s253
    %257 = sst [smem:[#allocation25]] 256
    %s258 = scalar_lea.smem [#allocation25], 1
    %259 = sst [smem:[%s258]] 256
    %s260 = scalar_lea.smem [#allocation25], 2
    %261 = sst [smem:[%s260]] 2
    %s262 = scalar_lea.smem [#allocation25], 3
    %263 = sst [smem:[%s262]] 64
    %s264 = scalar_lea.smem [#allocation25], 4
    %265 = sst [smem:[%s264]] 128
    %s266 = scalar_lea.smem [#allocation25], 5
    %267 = sst [smem:[%s266]] 2
    %s268 = scalar_lea.smem [#allocation25], 6
    %269 = sst [smem:[%s268]] 128
    %s270 = scalar_lea.smem [#allocation25], 7
    %271 = sst [smem:[%s270]] 64
    %s272 = scalar_lea.smem [#allocation25], 8
    %273 = sst [smem:[%s272]] 4
    %275 = dma.general %s239, 32768, %s254, %s241, [#allocation24], [#allocation25], %s252, 0
    %v276 = vld [vmem:[#allocation5] sm:$0x3]
    %v277 = vld [vmem:[#allocation8] sm:$0xff]
    %v278 = vld [vmem:[#allocation8 + $0x8] sm:$0xff]
    %v279 = vld [vmem:[#allocation8 + $0x10] sm:$0xff]
    %v280 = vld [vmem:[#allocation8 + $0x18] sm:$0xff]
    %v281 = vld [vmem:[#allocation8 + $0x20] sm:$0xff]
    %v282 = vld [vmem:[#allocation8 + $0x28] sm:$0xff]
    %v283 = vld [vmem:[#allocation8 + $0x30] sm:$0xff]
    %v284 = vld [vmem:[#allocation8 + $0x38] sm:$0xff]
    %v285 = vld [vmem:[#allocation8 + $0x40] sm:$0xff]
    %v286 = vld [vmem:[#allocation8 + $0x48] sm:$0xff]
    %v287 = vld [vmem:[#allocation8 + $0x50] sm:$0xff]
    %v288 = vld [vmem:[#allocation8 + $0x58] sm:$0xff]
    %v289 = vld [vmem:[#allocation8 + $0x60] sm:$0xff]
    %v290 = vld [vmem:[#allocation8 + $0x68] sm:$0xff]
    %v291 = vld [vmem:[#allocation8 + $0x70] sm:$0xff]
    %v292 = vld [vmem:[#allocation8 + $0x78] sm:$0xff]
    %v293 = vld [vmem:[#allocation10] sm:$0x1]
    %v295 = vlaneseq
    %v296 = vshrl.u32 %v295, 7
    %v297 = vsub.s32 0, %v296
    %v298 = vrot.slane %v293, %v297
    %300 = vmatprep.subr.mxu0 0.0
    %301 = vmatpush1.msra.mxu0 %v277
    %302 = vmatprep.subr.mxu0 0.0
    %303 = vmatpush1.msra.mxu0 %v278
    %304 = vmatprep.subr.mxu0 0.0
    %305 = vmatpush1.msra.mxu0 %v279
    %306 = vmatprep.subr.mxu0 0.0
    %307 = vmatpush1.msra.mxu0 %v280
    %308 = vmatprep.subr.mxu0 0.0
    %309 = vmatpush1.msra.mxu0 %v281
    %310 = vmatprep.subr.mxu0 0.0
    %311 = vmatpush1.msra.mxu0 %v282
    %312 = vmatprep.subr.mxu0 0.0
    %313 = vmatpush1.msra.mxu0 %v283
    %314 = vmatprep.subr.mxu0 0.0
    %315 = vmatpush1.msra.mxu0 %v284
    %316 = vmatprep.subr.mxu0 0.0
    %317 = vmatpush1.msra.mxu0 %v285
    %318 = vmatprep.subr.mxu0 0.0
    %319 = vmatpush1.msra.mxu0 %v286
    %320 = vmatprep.subr.mxu0 0.0
    %321 = vmatpush1.msra.mxu0 %v287
    %322 = vmatprep.subr.mxu0 0.0
    %323 = vmatpush1.msra.mxu0 %v288
    %324 = vmatprep.subr.mxu0 0.0
    %325 = vmatpush1.msra.mxu0 %v289
    %326 = vmatprep.subr.mxu0 0.0
    %327 = vmatpush1.msra.mxu0 %v290
    %328 = vmatprep.subr.mxu0 0.0
    %329 = vmatpush1.msra.mxu0 %v291
    %330 = vmatprep.subr.mxu0 0.0
    %331 = vmatpush1.msra.mxu0 %v292
    %332 = vmatprep.subr.mxu0 0.0
    %333 = vmatpush1.msra.mxu0 0.0
    %334 = vmatprep.subr.mxu0 0.0
    %335 = vmatpush1.msra.mxu0 0.0
    %336 = vmatprep.subr.mxu0 0.0
    %337 = vmatpush1.msra.mxu0 0.0
    %338 = vmatprep.subr.mxu0 0.0
    %339 = vmatpush1.msra.mxu0 0.0
    %340 = vmatprep.subr.mxu0 0.0
    %341 = vmatpush1.msra.mxu0 0.0
    %342 = vmatprep.subr.mxu0 0.0
    %343 = vmatpush1.msra.mxu0 0.0
    %344 = vmatprep.subr.mxu0 0.0
    %345 = vmatpush1.msra.mxu0 0.0
    %346 = vmatprep.subr.mxu0 0.0
    %347 = vmatpush1.msra.mxu0 0.0
    %348 = vmatprep.subr.mxu0 0.0
    %349 = vmatpush1.msra.mxu0 0.0
    %350 = vmatprep.subr.mxu0 0.0
    %351 = vmatpush1.msra.mxu0 0.0
    %352 = vmatprep.subr.mxu0 0.0
    %353 = vmatpush1.msra.mxu0 0.0
    %354 = vmatprep.subr.mxu0 0.0
    %355 = vmatpush1.msra.mxu0 0.0
    %356 = vmatprep.subr.mxu0 0.0
    %357 = vmatpush1.msra.mxu0 0.0
    %358 = vmatprep.subr.mxu0 0.0
    %359 = vmatpush1.msra.mxu0 0.0
    %360 = vmatprep.subr.mxu0 0.0
    %361 = vmatpush1.msra.mxu0 0.0
    %362 = vmatprep.subr.mxu0 0.0
    %363 = vmatpush1.msra.mxu0 0.0
    %364 = vmatprep.mubr.f32.mxu0 0.0
    %365 = vmatmul.mubr.f32.gmra.mrb[0].mxu0 %v276
    %v366 = vpop.f32.mrb[0].mxu0
    %v367 = vadd.f32 %v298, %v366
    %v368 = vpop.f32.mrb[0].mxu0
    %369 = vdwg.mxu0
    %v370 = vmax.f32 %v367, 0.0
    %v372 = vrot.slane %v370, 1
    %v374 = vlaneseq
    %v375 = vand.u32 %v374, 127
    %v376 = vadd.s32 %v375, 128
    %vm377 = vcmp.lt.s32.totalorder %v375, 0
    %v378 = vsub.s32 0, %v375
    %v379 = vsel %vm377, %v378, %v375
    %v380 = vshrl.u32 %v379, 7
    %v381 = vand.u32 %v379, 127
    %v382 = vsub.s32 0, %v381
    %v383 = vsel %vm377, %v382, %v381
    %vm384 = vcmp.lt.s32.totalorder %v376, 0
    %v385 = vsub.s32 0, %v376
    %v386 = vsel %vm384, %v385, %v376
    %v387 = vshrl.u32 %v386, 7
    %v388 = vand.u32 %v386, 127
    %v389 = vsub.s32 0, %v388
    %v390 = vsel %vm384, %v389, %v388
    %vm391 = vcmp.ne.s32.totalorder %v383, 0
    %vm392 = vcmp.ne.s32.totalorder %v390, 0
    %vm393 = vcmp.lt.s32.totalorder %v383, 0
    %vm394 = vcmp.lt.s32.totalorder %v390, 0
    %vm395 = vmand %vm393, %vm391
    %vm396 = vmand %vm394, %vm392
    %v397 = vadd.s32 %v383, 128
    %v398 = vadd.s32 %v390, 128
    %v399 = vsel %vm395, %v397, %v383
    %v400 = vsel %vm396, %v398, %v390
    %vm401 = vcmp.eq.s32.totalorder %v399, 0
    %vm402 = vcmp.eq.s32.totalorder %v400, 0
    %vm403 = vcmp.eq.s32.totalorder %v399, 127
    %vm404 = vcmp.eq.s32.totalorder %v400, 127
    %405 = vrot.lane.b32.xlu0 %v370, 1
    %v406 = vpop.permute.xlu0 %405
    %407 = vrot.lane.b32.xlu0 %v372, 1
    %v408 = vpop.permute.xlu0 %407
    %vm409 = vcmp.lt.s32.totalorder %v375, 1
    %v410 = vsel %vm409, %v406, %v408
    %v411 = vsel %vm409, %v408, %v406
    %v412 = vsel %vm401, 0.0, %v411
    %v413 = vsel %vm402, 0.0, %v410
    %414 = vrot.lane.b32.xlu0 %v370, 127
    %v415 = vpop.permute.xlu0 %414
    %416 = vrot.lane.b32.xlu0 %v372, 127
    %v417 = vpop.permute.xlu0 %416
    %vm418 = vcmp.lt.s32.totalorder %v375, 127
    %v419 = vsel %vm418, %v415, %v417
    %v420 = vsel %vm418, %v417, %v415
    %v421 = vsel %vm403, 0.0, %v419
    %v422 = vsel %vm404, 0.0, %v420
    %v423 = vld [vmem:[%s3] sm:$0xff]
    %v424 = vld [vmem:[%s3 + $0x8] sm:$0xff]
    %426 = vset.pattern.permute.xlu0 0
    %427 = vperm.xlu0 %426, %v423
    %v428 = vpop.permute.xlu0 %427
    %431 = vset.pattern.permute.xlu0 0
    %432 = vperm.xlu0 %431, %v424
    %v433 = vpop.permute.xlu0 %432
    %v435 = vlaneseq
    %v436 = vshrl.u32 %v435, 7
    %v437 = vsub.s32 0, %v436
    %v438 = vrot.slane %v412, %v437
    %v439 = vlaneseq
    %v440 = vshrl.u32 %v439, 7
    %v441 = vsub.s32 0, %v440
    %v442 = vrot.slane %v413, %v441
    %v443 = vmul.f32 %v428, %v438
    %v444 = vmul.f32 %v428, %v442
    %v445 = vmul.f32 %v433, %v438
    %v446 = vmul.f32 %v433, %v442
    %447 = vset.pattern.permute.xlu0 1
    %448 = vperm.xlu0 %447, %v423
    %v449 = vpop.permute.xlu0 %448
    %451 = vset.pattern.permute.xlu0 1
    %452 = vperm.xlu0 %451, %v424
    %v453 = vpop.permute.xlu0 %452
    %v455 = vlaneseq
    %v456 = vshrl.u32 %v455, 7
    %v457 = vsub.s32 0, %v456
    %v458 = vrot.slane %v370, %v457
    %v459 = vlaneseq
    %v460 = vshrl.u32 %v459, 7
    %v461 = vsub.s32 0, %v460
    %v462 = vrot.slane %v372, %v461
    %v463 = vmul.f32 %v449, %v458
    %v464 = vmul.f32 %v449, %v462
    %v465 = vmul.f32 %v453, %v458
    %v466 = vmul.f32 %v453, %v462
    %v467 = vadd.f32 %v443, %v463
    %v468 = vadd.f32 %v444, %v464
    %v469 = vadd.f32 %v445, %v465
    %v470 = vadd.f32 %v446, %v466
    %471 = vset.pattern.permute.xlu0 2
    %472 = vperm.xlu0 %471, %v423
    %v473 = vpop.permute.xlu0 %472
    %475 = vset.pattern.permute.xlu0 2
    %476 = vperm.xlu0 %475, %v424
    %v477 = vpop.permute.xlu0 %476
    %v479 = vlaneseq
    %v480 = vshrl.u32 %v479, 7
    %v481 = vsub.s32 0, %v480
    %v482 = vrot.slane %v421, %v481
    %v483 = vlaneseq
    %v484 = vshrl.u32 %v483, 7
    %v485 = vsub.s32 0, %v484
    %v486 = vrot.slane %v422, %v485
    %v487 = vmul.f32 %v473, %v482
    %v488 = vmul.f32 %v473, %v486
    %v489 = vmul.f32 %v477, %v482
    %v490 = vmul.f32 %v477, %v486
    %v491 = vadd.f32 %v467, %v487
    %v492 = vadd.f32 %v468, %v488
    %v493 = vadd.f32 %v469, %v489
    %v494 = vadd.f32 %v470, %v490
    %v495 = vld [vmem:[%s4] sm:$0xff]
    %v496 = vld [vmem:[%s4 + $0x8] sm:$0xff]
    %498 = vset.pattern.permute.xlu0 0
    %499 = vperm.xlu0 %498, %v495
    %v500 = vpop.permute.xlu0 %499
    %503 = vset.pattern.permute.xlu0 0
    %504 = vperm.xlu0 %503, %v496
    %v505 = vpop.permute.xlu0 %504
    %v507 = vadd.f32 %v491, %v500
    %v508 = vadd.f32 %v492, %v500
    %v509 = vadd.f32 %v493, %v505
    %v510 = vadd.f32 %v494, %v505
    %v511 = vmax.f32 %v507, 0.0
    %v512 = vmax.f32 %v508, 0.0
    %v513 = vmax.f32 %v509, 0.0
    %v514 = vmax.f32 %v510, 0.0
    %515 = vrot.lane.b32.xlu0 %v511, 1
    %v516 = vpop.permute.xlu0 %515
    %517 = vrot.lane.b32.xlu0 %v513, 1
    %v518 = vpop.permute.xlu0 %517
    %519 = vrot.lane.b32.xlu0 %v512, 1
    %v520 = vpop.permute.xlu0 %519
    %521 = vrot.lane.b32.xlu0 %v514, 1
    %v522 = vpop.permute.xlu0 %521
    %v523 = vsel %vm409, %v516, %v520
    %v524 = vsel %vm409, %v518, %v522
    %v525 = vsel %vm409, %v520, %v516
    %v526 = vsel %vm409, %v522, %v518
    %v527 = vsel %vm401, 1, 0
    %v528 = vsel %vm402, 1, 0
    %vm529 = vcmp.eq.s32.totalorder %v527, 1
    %vm530 = vcmp.eq.s32.totalorder %v528, 1
    %v531 = vsel %vm529, 0.0, %v525
    %v532 = vsel %vm530, 0.0, %v523
    %v533 = vsel %vm529, 0.0, %v526
    %v534 = vsel %vm530, 0.0, %v524
    %535 = vrot.lane.b32.xlu0 %v511, 127
    %v536 = vpop.permute.xlu0 %535
    %537 = vrot.lane.b32.xlu0 %v513, 127
    %v538 = vpop.permute.xlu0 %537
    %539 = vrot.lane.b32.xlu0 %v512, 127
    %v540 = vpop.permute.xlu0 %539
    %541 = vrot.lane.b32.xlu0 %v514, 127
    %v542 = vpop.permute.xlu0 %541
    %v543 = vsel %vm418, %v536, %v540
    %v544 = vsel %vm418, %v538, %v542
    %v545 = vsel %vm418, %v540, %v536
    %v546 = vsel %vm418, %v542, %v538
    %v547 = vsel %vm403, 1, 0
    %v548 = vsel %vm404, 1, 0
    %vm549 = vcmp.eq.s32.totalorder %v547, 1
    %vm550 = vcmp.eq.s32.totalorder %v548, 1
    %v551 = vsel %vm549, 0.0, %v543
    %v552 = vsel %vm550, 0.0, %v545
    %v553 = vsel %vm549, 0.0, %v544
    %v554 = vsel %vm550, 0.0, %v546
    %v555 = vld [vmem:[#allocation11] sm:$0xff]
    %v556 = vld [vmem:[#allocation11 + $0x8] sm:$0xff]
    %v557 = vld [vmem:[#allocation11 + $0x10] sm:$0xff]
    %v558 = vld [vmem:[#allocation11 + $0x18] sm:$0xff]
    %563 = vrot.lane.b32.xlu0 %v555, 112
    %v564 = vpop.permute.xlu0 %563
    %565 = vrot.lane.b32.xlu0 %v556, 112
    %v566 = vpop.permute.xlu0 %565
    %567 = vrot.lane.b32.xlu0 %v557, 112
    %v568 = vpop.permute.xlu0 %567
    %569 = vrot.lane.b32.xlu0 %v558, 112
    %v570 = vpop.permute.xlu0 %569
    %vm571 = vcmask 130048
    %v572 = vsel %vm571, %v564, 0
    %v574 = vsel %vm571, %v566, 0
    %v576 = vsel %vm571, %v568, 0
    %v578 = vsel %vm571, %v570, 0
    %580 = vmatprep.subr.mxu0 %v512
    %581 = vmatpush1.msra.mxu0 %v511
    %582 = vmatprep.subr.mxu0 %v514
    %583 = vmatpush1.msra.mxu0 %v513
    %584 = vmatprep.subr.mxu0 0.0
    %585 = vmatpush1.msra.mxu0 0.0
    %586 = vmatprep.subr.mxu0 0.0
    %587 = vmatpush1.msra.mxu0 0.0
    %588 = vmatprep.subr.mxu0 0.0
    %589 = vmatpush1.msra.mxu0 0.0
    %590 = vmatprep.subr.mxu0 0.0
    %591 = vmatpush1.msra.mxu0 0.0
    %592 = vmatprep.subr.mxu0 0.0
    %593 = vmatpush1.msra.mxu0 0.0
    %594 = vmatprep.subr.mxu0 0.0
    %595 = vmatpush1.msra.mxu0 0.0
    %596 = vmatprep.subr.mxu0 0.0
    %597 = vmatpush1.msra.mxu0 0.0
    %598 = vmatprep.subr.mxu0 0.0
    %599 = vmatpush1.msra.mxu0 0.0
    %600 = vmatprep.subr.mxu0 0.0
    %601 = vmatpush1.msra.mxu0 0.0
    %602 = vmatprep.subr.mxu0 0.0
    %603 = vmatpush1.msra.mxu0 0.0
    %604 = vmatprep.subr.mxu0 0.0
    %605 = vmatpush1.msra.mxu0 0.0
    %606 = vmatprep.subr.mxu0 0.0
    %607 = vmatpush1.msra.mxu0 0.0
    %608 = vmatprep.subr.mxu0 0.0
    %609 = vmatpush1.msra.mxu0 0.0
    %610 = vmatprep.subr.mxu0 0.0
    %611 = vmatpush1.msra.mxu0 0.0
    %612 = vmatprep.subr.mxu0 0.0
    %613 = vmatpush1.msra.mxu0 0.0
    %614 = vmatprep.subr.mxu0 0.0
    %615 = vmatpush1.msra.mxu0 0.0
    %616 = vmatprep.subr.mxu0 0.0
    %617 = vmatpush1.msra.mxu0 0.0
    %618 = vmatprep.subr.mxu0 0.0
    %619 = vmatpush1.msra.mxu0 0.0
    %620 = vmatprep.subr.mxu0 0.0
    %621 = vmatpush1.msra.mxu0 0.0
    %622 = vmatprep.subr.mxu0 0.0
    %623 = vmatpush1.msra.mxu0 0.0
    %624 = vmatprep.subr.mxu0 0.0
    %625 = vmatpush1.msra.mxu0 0.0
    %626 = vmatprep.subr.mxu0 0.0
    %627 = vmatpush1.msra.mxu0 0.0
    %628 = vmatprep.subr.mxu0 0.0
    %629 = vmatpush1.msra.mxu0 0.0
    %630 = vmatprep.subr.mxu0 0.0
    %631 = vmatpush1.msra.mxu0 0.0
    %632 = vmatprep.subr.mxu0 0.0
    %633 = vmatpush1.msra.mxu0 0.0
    %634 = vmatprep.subr.mxu0 0.0
    %635 = vmatpush1.msra.mxu0 0.0
    %636 = vmatprep.subr.mxu0 0.0
    %637 = vmatpush1.msra.mxu0 0.0
    %638 = vmatprep.subr.mxu0 0.0
    %639 = vmatpush1.msra.mxu0 0.0
    %640 = vmatprep.subr.mxu0 0.0
    %641 = vmatpush1.msra.mxu0 0.0
    %642 = vmatprep.subr.mxu0 0.0
    %643 = vmatpush1.msra.mxu0 0.0
    %644 = vmatprep.mubr.f32.mxu0 0.0
    %645 = vmatmul.mubr.f32.gmra.mrb[0].mxu0 %v572
    %v646 = vpop.f32.mrb[0].mxu0
    %v647 = vadd.f32 0.0, %v646
    %v648 = vpop.f32.mrb[0].mxu0
    %v649 = vadd.f32 0.0, %v648
    %650 = vmatprep.mubr.f32.mxu0 0.0
    %651 = vmatmul.mubr.f32.gmra.mrb[0].mxu0 %v574
    %v652 = vpop.f32.mrb[0].mxu0
    %v653 = vadd.f32 0.0, %v652
    %v654 = vpop.f32.mrb[0].mxu0
    %v655 = vadd.f32 0.0, %v654
    %656 = vmatprep.mubr.f32.mxu0 0.0
    %657 = vmatmul.mubr.f32.gmra.mrb[0].mxu0 %v576
    %v658 = vpop.f32.mrb[0].mxu0
    %v659 = vadd.f32 0.0, %v658
    %v660 = vpop.f32.mrb[0].mxu0
    %v661 = vadd.f32 0.0, %v660
    %662 = vmatprep.mubr.f32.mxu0 0.0
    %663 = vmatmul.mubr.f32.gmra.mrb[0].mxu0 %v578
    %v664 = vpop.f32.mrb[0].mxu0
    %v665 = vadd.f32 0.0, %v664
    %v666 = vpop.f32.mrb[0].mxu0
    %v667 = vadd.f32 0.0, %v666
    %668 = vdwg.mxu0
    %v669 = vsel %vm571, %v555, 0
    %v671 = vsel %vm571, %v556, 0
    %v673 = vsel %vm571, %v557, 0
    %v675 = vsel %vm571, %v558, 0
    %677 = vmatprep.subr.mxu0 %v532
    %678 = vmatpush1.msra.mxu0 %v531
    %679 = vmatprep.subr.mxu0 %v534
    %680 = vmatpush1.msra.mxu0 %v533
    %681 = vmatprep.subr.mxu0 0.0
    %682 = vmatpush1.msra.mxu0 0.0
    %683 = vmatprep.subr.mxu0 0.0
    %684 = vmatpush1.msra.mxu0 0.0
    %685 = vmatprep.subr.mxu0 0.0
    %686 = vmatpush1.msra.mxu0 0.0
    %687 = vmatprep.subr.mxu0 0.0
    %688 = vmatpush1.msra.mxu0 0.0
    %689 = vmatprep.subr.mxu0 0.0
    %690 = vmatpush1.msra.mxu0 0.0
    %691 = vmatprep.subr.mxu0 0.0
    %692 = vmatpush1.msra.mxu0 0.0
    %693 = vmatprep.subr.mxu0 0.0
    %694 = vmatpush1.msra.mxu0 0.0
    %695 = vmatprep.subr.mxu0 0.0
    %696 = vmatpush1.msra.mxu0 0.0
    %697 = vmatprep.subr.mxu0 0.0
    %698 = vmatpush1.msra.mxu0 0.0
    %699 = vmatprep.subr.mxu0 0.0
    %700 = vmatpush1.msra.mxu0 0.0
    %701 = vmatprep.subr.mxu0 0.0
    %702 = vmatpush1.msra.mxu0 0.0
    %703 = vmatprep.subr.mxu0 0.0
    %704 = vmatpush1.msra.mxu0 0.0
    %705 = vmatprep.subr.mxu0 0.0
    %706 = vmatpush1.msra.mxu0 0.0
    %707 = vmatprep.subr.mxu0 0.0
    %708 = vmatpush1.msra.mxu0 0.0
    %709 = vmatprep.subr.mxu0 0.0
    %710 = vmatpush1.msra.mxu0 0.0
    %711 = vmatprep.subr.mxu0 0.0
    %712 = vmatpush1.msra.mxu0 0.0
    %713 = vmatprep.subr.mxu0 0.0
    %714 = vmatpush1.msra.mxu0 0.0
    %715 = vmatprep.subr.mxu0 0.0
    %716 = vmatpush1.msra.mxu0 0.0
    %717 = vmatprep.subr.mxu0 0.0
    %718 = vmatpush1.msra.mxu0 0.0
    %719 = vmatprep.subr.mxu0 0.0
    %720 = vmatpush1.msra.mxu0 0.0
    %721 = vmatprep.subr.mxu0 0.0
    %722 = vmatpush1.msra.mxu0 0.0
    %723 = vmatprep.subr.mxu0 0.0
    %724 = vmatpush1.msra.mxu0 0.0
    %725 = vmatprep.subr.mxu0 0.0
    %726 = vmatpush1.msra.mxu0 0.0
    %727 = vmatprep.subr.mxu0 0.0
    %728 = vmatpush1.msra.mxu0 0.0
    %729 = vmatprep.subr.mxu0 0.0
    %730 = vmatpush1.msra.mxu0 0.0
    %731 = vmatprep.subr.mxu0 0.0
    %732 = vmatpush1.msra.mxu0 0.0
    %733 = vmatprep.subr.mxu0 0.0
    %734 = vmatpush1.msra.mxu0 0.0
    %735 = vmatprep.subr.mxu0 0.0
    %736 = vmatpush1.msra.mxu0 0.0
    %737 = vmatprep.subr.mxu0 0.0
    %738 = vmatpush1.msra.mxu0 0.0
    %739 = vmatprep.subr.mxu0 0.0
    %740 = vmatpush1.msra.mxu0 0.0
    %741 = vmatprep.mubr.f32.mxu0 0.0
    %742 = vmatmul.mubr.f32.gmra.mrb[0].mxu0 %v669
    %v743 = vpop.f32.mrb[0].mxu0
    %v744 = vadd.f32 %v647, %v743
    %v745 = vpop.f32.mrb[0].mxu0
    %v746 = vadd.f32 %v649, %v745
    %747 = vmatprep.mubr.f32.mxu0 0.0
    %748 = vmatmul.mubr.f32.gmra.mrb[0].mxu0 %v671
    %v749 = vpop.f32.mrb[0].mxu0
    %v750 = vadd.f32 %v653, %v749
    %v751 = vpop.f32.mrb[0].mxu0
    %v752 = vadd.f32 %v655, %v751
    %753 = vmatprep.mubr.f32.mxu0 0.0
    %754 = vmatmul.mubr.f32.gmra.mrb[0].mxu0 %v673
    %v755 = vpop.f32.mrb[0].mxu0
    %v756 = vadd.f32 %v659, %v755
    %v757 = vpop.f32.mrb[0].mxu0
    %v758 = vadd.f32 %v661, %v757
    %759 = vmatprep.mubr.f32.mxu0 0.0
    %760 = vmatmul.mubr.f32.gmra.mrb[0].mxu0 %v675
    %v761 = vpop.f32.mrb[0].mxu0
    %v762 = vadd.f32 %v665, %v761
    %v763 = vpop.f32.mrb[0].mxu0
    %v764 = vadd.f32 %v667, %v763
    %765 = vdwg.mxu0
    %766 = vrot.lane.b32.xlu0 %v555, 96
    %v767 = vpop.permute.xlu0 %766
    %768 = vrot.lane.b32.xlu0 %v556, 96
    %v769 = vpop.permute.xlu0 %768
    %770 = vrot.lane.b32.xlu0 %v557, 96
    %v771 = vpop.permute.xlu0 %770
    %772 = vrot.lane.b32.xlu0 %v558, 96
    %v773 = vpop.permute.xlu0 %772
    %v774 = vsel %vm571, %v767, 0
    %v776 = vsel %vm571, %v769, 0
    %v778 = vsel %vm571, %v771, 0
    %v780 = vsel %vm571, %v773, 0
    %782 = vmatprep.subr.mxu0 %v552
    %783 = vmatpush1.msra.mxu0 %v551
    %784 = vmatprep.subr.mxu0 %v554
    %785 = vmatpush1.msra.mxu0 %v553
    %786 = vmatprep.subr.mxu0 0.0
    %787 = vmatpush1.msra.mxu0 0.0
    %788 = vmatprep.subr.mxu0 0.0
    %789 = vmatpush1.msra.mxu0 0.0
    %790 = vmatprep.subr.mxu0 0.0
    %791 = vmatpush1.msra.mxu0 0.0
    %792 = vmatprep.subr.mxu0 0.0
    %793 = vmatpush1.msra.mxu0 0.0
    %794 = vmatprep.subr.mxu0 0.0
    %795 = vmatpush1.msra.mxu0 0.0
    %796 = vmatprep.subr.mxu0 0.0
    %797 = vmatpush1.msra.mxu0 0.0
    %798 = vmatprep.subr.mxu0 0.0
    %799 = vmatpush1.msra.mxu0 0.0
    %800 = vmatprep.subr.mxu0 0.0
    %801 = vmatpush1.msra.mxu0 0.0
    %802 = vmatprep.subr.mxu0 0.0
    %803 = vmatpush1.msra.mxu0 0.0
    %804 = vmatprep.subr.mxu0 0.0
    %805 = vmatpush1.msra.mxu0 0.0
    %806 = vmatprep.subr.mxu0 0.0
    %807 = vmatpush1.msra.mxu0 0.0
    %808 = vmatprep.subr.mxu0 0.0
    %809 = vmatpush1.msra.mxu0 0.0
    %810 = vmatprep.subr.mxu0 0.0
    %811 = vmatpush1.msra.mxu0 0.0
    %812 = vmatprep.subr.mxu0 0.0
    %813 = vmatpush1.msra.mxu0 0.0
    %814 = vmatprep.subr.mxu0 0.0
    %815 = vmatpush1.msra.mxu0 0.0
    %816 = vmatprep.subr.mxu0 0.0
    %817 = vmatpush1.msra.mxu0 0.0
    %818 = vmatprep.subr.mxu0 0.0
    %819 = vmatpush1.msra.mxu0 0.0
    %820 = vmatprep.subr.mxu0 0.0
    %821 = vmatpush1.msra.mxu0 0.0
    %822 = vmatprep.subr.mxu0 0.0
    %823 = vmatpush1.msra.mxu0 0.0
    %824 = vmatprep.subr.mxu0 0.0
    %825 = vmatpush1.msra.mxu0 0.0
    %826 = vmatprep.subr.mxu0 0.0
    %827 = vmatpush1.msra.mxu0 0.0
    %828 = vmatprep.subr.mxu0 0.0
    %829 = vmatpush1.msra.mxu0 0.0
    %830 = vmatprep.subr.mxu0 0.0
    %831 = vmatpush1.msra.mxu0 0.0
    %832 = vmatprep.subr.mxu0 0.0
    %833 = vmatpush1.msra.mxu0 0.0
    %834 = vmatprep.subr.mxu0 0.0
    %835 = vmatpush1.msra.mxu0 0.0
    %836 = vmatprep.subr.mxu0 0.0
    %837 = vmatpush1.msra.mxu0 0.0
    %838 = vmatprep.subr.mxu0 0.0
    %839 = vmatpush1.msra.mxu0 0.0
    %840 = vmatprep.subr.mxu0 0.0
    %841 = vmatpush1.msra.mxu0 0.0
    %842 = vmatprep.subr.mxu0 0.0
    %843 = vmatpush1.msra.mxu0 0.0
    %844 = vmatprep.subr.mxu0 0.0
    %845 = vmatpush1.msra.mxu0 0.0
    %846 = vmatprep.mubr.f32.mxu0 0.0
    %847 = vmatmul.mubr.f32.gmra.mrb[0].mxu0 %v774
    %v848 = vpop.f32.mrb[0].mxu0
    %v849 = vadd.f32 0.0, %v848
    %v850 = vpop.f32.mrb[0].mxu0
    %v851 = vadd.f32 0.0, %v850
    %852 = vmatprep.mubr.f32.mxu0 0.0
    %853 = vmatmul.mubr.f32.gmra.mrb[0].mxu0 %v776
    %v854 = vpop.f32.mrb[0].mxu0
    %v855 = vadd.f32 0.0, %v854
    %v856 = vpop.f32.mrb[0].mxu0
    %v857 = vadd.f32 0.0, %v856
    %858 = vmatprep.mubr.f32.mxu0 0.0
    %859 = vmatmul.mubr.f32.gmra.mrb[0].mxu0 %v778
    %v860 = vpop.f32.mrb[0].mxu0
    %v861 = vadd.f32 0.0, %v860
    %v862 = vpop.f32.mrb[0].mxu0
    %v863 = vadd.f32 0.0, %v862
    %864 = vmatprep.mubr.f32.mxu0 0.0
    %865 = vmatmul.mubr.f32.gmra.mrb[0].mxu0 %v780
    %v866 = vpop.f32.mrb[0].mxu0
    %v867 = vadd.f32 0.0, %v866
    %v868 = vpop.f32.mrb[0].mxu0
    %v869 = vadd.f32 0.0, %v868
    %870 = vdwg.mxu0
    %v871 = vadd.f32 %v744, %v849
    %v872 = vadd.f32 %v746, %v851
    %v873 = vadd.f32 %v750, %v855
    %v874 = vadd.f32 %v752, %v857
    %v875 = vadd.f32 %v756, %v861
    %v876 = vadd.f32 %v758, %v863
    %v877 = vadd.f32 %v762, %v867
    %v878 = vadd.f32 %v764, %v869
    %v879 = vld [vmem:[%s6] sm:$0xff]
    %v880 = vld [vmem:[%s6 + $0x8] sm:$0xff]
    %v881 = vld [vmem:[%s6 + $0x10] sm:$0xff]
    %v882 = vld [vmem:[%s6 + $0x18] sm:$0xff]
    %884 = vset.pattern.permute.xlu0 0
    %885 = vperm.xlu0 %884, %v879
    %v886 = vpop.permute.xlu0 %885
    %889 = vset.pattern.permute.xlu0 0
    %890 = vperm.xlu0 %889, %v880
    %v891 = vpop.permute.xlu0 %890
    %894 = vset.pattern.permute.xlu0 0
    %895 = vperm.xlu0 %894, %v881
    %v896 = vpop.permute.xlu0 %895
    %899 = vset.pattern.permute.xlu0 0
    %900 = vperm.xlu0 %899, %v882
    %v901 = vpop.permute.xlu0 %900
    %v903 = vadd.f32 %v871, %v886
    %v904 = vadd.f32 %v872, %v886
    %v905 = vadd.f32 %v873, %v891
    %v906 = vadd.f32 %v874, %v891
    %v907 = vadd.f32 %v875, %v896
    %v908 = vadd.f32 %v876, %v896
    %v909 = vadd.f32 %v877, %v901
    %v910 = vadd.f32 %v878, %v901
    %v911 = vmax.f32 %v903, 0.0
    %v912 = vmax.f32 %v904, 0.0
    %v913 = vmax.f32 %v905, 0.0
    %v914 = vmax.f32 %v906, 0.0
    %v915 = vmax.f32 %v907, 0.0
    %v916 = vmax.f32 %v908, 0.0
    %v917 = vmax.f32 %v909, 0.0
    %v918 = vmax.f32 %v910, 0.0
    %919 = vrot.lane.b32.xlu0 %v911, 1
    %v920 = vpop.permute.xlu0 %919
    %921 = vrot.lane.b32.xlu0 %v913, 1
    %v922 = vpop.permute.xlu0 %921
    %923 = vrot.lane.b32.xlu0 %v915, 1
    %v924 = vpop.permute.xlu0 %923
    %925 = vrot.lane.b32.xlu0 %v917, 1
    %v926 = vpop.permute.xlu0 %925
    %927 = vrot.lane.b32.xlu0 %v912, 1
    %v928 = vpop.permute.xlu0 %927
    %929 = vrot.lane.b32.xlu0 %v914, 1
    %v930 = vpop.permute.xlu0 %929
    %931 = vrot.lane.b32.xlu0 %v916, 1
    %v932 = vpop.permute.xlu0 %931
    %933 = vrot.lane.b32.xlu0 %v918, 1
    %v934 = vpop.permute.xlu0 %933
    %v935 = vsel %vm409, %v920, %v928
    %v936 = vsel %vm409, %v922, %v930
    %v937 = vsel %vm409, %v924, %v932
    %v938 = vsel %vm409, %v926, %v934
    %v939 = vsel %vm409, %v928, %v920
    %v940 = vsel %vm409, %v930, %v922
    %v941 = vsel %vm409, %v932, %v924
    %v942 = vsel %vm409, %v934, %v926
    %v943 = vsel %vm529, 0.0, %v939
    %v944 = vsel %vm530, 0.0, %v935
    %v945 = vsel %vm529, 0.0, %v940
    %v946 = vsel %vm530, 0.0, %v936
    %v947 = vsel %vm529, 0.0, %v941
    %v948 = vsel %vm530, 0.0, %v937
    %v949 = vsel %vm529, 0.0, %v942
    %v950 = vsel %vm530, 0.0, %v938
    %951 = vrot.lane.b32.xlu0 %v911, 127
    %v952 = vpop.permute.xlu0 %951
    %953 = vrot.lane.b32.xlu0 %v913, 127
    %v954 = vpop.permute.xlu0 %953
    %955 = vrot.lane.b32.xlu0 %v915, 127
    %v956 = vpop.permute.xlu0 %955
    %957 = vrot.lane.b32.xlu0 %v917, 127
    %v958 = vpop.permute.xlu0 %957
    %959 = vrot.lane.b32.xlu0 %v912, 127
    %v960 = vpop.permute.xlu0 %959
    %961 = vrot.lane.b32.xlu0 %v914, 127
    %v962 = vpop.permute.xlu0 %961
    %963 = vrot.lane.b32.xlu0 %v916, 127
    %v964 = vpop.permute.xlu0 %963
    %965 = vrot.lane.b32.xlu0 %v918, 127
    %v966 = vpop.permute.xlu0 %965
    %v967 = vsel %vm418, %v952, %v960
    %v968 = vsel %vm418, %v954, %v962
    %v969 = vsel %vm418, %v956, %v964
    %v970 = vsel %vm418, %v958, %v966
    %v971 = vsel %vm418, %v960, %v952
    %v972 = vsel %vm418, %v962, %v954
    %v973 = vsel %vm418, %v964, %v956
    %v974 = vsel %vm418, %v966, %v958
    %v975 = vsel %vm549, 0.0, %v967
    %v976 = vsel %vm550, 0.0, %v971
    %v977 = vsel %vm549, 0.0, %v968
    %v978 = vsel %vm550, 0.0, %v972
    %v979 = vsel %vm549, 0.0, %v969
    %v980 = vsel %vm550, 0.0, %v973
    %v981 = vsel %vm549, 0.0, %v970
    %v982 = vsel %vm550, 0.0, %v974
    %v983 = vld [vmem:[#allocation13] sm:$0xff]
    %v984 = vld [vmem:[#allocation13 + $0x8] sm:$0xff]
    %v985 = vld [vmem:[#allocation13 + $0x10] sm:$0xff]
    %v986 = vld [vmem:[#allocation13 + $0x18] sm:$0xff]
    %v987 = vld [vmem:[#allocation13 + $0x20] sm:$0xff]
    %v988 = vld [vmem:[#allocation13 + $0x28] sm:$0xff]
    %v989 = vld [vmem:[#allocation13 + $0x30] sm:$0xff]
    %v990 = vld [vmem:[#allocation13 + $0x38] sm:$0xff]
    %999 = vrot.lane.b32.xlu0 %v983, 96
    %v1000 = vpop.permute.xlu0 %999
    %1001 = vrot.lane.b32.xlu0 %v984, 96
    %v1002 = vpop.permute.xlu0 %1001
    %1003 = vrot.lane.b32.xlu0 %v985, 96
    %v1004 = vpop.permute.xlu0 %1003
    %1005 = vrot.lane.b32.xlu0 %v986, 96
    %v1006 = vpop.permute.xlu0 %1005
    %1007 = vrot.lane.b32.xlu0 %v987, 96
    %v1008 = vpop.permute.xlu0 %1007
    %1009 = vrot.lane.b32.xlu0 %v988, 96
    %v1010 = vpop.permute.xlu0 %1009
    %1011 = vrot.lane.b32.xlu0 %v989, 96
    %v1012 = vpop.permute.xlu0 %1011
    %1013 = vrot.lane.b32.xlu0 %v990, 96
    %v1014 = vpop.permute.xlu0 %1013
    %vm1015 = vcmask 261120
    %v1016 = vsel %vm1015, %v1000, 0
    %v1018 = vsel %vm1015, %v1002, 0
    %v1020 = vsel %vm1015, %v1004, 0
    %v1022 = vsel %vm1015, %v1006, 0
    %v1024 = vsel %vm1015, %v1008, 0
    %v1026 = vsel %vm1015, %v1010, 0
    %v1028 = vsel %vm1015, %v1012, 0
    %v1030 = vsel %vm1015, %v1014, 0
    %1032 = vmatprep.subr.mxu0 %v912
    %1033 = vmatpush1.msra.mxu0 %v911
    %1034 = vmatprep.subr.mxu0 %v914
    %1035 = vmatpush1.msra.mxu0 %v913
    %1036 = vmatprep.subr.mxu0 %v916
    %1037 = vmatpush1.msra.mxu0 %v915
    %1038 = vmatprep.subr.mxu0 %v918
    %1039 = vmatpush1.msra.mxu0 %v917
    %1040 = vmatprep.subr.mxu0 0.0
    %1041 = vmatpush1.msra.mxu0 0.0
    %1042 = vmatprep.subr.mxu0 0.0
    %1043 = vmatpush1.msra.mxu0 0.0
    %1044 = vmatprep.subr.mxu0 0.0
    %1045 = vmatpush1.msra.mxu0 0.0
    %1046 = vmatprep.subr.mxu0 0.0
    %1047 = vmatpush1.msra.mxu0 0.0
    %1048 = vmatprep.subr.mxu0 0.0
    %1049 = vmatpush1.msra.mxu0 0.0
    %1050 = vmatprep.subr.mxu0 0.0
    %1051 = vmatpush1.msra.mxu0 0.0
    %1052 = vmatprep.subr.mxu0 0.0
    %1053 = vmatpush1.msra.mxu0 0.0
    %1054 = vmatprep.subr.mxu0 0.0
    %1055 = vmatpush1.msra.mxu0 0.0
    %1056 = vmatprep.subr.mxu0 0.0
    %1057 = vmatpush1.msra.mxu0 0.0
    %1058 = vmatprep.subr.mxu0 0.0
    %1059 = vmatpush1.msra.mxu0 0.0
    %1060 = vmatprep.subr.mxu0 0.0
    %1061 = vmatpush1.msra.mxu0 0.0
    %1062 = vmatprep.subr.mxu0 0.0
    %1063 = vmatpush1.msra.mxu0 0.0
    %1064 = vmatprep.subr.mxu0 0.0
    %1065 = vmatpush1.msra.mxu0 0.0
    %1066 = vmatprep.subr.mxu0 0.0
    %1067 = vmatpush1.msra.mxu0 0.0
    %1068 = vmatprep.subr.mxu0 0.0
    %1069 = vmatpush1.msra.mxu0 0.0
    %1070 = vmatprep.subr.mxu0 0.0
    %1071 = vmatpush1.msra.mxu0 0.0
    %1072 = vmatprep.subr.mxu0 0.0
    %1073 = vmatpush1.msra.mxu0 0.0
    %1074 = vmatprep.subr.mxu0 0.0
    %1075 = vmatpush1.msra.mxu0 0.0
    %1076 = vmatprep.subr.mxu0 0.0
    %1077 = vmatpush1.msra.mxu0 0.0
    %1078 = vmatprep.subr.mxu0 0.0
    %1079 = vmatpush1.msra.mxu0 0.0
    %1080 = vmatprep.subr.mxu0 0.0
    %1081 = vmatpush1.msra.mxu0 0.0
    %1082 = vmatprep.subr.mxu0 0.0
    %1083 = vmatpush1.msra.mxu0 0.0
    %1084 = vmatprep.subr.mxu0 0.0
    %1085 = vmatpush1.msra.mxu0 0.0
    %1086 = vmatprep.subr.mxu0 0.0
    %1087 = vmatpush1.msra.mxu0 0.0
    %1088 = vmatprep.subr.mxu0 0.0
    %1089 = vmatpush1.msra.mxu0 0.0
    %1090 = vmatprep.subr.mxu0 0.0
    %1091 = vmatpush1.msra.mxu0 0.0
    %1092 = vmatprep.subr.mxu0 0.0
    %1093 = vmatpush1.msra.mxu0 0.0
    %1094 = vmatprep.subr.mxu0 0.0
    %1095 = vmatpush1.msra.mxu0 0.0
    %1096 = vmatprep.mubr.f32.mxu0 0.0
    %1097 = vmatmul.mubr.f32.gmra.mrb[0].mxu0 %v1016
    %v1098 = vpop.f32.mrb[0].mxu0
    %v1099 = vadd.f32 0.0, %v1098
    %v1100 = vpop.f32.mrb[0].mxu0
    %v1101 = vadd.f32 0.0, %v1100
    %1102 = vmatprep.mubr.f32.mxu0 0.0
    %1103 = vmatmul.mubr.f32.gmra.mrb[0].mxu0 %v1018
    %v1104 = vpop.f32.mrb[0].mxu0
    %v1105 = vadd.f32 0.0, %v1104
    %v1106 = vpop.f32.mrb[0].mxu0
    %v1107 = vadd.f32 0.0, %v1106
    %1108 = vmatprep.mubr.f32.mxu0 0.0
    %1109 = vmatmul.mubr.f32.gmra.mrb[0].mxu0 %v1020
    %v1110 = vpop.f32.mrb[0].mxu0
    %v1111 = vadd.f32 0.0, %v1110
    %v1112 = vpop.f32.mrb[0].mxu0
    %v1113 = vadd.f32 0.0, %v1112
    %1114 = vmatprep.mubr.f32.mxu0 0.0
    %1115 = vmatmul.mubr.f32.gmra.mrb[0].mxu0 %v1022
    %v1116 = vpop.f32.mrb[0].mxu0
    %v1117 = vadd.f32 0.0, %v1116
    %v1118 = vpop.f32.mrb[0].mxu0
    %v1119 = vadd.f32 0.0, %v1118
    %1120 = vmatprep.mubr.f32.mxu0 0.0
    %1121 = vmatmul.mubr.f32.gmra.mrb[0].mxu0 %v1024
    %v1122 = vpop.f32.mrb[0].mxu0
    %v1123 = vadd.f32 0.0, %v1122
    %v1124 = vpop.f32.mrb[0].mxu0
    %v1125 = vadd.f32 0.0, %v1124
    %1126 = vmatprep.mubr.f32.mxu0 0.0
    %1127 = vmatmul.mubr.f32.gmra.mrb[0].mxu0 %v1026
    %v1128 = vpop.f32.mrb[0].mxu0
    %v1129 = vadd.f32 0.0, %v1128
    %v1130 = vpop.f32.mrb[0].mxu0
    %v1131 = vadd.f32 0.0, %v1130
    %1132 = vmatprep.mubr.f32.mxu0 0.0
    %1133 = vmatmul.mubr.f32.gmra.mrb[0].mxu0 %v1028
    %v1134 = vpop.f32.mrb[0].mxu0
    %v1135 = vadd.f32 0.0, %v1134
    %v1136 = vpop.f32.mrb[0].mxu0
    %v1137 = vadd.f32 0.0, %v1136
    %1138 = vmatprep.mubr.f32.mxu0 0.0
    %1139 = vmatmul.mubr.f32.gmra.mrb[0].mxu0 %v1030
    %v1140 = vpop.f32.mrb[0].mxu0
    %v1141 = vadd.f32 0.0, %v1140
    %v1142 = vpop.f32.mrb[0].mxu0
    %v1143 = vadd.f32 0.0, %v1142
    %1144 = vdwg.mxu0
    %v1145 = vsel %vm1015, %v983, 0
    %v1147 = vsel %vm1015, %v984, 0
    %v1149 = vsel %vm1015, %v985, 0
    %v1151 = vsel %vm1015, %v986, 0
    %v1153 = vsel %vm1015, %v987, 0
    %v1155 = vsel %vm1015, %v988, 0
    %v1157 = vsel %vm1015, %v989, 0
    %v1159 = vsel %vm1015, %v990, 0
    %1161 = vmatprep.subr.mxu0 %v944
    %1162 = vmatpush1.msra.mxu0 %v943
    %1163 = vmatprep.subr.mxu0 %v946
    %1164 = vmatpush1.msra.mxu0 %v945
    %1165 = vmatprep.subr.mxu0 %v948
    %1166 = vmatpush1.msra.mxu0 %v947
    %1167 = vmatprep.subr.mxu0 %v950
    %1168 = vmatpush1.msra.mxu0 %v949
    %1169 = vmatprep.subr.mxu0 0.0
    %1170 = vmatpush1.msra.mxu0 0.0
    %1171 = vmatprep.subr.mxu0 0.0
    %1172 = vmatpush1.msra.mxu0 0.0
    %1173 = vmatprep.subr.mxu0 0.0
    %1174 = vmatpush1.msra.mxu0 0.0
    %1175 = vmatprep.subr.mxu0 0.0
    %1176 = vmatpush1.msra.mxu0 0.0
    %1177 = vmatprep.subr.mxu0 0.0
    %1178 = vmatpush1.msra.mxu0 0.0
    %1179 = vmatprep.subr.mxu0 0.0
    %1180 = vmatpush1.msra.mxu0 0.0
    %1181 = vmatprep.subr.mxu0 0.0
    %1182 = vmatpush1.msra.mxu0 0.0
    %1183 = vmatprep.subr.mxu0 0.0
    %1184 = vmatpush1.msra.mxu0 0.0
    %1185 = vmatprep.subr.mxu0 0.0
    %1186 = vmatpush1.msra.mxu0 0.0
    %1187 = vmatprep.subr.mxu0 0.0
    %1188 = vmatpush1.msra.mxu0 0.0
    %1189 = vmatprep.subr.mxu0 0.0
    %1190 = vmatpush1.msra.mxu0 0.0
    %1191 = vmatprep.subr.mxu0 0.0
    %1192 = vmatpush1.msra.mxu0 0.0
    %1193 = vmatprep.subr.mxu0 0.0
    %1194 = vmatpush1.msra.mxu0 0.0
    %1195 = vmatprep.subr.mxu0 0.0
    %1196 = vmatpush1.msra.mxu0 0.0
    %1197 = vmatprep.subr.mxu0 0.0
    %1198 = vmatpush1.msra.mxu0 0.0
    %1199 = vmatprep.subr.mxu0 0.0
    %1200 = vmatpush1.msra.mxu0 0.0
    %1201 = vmatprep.subr.mxu0 0.0
    %1202 = vmatpush1.msra.mxu0 0.0
    %1203 = vmatprep.subr.mxu0 0.0
    %1204 = vmatpush1.msra.mxu0 0.0
    %1205 = vmatprep.subr.mxu0 0.0
    %1206 = vmatpush1.msra.mxu0 0.0
    %1207 = vmatprep.subr.mxu0 0.0
    %1208 = vmatpush1.msra.mxu0 0.0
    %1209 = vmatprep.subr.mxu0 0.0
    %1210 = vmatpush1.msra.mxu0 0.0
    %1211 = vmatprep.subr.mxu0 0.0
    %1212 = vmatpush1.msra.mxu0 0.0
    %1213 = vmatprep.subr.mxu0 0.0
    %1214 = vmatpush1.msra.mxu0 0.0
    %1215 = vmatprep.subr.mxu0 0.0
    %1216 = vmatpush1.msra.mxu0 0.0
    %1217 = vmatprep.subr.mxu0 0.0
    %1218 = vmatpush1.msra.mxu0 0.0
    %1219 = vmatprep.subr.mxu0 0.0
    %1220 = vmatpush1.msra.mxu0 0.0
    %1221 = vmatprep.subr.mxu0 0.0
    %1222 = vmatpush1.msra.mxu0 0.0
    %1223 = vmatprep.subr.mxu0 0.0
    %1224 = vmatpush1.msra.mxu0 0.0
    %1225 = vmatprep.mubr.f32.mxu0 0.0
    %1226 = vmatmul.mubr.f32.gmra.mrb[0].mxu0 %v1145
    %v1227 = vpop.f32.mrb[0].mxu0
    %v1228 = vadd.f32 %v1099, %v1227
    %v1229 = vpop.f32.mrb[0].mxu0
    %v1230 = vadd.f32 %v1101, %v1229
    %1231 = vmatprep.mubr.f32.mxu0 0.0
    %1232 = vmatmul.mubr.f32.gmra.mrb[0].mxu0 %v1147
    %v1233 = vpop.f32.mrb[0].mxu0
    %v1234 = vadd.f32 %v1105, %v1233
    %v1235 = vpop.f32.mrb[0].mxu0
    %v1236 = vadd.f32 %v1107, %v1235
    %1237 = vmatprep.mubr.f32.mxu0 0.0
    %1238 = vmatmul.mubr.f32.gmra.mrb[0].mxu0 %v1149
    %v1239 = vpop.f32.mrb[0].mxu0
    %v1240 = vadd.f32 %v1111, %v1239
    %v1241 = vpop.f32.mrb[0].mxu0
    %v1242 = vadd.f32 %v1113, %v1241
    %1243 = vmatprep.mubr.f32.mxu0 0.0
    %1244 = vmatmul.mubr.f32.gmra.mrb[0].mxu0 %v1151
    %v1245 = vpop.f32.mrb[0].mxu0
    %v1246 = vadd.f32 %v1117, %v1245
    %v1247 = vpop.f32.mrb[0].mxu0
    %v1248 = vadd.f32 %v1119, %v1247
    %1249 = vmatprep.mubr.f32.mxu0 0.0
    %1250 = vmatmul.mubr.f32.gmra.mrb[0].mxu0 %v1153
    %v1251 = vpop.f32.mrb[0].mxu0
    %v1252 = vadd.f32 %v1123, %v1251
    %v1253 = vpop.f32.mrb[0].mxu0
    %v1254 = vadd.f32 %v1125, %v1253
    %1255 = vmatprep.mubr.f32.mxu0 0.0
    %1256 = vmatmul.mubr.f32.gmra.mrb[0].mxu0 %v1155
    %v1257 = vpop.f32.mrb[0].mxu0
    %v1258 = vadd.f32 %v1129, %v1257
    %v1259 = vpop.f32.mrb[0].mxu0
    %v1260 = vadd.f32 %v1131, %v1259
    %1261 = vmatprep.mubr.f32.mxu0 0.0
    %1262 = vmatmul.mubr.f32.gmra.mrb[0].mxu0 %v1157
    %v1263 = vpop.f32.mrb[0].mxu0
    %v1264 = vadd.f32 %v1135, %v1263
    %v1265 = vpop.f32.mrb[0].mxu0
    %v1266 = vadd.f32 %v1137, %v1265
    %1267 = vmatprep.mubr.f32.mxu0 0.0
    %1268 = vmatmul.mubr.f32.gmra.mrb[0].mxu0 %v1159
    %v1269 = vpop.f32.mrb[0].mxu0
    %v1270 = vadd.f32 %v1141, %v1269
    %v1271 = vpop.f32.mrb[0].mxu0
    %v1272 = vadd.f32 %v1143, %v1271
    %1273 = vdwg.mxu0
    %1274 = vrot.lane.b32.xlu0 %v983, 64
    %v1275 = vpop.permute.xlu0 %1274
    %1276 = vrot.lane.b32.xlu0 %v984, 64
    %v1277 = vpop.permute.xlu0 %1276
    %1278 = vrot.lane.b32.xlu0 %v985, 64
    %v1279 = vpop.permute.xlu0 %1278
    %1280 = vrot.lane.b32.xlu0 %v986, 64
    %v1281 = vpop.permute.xlu0 %1280
    %1282 = vrot.lane.b32.xlu0 %v987, 64
    %v1283 = vpop.permute.xlu0 %1282
    %1284 = vrot.lane.b32.xlu0 %v988, 64
    %v1285 = vpop.permute.xlu0 %1284
    %1286 = vrot.lane.b32.xlu0 %v989, 64
    %v1287 = vpop.permute.xlu0 %1286
    %1288 = vrot.lane.b32.xlu0 %v990, 64
    %v1289 = vpop.permute.xlu0 %1288
    %v1290 = vsel %vm1015, %v1275, 0
    %v1292 = vsel %vm1015, %v1277, 0
    %v1294 = vsel %vm1015, %v1279, 0
    %v1296 = vsel %vm1015, %v1281, 0
    %v1298 = vsel %vm1015, %v1283, 0
    %v1300 = vsel %vm1015, %v1285, 0
    %v1302 = vsel %vm1015, %v1287, 0
    %v1304 = vsel %vm1015, %v1289, 0
    %1306 = vmatprep.subr.mxu0 %v976
    %1307 = vmatpush1.msra.mxu0 %v975
    %1308 = vmatprep.subr.mxu0 %v978
    %1309 = vmatpush1.msra.mxu0 %v977
    %1310 = vmatprep.subr.mxu0 %v980
    %1311 = vmatpush1.msra.mxu0 %v979
    %1312 = vmatprep.subr.mxu0 %v982
    %1313 = vmatpush1.msra.mxu0 %v981
    %1314 = vmatprep.subr.mxu0 0.0
    %1315 = vmatpush1.msra.mxu0 0.0
    %1316 = vmatprep.subr.mxu0 0.0
    %1317 = vmatpush1.msra.mxu0 0.0
    %1318 = vmatprep.subr.mxu0 0.0
    %1319 = vmatpush1.msra.mxu0 0.0
    %1320 = vmatprep.subr.mxu0 0.0
    %1321 = vmatpush1.msra.mxu0 0.0
    %1322 = vmatprep.subr.mxu0 0.0
    %1323 = vmatpush1.msra.mxu0 0.0
    %1324 = vmatprep.subr.mxu0 0.0
    %1325 = vmatpush1.msra.mxu0 0.0
    %1326 = vmatprep.subr.mxu0 0.0
    %1327 = vmatpush1.msra.mxu0 0.0
    %1328 = vmatprep.subr.mxu0 0.0
    %1329 = vmatpush1.msra.mxu0 0.0
    %1330 = vmatprep.subr.mxu0 0.0
    %1331 = vmatpush1.msra.mxu0 0.0
    %1332 = vmatprep.subr.mxu0 0.0
    %1333 = vmatpush1.msra.mxu0 0.0
    %1334 = vmatprep.subr.mxu0 0.0
    %1335 = vmatpush1.msra.mxu0 0.0
    %1336 = vmatprep.subr.mxu0 0.0
    %1337 = vmatpush1.msra.mxu0 0.0
    %1338 = vmatprep.subr.mxu0 0.0
    %1339 = vmatpush1.msra.mxu0 0.0
    %1340 = vmatprep.subr.mxu0 0.0
    %1341 = vmatpush1.msra.mxu0 0.0
    %1342 = vmatprep.subr.mxu0 0.0
    %1343 = vmatpush1.msra.mxu0 0.0
    %1344 = vmatprep.subr.mxu0 0.0
    %1345 = vmatpush1.msra.mxu0 0.0
    %1346 = vmatprep.subr.mxu0 0.0
    %1347 = vmatpush1.msra.mxu0 0.0
    %1348 = vmatprep.subr.mxu0 0.0
    %1349 = vmatpush1.msra.mxu0 0.0
    %1350 = vmatprep.subr.mxu0 0.0
    %1351 = vmatpush1.msra.mxu0 0.0
    %1352 = vmatprep.subr.mxu0 0.0
    %1353 = vmatpush1.msra.mxu0 0.0
    %1354 = vmatprep.subr.mxu0 0.0
    %1355 = vmatpush1.msra.mxu0 0.0
    %1356 = vmatprep.subr.mxu0 0.0
    %1357 = vmatpush1.msra.mxu0 0.0
    %1358 = vmatprep.subr.mxu0 0.0
    %1359 = vmatpush1.msra.mxu0 0.0
    %1360 = vmatprep.subr.mxu0 0.0
    %1361 = vmatpush1.msra.mxu0 0.0
    %1362 = vmatprep.subr.mxu0 0.0
    %1363 = vmatpush1.msra.mxu0 0.0
    %1364 = vmatprep.subr.mxu0 0.0
    %1365 = vmatpush1.msra.mxu0 0.0
    %1366 = vmatprep.subr.mxu0 0.0
    %1367 = vmatpush1.msra.mxu0 0.0
    %1368 = vmatprep.subr.mxu0 0.0
    %1369 = vmatpush1.msra.mxu0 0.0
    %1370 = vmatprep.mubr.f32.mxu0 0.0
    %1371 = vmatmul.mubr.f32.gmra.mrb[0].mxu0 %v1290
    %v1372 = vpop.f32.mrb[0].mxu0
    %v1373 = vadd.f32 0.0, %v1372
    %v1374 = vpop.f32.mrb[0].mxu0
    %v1375 = vadd.f32 0.0, %v1374
    %1376 = vmatprep.mubr.f32.mxu0 0.0
    %1377 = vmatmul.mubr.f32.gmra.mrb[0].mxu0 %v1292
    %v1378 = vpop.f32.mrb[0].mxu0
    %v1379 = vadd.f32 0.0, %v1378
    %v1380 = vpop.f32.mrb[0].mxu0
    %v1381 = vadd.f32 0.0, %v1380
    %1382 = vmatprep.mubr.f32.mxu0 0.0
    %1383 = vmatmul.mubr.f32.gmra.mrb[0].mxu0 %v1294
    %v1384 = vpop.f32.mrb[0].mxu0
    %v1385 = vadd.f32 0.0, %v1384
    %v1386 = vpop.f32.mrb[0].mxu0
    %v1387 = vadd.f32 0.0, %v1386
    %1388 = vmatprep.mubr.f32.mxu0 0.0
    %1389 = vmatmul.mubr.f32.gmra.mrb[0].mxu0 %v1296
    %v1390 = vpop.f32.mrb[0].mxu0
    %v1391 = vadd.f32 0.0, %v1390
    %v1392 = vpop.f32.mrb[0].mxu0
    %v1393 = vadd.f32 0.0, %v1392
    %1394 = vmatprep.mubr.f32.mxu0 0.0
    %1395 = vmatmul.mubr.f32.gmra.mrb[0].mxu0 %v1298
    %v1396 = vpop.f32.mrb[0].mxu0
    %v1397 = vadd.f32 0.0, %v1396
    %v1398 = vpop.f32.mrb[0].mxu0
    %v1399 = vadd.f32 0.0, %v1398
    %1400 = vmatprep.mubr.f32.mxu0 0.0
    %1401 = vmatmul.mubr.f32.gmra.mrb[0].mxu0 %v1300
    %v1402 = vpop.f32.mrb[0].mxu0
    %v1403 = vadd.f32 0.0, %v1402
    %v1404 = vpop.f32.mrb[0].mxu0
    %v1405 = vadd.f32 0.0, %v1404
    %1406 = vmatprep.mubr.f32.mxu0 0.0
    %1407 = vmatmul.mubr.f32.gmra.mrb[0].mxu0 %v1302
    %v1408 = vpop.f32.mrb[0].mxu0
    %v1409 = vadd.f32 0.0, %v1408
    %v1410 = vpop.f32.mrb[0].mxu0
    %v1411 = vadd.f32 0.0, %v1410
    %1412 = vmatprep.mubr.f32.mxu0 0.0
    %1413 = vmatmul.mubr.f32.gmra.mrb[0].mxu0 %v1304
    %v1414 = vpop.f32.mrb[0].mxu0
    %v1415 = vadd.f32 0.0, %v1414
    %v1416 = vpop.f32.mrb[0].mxu0
    %v1417 = vadd.f32 0.0, %v1416
    %1418 = vdwg.mxu0
    %v1419 = vadd.f32 %v1228, %v1373
    %v1420 = vadd.f32 %v1230, %v1375
    %v1421 = vadd.f32 %v1234, %v1379
    %v1422 = vadd.f32 %v1236, %v1381
    %v1423 = vadd.f32 %v1240, %v1385
    %v1424 = vadd.f32 %v1242, %v1387
    %v1425 = vadd.f32 %v1246, %v1391
    %v1426 = vadd.f32 %v1248, %v1393
    %v1427 = vadd.f32 %v1252, %v1397
    %v1428 = vadd.f32 %v1254, %v1399
    %v1429 = vadd.f32 %v1258, %v1403
    %v1430 = vadd.f32 %v1260, %v1405
    %v1431 = vadd.f32 %v1264, %v1409
    %v1432 = vadd.f32 %v1266, %v1411
    %v1433 = vadd.f32 %v1270, %v1415
    %v1434 = vadd.f32 %v1272, %v1417
    %v1435 = vld [vmem:[%s8] sm:$0xff]
    %v1436 = vld [vmem:[%s8 + $0x8] sm:$0xff]
    %v1437 = vld [vmem:[%s8 + $0x10] sm:$0xff]
    %v1438 = vld [vmem:[%s8 + $0x18] sm:$0xff]
    %v1439 = vld [vmem:[%s8 + $0x20] sm:$0xff]
    %v1440 = vld [vmem:[%s8 + $0x28] sm:$0xff]
    %v1441 = vld [vmem:[%s8 + $0x30] sm:$0xff]
    %v1442 = vld [vmem:[%s8 + $0x38] sm:$0xff]
    %1444 = vset.pattern.permute.xlu0 0
    %1445 = vperm.xlu0 %1444, %v1435
    %v1446 = vpop.permute.xlu0 %1445
    %1449 = vset.pattern.permute.xlu0 0
    %1450 = vperm.xlu0 %1449, %v1436
    %v1451 = vpop.permute.xlu0 %1450
    %1454 = vset.pattern.permute.xlu0 0
    %1455 = vperm.xlu0 %1454, %v1437
    %v1456 = vpop.permute.xlu0 %1455
    %1459 = vset.pattern.permute.xlu0 0
    %1460 = vperm.xlu0 %1459, %v1438
    %v1461 = vpop.permute.xlu0 %1460
    %1464 = vset.pattern.permute.xlu0 0
    %1465 = vperm.xlu0 %1464, %v1439
    %v1466 = vpop.permute.xlu0 %1465
    %1469 = vset.pattern.permute.xlu0 0
    %1470 = vperm.xlu0 %1469, %v1440
    %v1471 = vpop.permute.xlu0 %1470
    %1474 = vset.pattern.permute.xlu0 0
    %1475 = vperm.xlu0 %1474, %v1441
    %v1476 = vpop.permute.xlu0 %1475
    %1479 = vset.pattern.permute.xlu0 0
    %1480 = vperm.xlu0 %1479, %v1442
    %v1481 = vpop.permute.xlu0 %1480
    %v1483 = vadd.f32 %v1419, %v1446
    %v1484 = vadd.f32 %v1420, %v1446
    %v1485 = vadd.f32 %v1421, %v1451
    %v1486 = vadd.f32 %v1422, %v1451
    %v1487 = vadd.f32 %v1423, %v1456
    %v1488 = vadd.f32 %v1424, %v1456
    %v1489 = vadd.f32 %v1425, %v1461
    %v1490 = vadd.f32 %v1426, %v1461
    %v1491 = vadd.f32 %v1427, %v1466
    %v1492 = vadd.f32 %v1428, %v1466
    %v1493 = vadd.f32 %v1429, %v1471
    %v1494 = vadd.f32 %v1430, %v1471
    %v1495 = vadd.f32 %v1431, %v1476
    %v1496 = vadd.f32 %v1432, %v1476
    %v1497 = vadd.f32 %v1433, %v1481
    %v1498 = vadd.f32 %v1434, %v1481
    %v1499 = vmax.f32 %v1483, 0.0
    %v1500 = vmax.f32 %v1484, 0.0
    %v1501 = vmax.f32 %v1485, 0.0
    %v1502 = vmax.f32 %v1486, 0.0
    %v1503 = vmax.f32 %v1487, 0.0
    %v1504 = vmax.f32 %v1488, 0.0
    %v1505 = vmax.f32 %v1489, 0.0
    %v1506 = vmax.f32 %v1490, 0.0
    %v1507 = vmax.f32 %v1491, 0.0
    %v1508 = vmax.f32 %v1492, 0.0
    %v1509 = vmax.f32 %v1493, 0.0
    %v1510 = vmax.f32 %v1494, 0.0
    %v1511 = vmax.f32 %v1495, 0.0
    %v1512 = vmax.f32 %v1496, 0.0
    %v1513 = vmax.f32 %v1497, 0.0
    %v1514 = vmax.f32 %v1498, 0.0
    %v1515 = vpack.c.bf16 %v1501, %v1499
    %v1517 = vunpack.c.l.b16 %v1515
    %v1518 = vunpack.c.h.b16 %v1515
    %v1519 = vpack.i.b16 %v1517, %v1517
    %v1520 = vpack.i.b16 %v1518, %v1518
    %vm1523 = vcmask 1040384
    %vm1524 = vsmask.f32 256
    %vm1525 = vmand %vm1523, %vm1524
    %vm1526 = vcmask 1041409
    %vm1527 = vsmask.f32 1280
    %vm1528 = vmand %vm1526, %vm1527
    %vm1529 = vmor %vm1528, %vm1525
    %vm1530 = vcmask 1042434
    %vm1531 = vsmask.f32 2304
    %vm1532 = vmand %vm1530, %vm1531
    %vm1533 = vmor %vm1532, %vm1529
    %vm1534 = vcmask 1043459
    %vm1535 = vsmask.f32 3328
    %vm1536 = vmand %vm1534, %vm1535
    %vm1537 = vmor %vm1536, %vm1533
    %vm1538 = vcmask 1044484
    %vm1539 = vsmask.f32 4352
    %vm1540 = vmand %vm1538, %vm1539
    %vm1541 = vmor %vm1540, %vm1537
    %vm1542 = vcmask 1045509
    %vm1543 = vsmask.f32 5376
    %vm1544 = vmand %vm1542, %vm1543
    %vm1545 = vmor %vm1544, %vm1541
    %vm1546 = vcmask 1046534
    %vm1547 = vsmask.f32 6400
    %vm1548 = vmand %vm1546, %vm1547
    %vm1549 = vmor %vm1548, %vm1545
    %vm1550 = vcmask 1047559
    %vm1551 = vsmask.f32 7424
    %vm1552 = vmand %vm1550, %vm1551
    %vm1553 = vmor %vm1552, %vm1549
    %v1554 = vld [vmem:[#allocation4] sm:$0xff]
    %v1555 = vsel %vm1553, %v1519, %v1554
    %1556 = vst [vmem:[#allocation4] sm:$0xff] %v1555
    %v1557 = vld [vmem:[#allocation4 + $0x8] sm:$0xff]
    %v1558 = vsel %vm1553, %v1520, %v1557
    %1559 = vst [vmem:[#allocation4 + $0x8] sm:$0xff] %v1558
    %v1560 = vpack.c.bf16 %v1505, %v1503
    %v1562 = vunpack.c.l.b16 %v1560
    %v1563 = vunpack.c.h.b16 %v1560
    %v1564 = vpack.i.b16 %v1562, %v1562
    %v1565 = vpack.i.b16 %v1563, %v1563
    %v1568 = vld [vmem:[#allocation4 + $0x10] sm:$0xff]
    %v1569 = vsel %vm1553, %v1564, %v1568
    %1570 = vst [vmem:[#allocation4 + $0x10] sm:$0xff] %v1569
    %v1571 = vld [vmem:[#allocation4 + $0x18] sm:$0xff]
    %v1572 = vsel %vm1553, %v1565, %v1571
    %1573 = vst [vmem:[#allocation4 + $0x18] sm:$0xff] %v1572
    %v1574 = vpack.c.bf16 %v1509, %v1507
    %v1576 = vunpack.c.l.b16 %v1574
    %v1577 = vunpack.c.h.b16 %v1574
    %v1578 = vpack.i.b16 %v1576, %v1576
    %v1579 = vpack.i.b16 %v1577, %v1577
    %v1582 = vld [vmem:[#allocation4 + $0x20] sm:$0xff]
    %v1583 = vsel %vm1553, %v1578, %v1582
    %1584 = vst [vmem:[#allocation4 + $0x20] sm:$0xff] %v1583
    %v1585 = vld [vmem:[#allocation4 + $0x28] sm:$0xff]
    %v1586 = vsel %vm1553, %v1579, %v1585
    %1587 = vst [vmem:[#allocation4 + $0x28] sm:$0xff] %v1586
    %v1588 = vpack.c.bf16 %v1513, %v1511
    %v1590 = vunpack.c.l.b16 %v1588
    %v1591 = vunpack.c.h.b16 %v1588
    %v1592 = vpack.i.b16 %v1590, %v1590
    %v1593 = vpack.i.b16 %v1591, %v1591
    %v1596 = vld [vmem:[#allocation4 + $0x30] sm:$0xff]
    %v1597 = vsel %vm1553, %v1592, %v1596
    %1598 = vst [vmem:[#allocation4 + $0x30] sm:$0xff] %v1597
    %v1599 = vld [vmem:[#allocation4 + $0x38] sm:$0xff]
    %v1600 = vsel %vm1553, %v1593, %v1599
    %1601 = vst [vmem:[#allocation4 + $0x38] sm:$0xff] %v1600
    %v1602 = vpack.c.bf16 %v1502, %v1500
    %v1604 = vunpack.c.l.b16 %v1602
    %v1605 = vunpack.c.h.b16 %v1602
    %v1606 = vpack.i.b16 %v1604, %v1604
    %v1607 = vpack.i.b16 %v1605, %v1605
    %vm1610 = vsmask.f32 7938
    %vm1611 = vmand %vm1523, %vm1610
    %vm1612 = vsmask.f32 7942
    %vm1613 = vmand %vm1526, %vm1612
    %vm1614 = vmor %vm1613, %vm1611
    %vm1615 = vsmask.f32 7946
    %vm1616 = vmand %vm1530, %vm1615
    %vm1617 = vmor %vm1616, %vm1614
    %vm1618 = vsmask.f32 7950
    %vm1619 = vmand %vm1534, %vm1618
    %vm1620 = vmor %vm1619, %vm1617
    %vm1621 = vsmask.f32 7954
    %vm1622 = vmand %vm1538, %vm1621
    %vm1623 = vmor %vm1622, %vm1620
    %vm1624 = vsmask.f32 7958
    %vm1625 = vmand %vm1542, %vm1624
    %vm1626 = vmor %vm1625, %vm1623
    %vm1627 = vsmask.f32 7962
    %vm1628 = vmand %vm1546, %vm1627
    %vm1629 = vmor %vm1628, %vm1626
    %vm1630 = vsmask.f32 7966
    %vm1631 = vmand %vm1550, %vm1630
    %vm1632 = vmor %vm1631, %vm1629
    %v1633 = vld [vmem:[#allocation4] sm:$0xff]
    %v1634 = vsel %vm1632, %v1606, %v1633
    %1635 = vst [vmem:[#allocation4] sm:$0xff] %v1634
    %v1636 = vld [vmem:[#allocation4 + $0x8] sm:$0xff]
    %v1637 = vsel %vm1632, %v1607, %v1636
    %1638 = vst [vmem:[#allocation4 + $0x8] sm:$0xff] %v1637
    %v1639 = vpack.c.bf16 %v1506, %v1504
    %v1641 = vunpack.c.l.b16 %v1639
    %v1642 = vunpack.c.h.b16 %v1639
    %v1643 = vpack.i.b16 %v1641, %v1641
    %v1644 = vpack.i.b16 %v1642, %v1642
    %v1647 = vld [vmem:[#allocation4 + $0x10] sm:$0xff]
    %v1648 = vsel %vm1632, %v1643, %v1647
    %1649 = vst [vmem:[#allocation4 + $0x10] sm:$0xff] %v1648
    %v1650 = vld [vmem:[#allocation4 + $0x18] sm:$0xff]
    %v1651 = vsel %vm1632, %v1644, %v1650
    %1652 = vst [vmem:[#allocation4 + $0x18] sm:$0xff] %v1651
    %v1653 = vpack.c.bf16 %v1510, %v1508
    %v1655 = vunpack.c.l.b16 %v1653
    %v1656 = vunpack.c.h.b16 %v1653
    %v1657 = vpack.i.b16 %v1655, %v1655
    %v1658 = vpack.i.b16 %v1656, %v1656
    %v1661 = vld [vmem:[#allocation4 + $0x20] sm:$0xff]
    %v1662 = vsel %vm1632, %v1657, %v1661
    %1663 = vst [vmem:[#allocation4 + $0x20] sm:$0xff] %v1662
    %v1664 = vld [vmem:[#allocation4 + $0x28] sm:$0xff]
    %v1665 = vsel %vm1632, %v1658, %v1664
    %1666 = vst [vmem:[#allocation4 + $0x28] sm:$0xff] %v1665
    %v1667 = vpack.c.bf16 %v1514, %v1512
    %v1669 = vunpack.c.l.b16 %v1667
    %v1670 = vunpack.c.h.b16 %v1667
    %v1671 = vpack.i.b16 %v1669, %v1669
    %v1672 = vpack.i.b16 %v1670, %v1670
    %v1675 = vld [vmem:[#allocation4 + $0x30] sm:$0xff]
    %v1676 = vsel %vm1632, %v1671, %v1675
    %1677 = vst [vmem:[#allocation4 + $0x30] sm:$0xff] %v1676
    %v1678 = vld [vmem:[#allocation4 + $0x38] sm:$0xff]
    %v1679 = vsel %vm1632, %v1672, %v1678
    %1680 = vst [vmem:[#allocation4 + $0x38] sm:$0xff] %v1679
    %s1681 = smul.u32 4, 256
    %s1682 = smul.u32 %s1681, 2
    %s1683 = sshll.u32 %s1682, 4
    %1684 = dma.done [#allocation3], %s1683
    %v1685 = vld [vmem:[#allocation4] sm:$0xff]
    %v1686 = vld [vmem:[#allocation4 + $0x8] sm:$0xff]
    %v1687 = vld [vmem:[#allocation2] sm:$0xff]
    %v1688 = vld [vmem:[#allocation2 + $0x8] sm:$0xff]
    %v1689 = vld [vmem:[#allocation2 + $0x10] sm:$0xff]
    %v1690 = vld [vmem:[#allocation2 + $0x18] sm:$0xff]
    %v1691 = vld [vmem:[#allocation2 + $0x20] sm:$0xff]
    %v1692 = vld [vmem:[#allocation2 + $0x28] sm:$0xff]
    %v1693 = vld [vmem:[#allocation2 + $0x30] sm:$0xff]
    %v1694 = vld [vmem:[#allocation2 + $0x38] sm:$0xff]
    %v1695 = vld [vmem:[#allocation2 + $0x40] sm:$0xff]
    %v1696 = vld [vmem:[#allocation2 + $0x48] sm:$0xff]
    %v1697 = vld [vmem:[#allocation2 + $0x50] sm:$0xff]
    %v1698 = vld [vmem:[#allocation2 + $0x58] sm:$0xff]
    %v1699 = vld [vmem:[#allocation2 + $0x60] sm:$0xff]
    %v1700 = vld [vmem:[#allocation2 + $0x68] sm:$0xff]
    %v1701 = vld [vmem:[#allocation2 + $0x70] sm:$0xff]
    %v1702 = vld [vmem:[#allocation2 + $0x78] sm:$0xff]
    %v1703 = vld [vmem:[#allocation2 + $0x80] sm:$0xff]
    %v1704 = vld [vmem:[#allocation2 + $0x88] sm:$0xff]
    %v1705 = vld [vmem:[#allocation2 + $0x90] sm:$0xff]
    %v1706 = vld [vmem:[#allocation2 + $0x98] sm:$0xff]
    %v1707 = vld [vmem:[#allocation2 + $0xa0] sm:$0xff]
    %v1708 = vld [vmem:[#allocation2 + $0xa8] sm:$0xff]
    %v1709 = vld [vmem:[#allocation2 + $0xb0] sm:$0xff]
    %v1710 = vld [vmem:[#allocation2 + $0xb8] sm:$0xff]
    %v1711 = vld [vmem:[#allocation2 + $0xc0] sm:$0xff]
    %v1712 = vld [vmem:[#allocation2 + $0xc8] sm:$0xff]
    %v1713 = vld [vmem:[#allocation2 + $0xd0] sm:$0xff]
    %v1714 = vld [vmem:[#allocation2 + $0xd8] sm:$0xff]
    %v1715 = vld [vmem:[#allocation2 + $0xe0] sm:$0xff]
    %v1716 = vld [vmem:[#allocation2 + $0xe8] sm:$0xff]
    %v1717 = vld [vmem:[#allocation2 + $0xf0] sm:$0xff]
    %v1718 = vld [vmem:[#allocation2 + $0xf8] sm:$0xff]
    %v1719 = vld [vmem:[#allocation2 + $0x100] sm:$0xff]
    %v1720 = vld [vmem:[#allocation2 + $0x108] sm:$0xff]
    %v1721 = vld [vmem:[#allocation2 + $0x110] sm:$0xff]
    %v1722 = vld [vmem:[#allocation2 + $0x118] sm:$0xff]
    %v1723 = vld [vmem:[#allocation2 + $0x120] sm:$0xff]
    %v1724 = vld [vmem:[#allocation2 + $0x128] sm:$0xff]
    %v1725 = vld [vmem:[#allocation2 + $0x130] sm:$0xff]
    %v1726 = vld [vmem:[#allocation2 + $0x138] sm:$0xff]
    %v1727 = vld [vmem:[#allocation2 + $0x140] sm:$0xff]
    %v1728 = vld [vmem:[#allocation2 + $0x148] sm:$0xff]
    %v1729 = vld [vmem:[#allocation2 + $0x150] sm:$0xff]
    %v1730 = vld [vmem:[#allocation2 + $0x158] sm:$0xff]
    %v1731 = vld [vmem:[#allocation2 + $0x160] sm:$0xff]
    %v1732 = vld [vmem:[#allocation2 + $0x168] sm:$0xff]
    %v1733 = vld [vmem:[#allocation2 + $0x170] sm:$0xff]
    %v1734 = vld [vmem:[#allocation2 + $0x178] sm:$0xff]
    %v1735 = vld [vmem:[#allocation2 + $0x180] sm:$0xff]
    %v1736 = vld [vmem:[#allocation2 + $0x188] sm:$0xff]
    %v1737 = vld [vmem:[#allocation2 + $0x190] sm:$0xff]
    %v1738 = vld [vmem:[#allocation2 + $0x198] sm:$0xff]
    %v1739 = vld [vmem:[#allocation2 + $0x1a0] sm:$0xff]
    %v1740 = vld [vmem:[#allocation2 + $0x1a8] sm:$0xff]
    %v1741 = vld [vmem:[#allocation2 + $0x1b0] sm:$0xff]
    %v1742 = vld [vmem:[#allocation2 + $0x1b8] sm:$0xff]
    %v1743 = vld [vmem:[#allocation2 + $0x1c0] sm:$0xff]
    %v1744 = vld [vmem:[#allocation2 + $0x1c8] sm:$0xff]
    %v1745 = vld [vmem:[#allocation2 + $0x1d0] sm:$0xff]
    %v1746 = vld [vmem:[#allocation2 + $0x1d8] sm:$0xff]
    %v1747 = vld [vmem:[#allocation2 + $0x1e0] sm:$0xff]
    %v1748 = vld [vmem:[#allocation2 + $0x1e8] sm:$0xff]
    %v1749 = vld [vmem:[#allocation2 + $0x1f0] sm:$0xff]
    %v1750 = vld [vmem:[#allocation2 + $0x1f8] sm:$0xff]
    %v1751 = vld [vmem:[#allocation2 + $0x200] sm:$0xff]
    %v1752 = vld [vmem:[#allocation2 + $0x208] sm:$0xff]
    %v1753 = vld [vmem:[#allocation2 + $0x210] sm:$0xff]
    %v1754 = vld [vmem:[#allocation2 + $0x218] sm:$0xff]
    %v1755 = vld [vmem:[#allocation2 + $0x220] sm:$0xff]
    %v1756 = vld [vmem:[#allocation2 + $0x228] sm:$0xff]
    %v1757 = vld [vmem:[#allocation2 + $0x230] sm:$0xff]
    %v1758 = vld [vmem:[#allocation2 + $0x238] sm:$0xff]
    %v1759 = vld [vmem:[#allocation2 + $0x240] sm:$0xff]
    %v1760 = vld [vmem:[#allocation2 + $0x248] sm:$0xff]
    %v1761 = vld [vmem:[#allocation2 + $0x250] sm:$0xff]
    %v1762 = vld [vmem:[#allocation2 + $0x258] sm:$0xff]
    %v1763 = vld [vmem:[#allocation2 + $0x260] sm:$0xff]
    %v1764 = vld [vmem:[#allocation2 + $0x268] sm:$0xff]
    %v1765 = vld [vmem:[#allocation2 + $0x270] sm:$0xff]
    %v1766 = vld [vmem:[#allocation2 + $0x278] sm:$0xff]
    %v1767 = vld [vmem:[#allocation2 + $0x280] sm:$0xff]
    %v1768 = vld [vmem:[#allocation2 + $0x288] sm:$0xff]
    %v1769 = vld [vmem:[#allocation2 + $0x290] sm:$0xff]
    %v1770 = vld [vmem:[#allocation2 + $0x298] sm:$0xff]
    %v1771 = vld [vmem:[#allocation2 + $0x2a0] sm:$0xff]
    %v1772 = vld [vmem:[#allocation2 + $0x2a8] sm:$0xff]
    %v1773 = vld [vmem:[#allocation2 + $0x2b0] sm:$0xff]
    %v1774 = vld [vmem:[#allocation2 + $0x2b8] sm:$0xff]
    %v1775 = vld [vmem:[#allocation2 + $0x2c0] sm:$0xff]
    %v1776 = vld [vmem:[#allocation2 + $0x2c8] sm:$0xff]
    %v1777 = vld [vmem:[#allocation2 + $0x2d0] sm:$0xff]
    %v1778 = vld [vmem:[#allocation2 + $0x2d8] sm:$0xff]
    %v1779 = vld [vmem:[#allocation2 + $0x2e0] sm:$0xff]
    %v1780 = vld [vmem:[#allocation2 + $0x2e8] sm:$0xff]
    %v1781 = vld [vmem:[#allocation2 + $0x2f0] sm:$0xff]
    %v1782 = vld [vmem:[#allocation2 + $0x2f8] sm:$0xff]
    %v1783 = vld [vmem:[#allocation2 + $0x300] sm:$0xff]
    %v1784 = vld [vmem:[#allocation2 + $0x308] sm:$0xff]
    %v1785 = vld [vmem:[#allocation2 + $0x310] sm:$0xff]
    %v1786 = vld [vmem:[#allocation2 + $0x318] sm:$0xff]
    %v1787 = vld [vmem:[#allocation2 + $0x320] sm:$0xff]
    %v1788 = vld [vmem:[#allocation2 + $0x328] sm:$0xff]
    %v1789 = vld [vmem:[#allocation2 + $0x330] sm:$0xff]
    %v1790 = vld [vmem:[#allocation2 + $0x338] sm:$0xff]
    %v1791 = vld [vmem:[#allocation2 + $0x340] sm:$0xff]
    %v1792 = vld [vmem:[#allocation2 + $0x348] sm:$0xff]
    %v1793 = vld [vmem:[#allocation2 + $0x350] sm:$0xff]
    %v1794 = vld [vmem:[#allocation2 + $0x358] sm:$0xff]
    %v1795 = vld [vmem:[#allocation2 + $0x360] sm:$0xff]
    %v1796 = vld [vmem:[#allocation2 + $0x368] sm:$0xff]
    %v1797 = vld [vmem:[#allocation2 + $0x370] sm:$0xff]
    %v1798 = vld [vmem:[#allocation2 + $0x378] sm:$0xff]
    %v1799 = vld [vmem:[#allocation2 + $0x380] sm:$0xff]
    %v1800 = vld [vmem:[#allocation2 + $0x388] sm:$0xff]
    %v1801 = vld [vmem:[#allocation2 + $0x390] sm:$0xff]
    %v1802 = vld [vmem:[#allocation2 + $0x398] sm:$0xff]
    %v1803 = vld [vmem:[#allocation2 + $0x3a0] sm:$0xff]
    %v1804 = vld [vmem:[#allocation2 + $0x3a8] sm:$0xff]
    %v1805 = vld [vmem:[#allocation2 + $0x3b0] sm:$0xff]
    %v1806 = vld [vmem:[#allocation2 + $0x3b8] sm:$0xff]
    %v1807 = vld [vmem:[#allocation2 + $0x3c0] sm:$0xff]
    %v1808 = vld [vmem:[#allocation2 + $0x3c8] sm:$0xff]
    %v1809 = vld [vmem:[#allocation2 + $0x3d0] sm:$0xff]
    %v1810 = vld [vmem:[#allocation2 + $0x3d8] sm:$0xff]
    %v1811 = vld [vmem:[#allocation2 + $0x3e0] sm:$0xff]
    %v1812 = vld [vmem:[#allocation2 + $0x3e8] sm:$0xff]
    %v1813 = vld [vmem:[#allocation2 + $0x3f0] sm:$0xff]
    %v1814 = vld [vmem:[#allocation2 + $0x3f8] sm:$0xff]
    %v1815 = vld [vmem:[#allocation2 + $0x400] sm:$0xff]
    %v1816 = vld [vmem:[#allocation2 + $0x408] sm:$0xff]
    %v1817 = vld [vmem:[#allocation2 + $0x410] sm:$0xff]
    %v1818 = vld [vmem:[#allocation2 + $0x418] sm:$0xff]
    %v1819 = vld [vmem:[#allocation2 + $0x420] sm:$0xff]
    %v1820 = vld [vmem:[#allocation2 + $0x428] sm:$0xff]
    %v1821 = vld [vmem:[#allocation2 + $0x430] sm:$0xff]
    %v1822 = vld [vmem:[#allocation2 + $0x438] sm:$0xff]
    %v1823 = vld [vmem:[#allocation2 + $0x440] sm:$0xff]
    %v1824 = vld [vmem:[#allocation2 + $0x448] sm:$0xff]
    %v1825 = vld [vmem:[#allocation2 + $0x450] sm:$0xff]
    %v1826 = vld [vmem:[#allocation2 + $0x458] sm:$0xff]
    %v1827 = vld [vmem:[#allocation2 + $0x460] sm:$0xff]
    %v1828 = vld [vmem:[#allocation2 + $0x468] sm:$0xff]
    %v1829 = vld [vmem:[#allocation2 + $0x470] sm:$0xff]
    %v1830 = vld [vmem:[#allocation2 + $0x478] sm:$0xff]
    %v1831 = vld [vmem:[#allocation2 + $0x480] sm:$0xff]
    %v1832 = vld [vmem:[#allocation2 + $0x488] sm:$0xff]
    %v1833 = vld [vmem:[#allocation2 + $0x490] sm:$0xff]
    %v1834 = vld [vmem:[#allocation2 + $0x498] sm:$0xff]
    %v1835 = vld [vmem:[#allocation2 + $0x4a0] sm:$0xff]
    %v1836 = vld [vmem:[#allocation2 + $0x4a8] sm:$0xff]
    %v1837 = vld [vmem:[#allocation2 + $0x4b0] sm:$0xff]
    %v1838 = vld [vmem:[#allocation2 + $0x4b8] sm:$0xff]
    %v1839 = vld [vmem:[#allocation2 + $0x4c0] sm:$0xff]
    %v1840 = vld [vmem:[#allocation2 + $0x4c8] sm:$0xff]
    %v1841 = vld [vmem:[#allocation2 + $0x4d0] sm:$0xff]
    %v1842 = vld [vmem:[#allocation2 + $0x4d8] sm:$0xff]
    %v1843 = vld [vmem:[#allocation2 + $0x4e0] sm:$0xff]
    %v1844 = vld [vmem:[#allocation2 + $0x4e8] sm:$0xff]
    %v1845 = vld [vmem:[#allocation2 + $0x4f0] sm:$0xff]
    %v1846 = vld [vmem:[#allocation2 + $0x4f8] sm:$0xff]
    %v1847 = vld [vmem:[#allocation2 + $0x500] sm:$0xff]
    %v1848 = vld [vmem:[#allocation2 + $0x508] sm:$0xff]
    %v1849 = vld [vmem:[#allocation2 + $0x510] sm:$0xff]
    %v1850 = vld [vmem:[#allocation2 + $0x518] sm:$0xff]
    %v1851 = vld [vmem:[#allocation2 + $0x520] sm:$0xff]
    %v1852 = vld [vmem:[#allocation2 + $0x528] sm:$0xff]
    %v1853 = vld [vmem:[#allocation2 + $0x530] sm:$0xff]
    %v1854 = vld [vmem:[#allocation2 + $0x538] sm:$0xff]
    %v1855 = vld [vmem:[#allocation2 + $0x540] sm:$0xff]
    %v1856 = vld [vmem:[#allocation2 + $0x548] sm:$0xff]
    %v1857 = vld [vmem:[#allocation2 + $0x550] sm:$0xff]
    %v1858 = vld [vmem:[#allocation2 + $0x558] sm:$0xff]
    %v1859 = vld [vmem:[#allocation2 + $0x560] sm:$0xff]
    %v1860 = vld [vmem:[#allocation2 + $0x568] sm:$0xff]
    %v1861 = vld [vmem:[#allocation2 + $0x570] sm:$0xff]
    %v1862 = vld [vmem:[#allocation2 + $0x578] sm:$0xff]
    %v1863 = vld [vmem:[#allocation2 + $0x580] sm:$0xff]
    %v1864 = vld [vmem:[#allocation2 + $0x588] sm:$0xff]
    %v1865 = vld [vmem:[#allocation2 + $0x590] sm:$0xff]
    %v1866 = vld [vmem:[#allocation2 + $0x598] sm:$0xff]
    %v1867 = vld [vmem:[#allocation2 + $0x5a0] sm:$0xff]
    %v1868 = vld [vmem:[#allocation2 + $0x5a8] sm:$0xff]
    %v1869 = vld [vmem:[#allocation2 + $0x5b0] sm:$0xff]
    %v1870 = vld [vmem:[#allocation2 + $0x5b8] sm:$0xff]
    %v1871 = vld [vmem:[#allocation2 + $0x5c0] sm:$0xff]
    %v1872 = vld [vmem:[#allocation2 + $0x5c8] sm:$0xff]
    %v1873 = vld [vmem:[#allocation2 + $0x5d0] sm:$0xff]
    %v1874 = vld [vmem:[#allocation2 + $0x5d8] sm:$0xff]
    %v1875 = vld [vmem:[#allocation2 + $0x5e0] sm:$0xff]
    %v1876 = vld [vmem:[#allocation2 + $0x5e8] sm:$0xff]
    %v1877 = vld [vmem:[#allocation2 + $0x5f0] sm:$0xff]
    %v1878 = vld [vmem:[#allocation2 + $0x5f8] sm:$0xff]
    %v1879 = vld [vmem:[#allocation2 + $0x600] sm:$0xff]
    %v1880 = vld [vmem:[#allocation2 + $0x608] sm:$0xff]
    %v1881 = vld [vmem:[#allocation2 + $0x610] sm:$0xff]
    %v1882 = vld [vmem:[#allocation2 + $0x618] sm:$0xff]
    %v1883 = vld [vmem:[#allocation2 + $0x620] sm:$0xff]
    %v1884 = vld [vmem:[#allocation2 + $0x628] sm:$0xff]
    %v1885 = vld [vmem:[#allocation2 + $0x630] sm:$0xff]
    %v1886 = vld [vmem:[#allocation2 + $0x638] sm:$0xff]
    %v1887 = vld [vmem:[#allocation2 + $0x640] sm:$0xff]
    %v1888 = vld [vmem:[#allocation2 + $0x648] sm:$0xff]
    %v1889 = vld [vmem:[#allocation2 + $0x650] sm:$0xff]
    %v1890 = vld [vmem:[#allocation2 + $0x658] sm:$0xff]
    %v1891 = vld [vmem:[#allocation2 + $0x660] sm:$0xff]
    %v1892 = vld [vmem:[#allocation2 + $0x668] sm:$0xff]
    %v1893 = vld [vmem:[#allocation2 + $0x670] sm:$0xff]
    %v1894 = vld [vmem:[#allocation2 + $0x678] sm:$0xff]
    %v1895 = vld [vmem:[#allocation2 + $0x680] sm:$0xff]
    %v1896 = vld [vmem:[#allocation2 + $0x688] sm:$0xff]
    %v1897 = vld [vmem:[#allocation2 + $0x690] sm:$0xff]
    %v1898 = vld [vmem:[#allocation2 + $0x698] sm:$0xff]
    %v1899 = vld [vmem:[#allocation2 + $0x6a0] sm:$0xff]
    %v1900 = vld [vmem:[#allocation2 + $0x6a8] sm:$0xff]
    %v1901 = vld [vmem:[#allocation2 + $0x6b0] sm:$0xff]
    %v1902 = vld [vmem:[#allocation2 + $0x6b8] sm:$0xff]
    %v1903 = vld [vmem:[#allocation2 + $0x6c0] sm:$0xff]
    %v1904 = vld [vmem:[#allocation2 + $0x6c8] sm:$0xff]
    %v1905 = vld [vmem:[#allocation2 + $0x6d0] sm:$0xff]
    %v1906 = vld [vmem:[#allocation2 + $0x6d8] sm:$0xff]
    %v1907 = vld [vmem:[#allocation2 + $0x6e0] sm:$0xff]
    %v1908 = vld [vmem:[#allocation2 + $0x6e8] sm:$0xff]
    %v1909 = vld [vmem:[#allocation2 + $0x6f0] sm:$0xff]
    %v1910 = vld [vmem:[#allocation2 + $0x6f8] sm:$0xff]
    %v1911 = vld [vmem:[#allocation2 + $0x700] sm:$0xff]
    %v1912 = vld [vmem:[#allocation2 + $0x708] sm:$0xff]
    %v1913 = vld [vmem:[#allocation2 + $0x710] sm:$0xff]
    %v1914 = vld [vmem:[#allocation2 + $0x718] sm:$0xff]
    %v1915 = vld [vmem:[#allocation2 + $0x720] sm:$0xff]
    %v1916 = vld [vmem:[#allocation2 + $0x728] sm:$0xff]
    %v1917 = vld [vmem:[#allocation2 + $0x730] sm:$0xff]
    %v1918 = vld [vmem:[#allocation2 + $0x738] sm:$0xff]
    %v1919 = vld [vmem:[#allocation2 + $0x740] sm:$0xff]
    %v1920 = vld [vmem:[#allocation2 + $0x748] sm:$0xff]
    %v1921 = vld [vmem:[#allocation2 + $0x750] sm:$0xff]
    %v1922 = vld [vmem:[#allocation2 + $0x758] sm:$0xff]
    %v1923 = vld [vmem:[#allocation2 + $0x760] sm:$0xff]
    %v1924 = vld [vmem:[#allocation2 + $0x768] sm:$0xff]
    %v1925 = vld [vmem:[#allocation2 + $0x770] sm:$0xff]
    %v1926 = vld [vmem:[#allocation2 + $0x778] sm:$0xff]
    %v1927 = vld [vmem:[#allocation2 + $0x780] sm:$0xff]
    %v1928 = vld [vmem:[#allocation2 + $0x788] sm:$0xff]
    %v1929 = vld [vmem:[#allocation2 + $0x790] sm:$0xff]
    %v1930 = vld [vmem:[#allocation2 + $0x798] sm:$0xff]
    %v1931 = vld [vmem:[#allocation2 + $0x7a0] sm:$0xff]
    %v1932 = vld [vmem:[#allocation2 + $0x7a8] sm:$0xff]
    %v1933 = vld [vmem:[#allocation2 + $0x7b0] sm:$0xff]
    %v1934 = vld [vmem:[#allocation2 + $0x7b8] sm:$0xff]
    %v1935 = vld [vmem:[#allocation2 + $0x7c0] sm:$0xff]
    %v1936 = vld [vmem:[#allocation2 + $0x7c8] sm:$0xff]
    %v1937 = vld [vmem:[#allocation2 + $0x7d0] sm:$0xff]
    %v1938 = vld [vmem:[#allocation2 + $0x7d8] sm:$0xff]
    %v1939 = vld [vmem:[#allocation2 + $0x7e0] sm:$0xff]
    %v1940 = vld [vmem:[#allocation2 + $0x7e8] sm:$0xff]
    %v1941 = vld [vmem:[#allocation2 + $0x7f0] sm:$0xff]
    %v1942 = vld [vmem:[#allocation2 + $0x7f8] sm:$0xff]
    %s1943 = sshll.u32 %s1682, 4
    %1944 = dma.done %s167, %s1943
    %v1945 = vld [vmem:[#allocation4 + $0x10] sm:$0xff]
    %v1946 = vld [vmem:[#allocation4 + $0x18] sm:$0xff]
    %v1947 = vld [vmem:[%s166] sm:$0xff]
    %v1948 = vld [vmem:[%s166 + $0x8] sm:$0xff]
    %v1949 = vld [vmem:[%s166 + $0x10] sm:$0xff]
    %v1950 = vld [vmem:[%s166 + $0x18] sm:$0xff]
    %v1951 = vld [vmem:[%s166 + $0x20] sm:$0xff]
    %v1952 = vld [vmem:[%s166 + $0x28] sm:$0xff]
    %v1953 = vld [vmem:[%s166 + $0x30] sm:$0xff]
    %v1954 = vld [vmem:[%s166 + $0x38] sm:$0xff]
    %v1955 = vld [vmem:[%s166 + $0x40] sm:$0xff]
    %v1956 = vld [vmem:[%s166 + $0x48] sm:$0xff]
    %v1957 = vld [vmem:[%s166 + $0x50] sm:$0xff]
    %v1958 = vld [vmem:[%s166 + $0x58] sm:$0xff]
    %v1959 = vld [vmem:[%s166 + $0x60] sm:$0xff]
    %v1960 = vld [vmem:[%s166 + $0x68] sm:$0xff]
    %v1961 = vld [vmem:[%s166 + $0x70] sm:$0xff]
    %v1962 = vld [vmem:[%s166 + $0x78] sm:$0xff]
    %v1963 = vld [vmem:[%s166 + $0x80] sm:$0xff]
    %v1964 = vld [vmem:[%s166 + $0x88] sm:$0xff]
    %v1965 = vld [vmem:[%s166 + $0x90] sm:$0xff]
    %v1966 = vld [vmem:[%s166 + $0x98] sm:$0xff]
    %v1967 = vld [vmem:[%s166 + $0xa0] sm:$0xff]
    %v1968 = vld [vmem:[%s166 + $0xa8] sm:$0xff]
    %v1969 = vld [vmem:[%s166 + $0xb0] sm:$0xff]
    %v1970 = vld [vmem:[%s166 + $0xb8] sm:$0xff]
    %v1971 = vld [vmem:[%s166 + $0xc0] sm:$0xff]
    %v1972 = vld [vmem:[%s166 + $0xc8] sm:$0xff]
    %v1973 = vld [vmem:[%s166 + $0xd0] sm:$0xff]
    %v1974 = vld [vmem:[%s166 + $0xd8] sm:$0xff]
    %v1975 = vld [vmem:[%s166 + $0xe0] sm:$0xff]
    %v1976 = vld [vmem:[%s166 + $0xe8] sm:$0xff]
    %v1977 = vld [vmem:[%s166 + $0xf0] sm:$0xff]
    %v1978 = vld [vmem:[%s166 + $0xf8] sm:$0xff]
    %v1979 = vld [vmem:[%s166 + $0x100] sm:$0xff]
    %v1980 = vld [vmem:[%s166 + $0x108] sm:$0xff]
    %v1981 = vld [vmem:[%s166 + $0x110] sm:$0xff]
    %v1982 = vld [vmem:[%s166 + $0x118] sm:$0xff]
    %v1983 = vld [vmem:[%s166 + $0x120] sm:$0xff]
    %v1984 = vld [vmem:[%s166 + $0x128] sm:$0xff]
    %v1985 = vld [vmem:[%s166 + $0x130] sm:$0xff]
    %v1986 = vld [vmem:[%s166 + $0x138] sm:$0xff]
    %v1987 = vld [vmem:[%s166 + $0x140] sm:$0xff]
    %v1988 = vld [vmem:[%s166 + $0x148] sm:$0xff]
    %v1989 = vld [vmem:[%s166 + $0x150] sm:$0xff]
    %v1990 = vld [vmem:[%s166 + $0x158] sm:$0xff]
    %v1991 = vld [vmem:[%s166 + $0x160] sm:$0xff]
    %v1992 = vld [vmem:[%s166 + $0x168] sm:$0xff]
    %v1993 = vld [vmem:[%s166 + $0x170] sm:$0xff]
    %v1994 = vld [vmem:[%s166 + $0x178] sm:$0xff]
    %v1995 = vld [vmem:[%s166 + $0x180] sm:$0xff]
    %v1996 = vld [vmem:[%s166 + $0x188] sm:$0xff]
    %v1997 = vld [vmem:[%s166 + $0x190] sm:$0xff]
    %v1998 = vld [vmem:[%s166 + $0x198] sm:$0xff]
    %v1999 = vld [vmem:[%s166 + $0x1a0] sm:$0xff]
    %v2000 = vld [vmem:[%s166 + $0x1a8] sm:$0xff]
    %v2001 = vld [vmem:[%s166 + $0x1b0] sm:$0xff]
    %v2002 = vld [vmem:[%s166 + $0x1b8] sm:$0xff]
    %v2003 = vld [vmem:[%s166 + $0x1c0] sm:$0xff]
    %v2004 = vld [vmem:[%s166 + $0x1c8] sm:$0xff]
    %v2005 = vld [vmem:[%s166 + $0x1d0] sm:$0xff]
    %v2006 = vld [vmem:[%s166 + $0x1d8] sm:$0xff]
    %v2007 = vld [vmem:[%s166 + $0x1e0] sm:$0xff]
    %v2008 = vld [vmem:[%s166 + $0x1e8] sm:$0xff]
    %v2009 = vld [vmem:[%s166 + $0x1f0] sm:$0xff]
    %v2010 = vld [vmem:[%s166 + $0x1f8] sm:$0xff]
    %v2011 = vld [vmem:[%s166 + $0x200] sm:$0xff]
    %v2012 = vld [vmem:[%s166 + $0x208] sm:$0xff]
    %v2013 = vld [vmem:[%s166 + $0x210] sm:$0xff]
    %v2014 = vld [vmem:[%s166 + $0x218] sm:$0xff]
    %v2015 = vld [vmem:[%s166 + $0x220] sm:$0xff]
    %v2016 = vld [vmem:[%s166 + $0x228] sm:$0xff]
    %v2017 = vld [vmem:[%s166 + $0x230] sm:$0xff]
    %v2018 = vld [vmem:[%s166 + $0x238] sm:$0xff]
    %v2019 = vld [vmem:[%s166 + $0x240] sm:$0xff]
    %v2020 = vld [vmem:[%s166 + $0x248] sm:$0xff]
    %v2021 = vld [vmem:[%s166 + $0x250] sm:$0xff]
    %v2022 = vld [vmem:[%s166 + $0x258] sm:$0xff]
    %v2023 = vld [vmem:[%s166 + $0x260] sm:$0xff]
    %v2024 = vld [vmem:[%s166 + $0x268] sm:$0xff]
    %v2025 = vld [vmem:[%s166 + $0x270] sm:$0xff]
    %v2026 = vld [vmem:[%s166 + $0x278] sm:$0xff]
    %v2027 = vld [vmem:[%s166 + $0x280] sm:$0xff]
    %v2028 = vld [vmem:[%s166 + $0x288] sm:$0xff]
    %v2029 = vld [vmem:[%s166 + $0x290] sm:$0xff]
    %v2030 = vld [vmem:[%s166 + $0x298] sm:$0xff]
    %v2031 = vld [vmem:[%s166 + $0x2a0] sm:$0xff]
    %v2032 = vld [vmem:[%s166 + $0x2a8] sm:$0xff]
    %v2033 = vld [vmem:[%s166 + $0x2b0] sm:$0xff]
    %v2034 = vld [vmem:[%s166 + $0x2b8] sm:$0xff]
    %v2035 = vld [vmem:[%s166 + $0x2c0] sm:$0xff]
    %v2036 = vld [vmem:[%s166 + $0x2c8] sm:$0xff]
    %v2037 = vld [vmem:[%s166 + $0x2d0] sm:$0xff]
    %v2038 = vld [vmem:[%s166 + $0x2d8] sm:$0xff]
    %v2039 = vld [vmem:[%s166 + $0x2e0] sm:$0xff]
    %v2040 = vld [vmem:[%s166 + $0x2e8] sm:$0xff]
    %v2041 = vld [vmem:[%s166 + $0x2f0] sm:$0xff]
    %v2042 = vld [vmem:[%s166 + $0x2f8] sm:$0xff]
    %v2043 = vld [vmem:[%s166 + $0x300] sm:$0xff]
    %v2044 = vld [vmem:[%s166 + $0x308] sm:$0xff]
    %v2045 = vld [vmem:[%s166 + $0x310] sm:$0xff]
    %v2046 = vld [vmem:[%s166 + $0x318] sm:$0xff]
    %v2047 = vld [vmem:[%s166 + $0x320] sm:$0xff]
    %v2048 = vld [vmem:[%s166 + $0x328] sm:$0xff]
    %v2049 = vld [vmem:[%s166 + $0x330] sm:$0xff]
    %v2050 = vld [vmem:[%s166 + $0x338] sm:$0xff]
    %v2051 = vld [vmem:[%s166 + $0x340] sm:$0xff]
    %v2052 = vld [vmem:[%s166 + $0x348] sm:$0xff]
    %v2053 = vld [vmem:[%s166 + $0x350] sm:$0xff]
    %v2054 = vld [vmem:[%s166 + $0x358] sm:$0xff]
    %v2055 = vld [vmem:[%s166 + $0x360] sm:$0xff]
    %v2056 = vld [vmem:[%s166 + $0x368] sm:$0xff]
    %v2057 = vld [vmem:[%s166 + $0x370] sm:$0xff]
    %v2058 = vld [vmem:[%s166 + $0x378] sm:$0xff]
    %v2059 = vld [vmem:[%s166 + $0x380] sm:$0xff]
    %v2060 = vld [vmem:[%s166 + $0x388] sm:$0xff]
    %v2061 = vld [vmem:[%s166 + $0x390] sm:$0xff]
    %v2062 = vld [vmem:[%s166 + $0x398] sm:$0xff]
    %v2063 = vld [vmem:[%s166 + $0x3a0] sm:$0xff]
    %v2064 = vld [vmem:[%s166 + $0x3a8] sm:$0xff]
    %v2065 = vld [vmem:[%s166 + $0x3b0] sm:$0xff]
    %v2066 = vld [vmem:[%s166 + $0x3b8] sm:$0xff]
    %v2067 = vld [vmem:[%s166 + $0x3c0] sm:$0xff]
    %v2068 = vld [vmem:[%s166 + $0x3c8] sm:$0xff]
    %v2069 = vld [vmem:[%s166 + $0x3d0] sm:$0xff]
    %v2070 = vld [vmem:[%s166 + $0x3d8] sm:$0xff]
    %v2071 = vld [vmem:[%s166 + $0x3e0] sm:$0xff]
    %v2072 = vld [vmem:[%s166 + $0x3e8] sm:$0xff]
    %v2073 = vld [vmem:[%s166 + $0x3f0] sm:$0xff]
    %v2074 = vld [vmem:[%s166 + $0x3f8] sm:$0xff]
    %v2075 = vld [vmem:[%s166 + $0x400] sm:$0xff]
    %v2076 = vld [vmem:[%s166 + $0x408] sm:$0xff]
    %v2077 = vld [vmem:[%s166 + $0x410] sm:$0xff]
    %v2078 = vld [vmem:[%s166 + $0x418] sm:$0xff]
    %v2079 = vld [vmem:[%s166 + $0x420] sm:$0xff]
    %v2080 = vld [vmem:[%s166 + $0x428] sm:$0xff]
    %v2081 = vld [vmem:[%s166 + $0x430] sm:$0xff]
    %v2082 = vld [vmem:[%s166 + $0x438] sm:$0xff]
    %v2083 = vld [vmem:[%s166 + $0x440] sm:$0xff]
    %v2084 = vld [vmem:[%s166 + $0x448] sm:$0xff]
    %v2085 = vld [vmem:[%s166 + $0x450] sm:$0xff]
    %v2086 = vld [vmem:[%s166 + $0x458] sm:$0xff]
    %v2087 = vld [vmem:[%s166 + $0x460] sm:$0xff]
    %v2088 = vld [vmem:[%s166 + $0x468] sm:$0xff]
    %v2089 = vld [vmem:[%s166 + $0x470] sm:$0xff]
    %v2090 = vld [vmem:[%s166 + $0x478] sm:$0xff]
    %v2091 = vld [vmem:[%s166 + $0x480] sm:$0xff]
    %v2092 = vld [vmem:[%s166 + $0x488] sm:$0xff]
    %v2093 = vld [vmem:[%s166 + $0x490] sm:$0xff]
    %v2094 = vld [vmem:[%s166 + $0x498] sm:$0xff]
    %v2095 = vld [vmem:[%s166 + $0x4a0] sm:$0xff]
    %v2096 = vld [vmem:[%s166 + $0x4a8] sm:$0xff]
    %v2097 = vld [vmem:[%s166 + $0x4b0] sm:$0xff]
    %v2098 = vld [vmem:[%s166 + $0x4b8] sm:$0xff]
    %v2099 = vld [vmem:[%s166 + $0x4c0] sm:$0xff]
    %v2100 = vld [vmem:[%s166 + $0x4c8] sm:$0xff]
    %v2101 = vld [vmem:[%s166 + $0x4d0] sm:$0xff]
    %v2102 = vld [vmem:[%s166 + $0x4d8] sm:$0xff]
    %v2103 = vld [vmem:[%s166 + $0x4e0] sm:$0xff]
    %v2104 = vld [vmem:[%s166 + $0x4e8] sm:$0xff]
    %v2105 = vld [vmem:[%s166 + $0x4f0] sm:$0xff]
    %v2106 = vld [vmem:[%s166 + $0x4f8] sm:$0xff]
    %v2107 = vld [vmem:[%s166 + $0x500] sm:$0xff]
    %v2108 = vld [vmem:[%s166 + $0x508] sm:$0xff]
    %v2109 = vld [vmem:[%s166 + $0x510] sm:$0xff]
    %v2110 = vld [vmem:[%s166 + $0x518] sm:$0xff]
    %v2111 = vld [vmem:[%s166 + $0x520] sm:$0xff]
    %v2112 = vld [vmem:[%s166 + $0x528] sm:$0xff]
    %v2113 = vld [vmem:[%s166 + $0x530] sm:$0xff]
    %v2114 = vld [vmem:[%s166 + $0x538] sm:$0xff]
    %v2115 = vld [vmem:[%s166 + $0x540] sm:$0xff]
    %v2116 = vld [vmem:[%s166 + $0x548] sm:$0xff]
    %v2117 = vld [vmem:[%s166 + $0x550] sm:$0xff]
    %v2118 = vld [vmem:[%s166 + $0x558] sm:$0xff]
    %v2119 = vld [vmem:[%s166 + $0x560] sm:$0xff]
    %v2120 = vld [vmem:[%s166 + $0x568] sm:$0xff]
    %v2121 = vld [vmem:[%s166 + $0x570] sm:$0xff]
    %v2122 = vld [vmem:[%s166 + $0x578] sm:$0xff]
    %v2123 = vld [vmem:[%s166 + $0x580] sm:$0xff]
    %v2124 = vld [vmem:[%s166 + $0x588] sm:$0xff]
    %v2125 = vld [vmem:[%s166 + $0x590] sm:$0xff]
    %v2126 = vld [vmem:[%s166 + $0x598] sm:$0xff]
    %v2127 = vld [vmem:[%s166 + $0x5a0] sm:$0xff]
    %v2128 = vld [vmem:[%s166 + $0x5a8] sm:$0xff]
    %v2129 = vld [vmem:[%s166 + $0x5b0] sm:$0xff]
    %v2130 = vld [vmem:[%s166 + $0x5b8] sm:$0xff]
    %v2131 = vld [vmem:[%s166 + $0x5c0] sm:$0xff]
    %v2132 = vld [vmem:[%s166 + $0x5c8] sm:$0xff]
    %v2133 = vld [vmem:[%s166 + $0x5d0] sm:$0xff]
    %v2134 = vld [vmem:[%s166 + $0x5d8] sm:$0xff]
    %v2135 = vld [vmem:[%s166 + $0x5e0] sm:$0xff]
    %v2136 = vld [vmem:[%s166 + $0x5e8] sm:$0xff]
    %v2137 = vld [vmem:[%s166 + $0x5f0] sm:$0xff]
    %v2138 = vld [vmem:[%s166 + $0x5f8] sm:$0xff]
    %v2139 = vld [vmem:[%s166 + $0x600] sm:$0xff]
    %v2140 = vld [vmem:[%s166 + $0x608] sm:$0xff]
    %v2141 = vld [vmem:[%s166 + $0x610] sm:$0xff]
    %v2142 = vld [vmem:[%s166 + $0x618] sm:$0xff]
    %v2143 = vld [vmem:[%s166 + $0x620] sm:$0xff]
    %v2144 = vld [vmem:[%s166 + $0x628] sm:$0xff]
    %v2145 = vld [vmem:[%s166 + $0x630] sm:$0xff]
    %v2146 = vld [vmem:[%s166 + $0x638] sm:$0xff]
    %v2147 = vld [vmem:[%s166 + $0x640] sm:$0xff]
    %v2148 = vld [vmem:[%s166 + $0x648] sm:$0xff]
    %v2149 = vld [vmem:[%s166 + $0x650] sm:$0xff]
    %v2150 = vld [vmem:[%s166 + $0x658] sm:$0xff]
    %v2151 = vld [vmem:[%s166 + $0x660] sm:$0xff]
    %v2152 = vld [vmem:[%s166 + $0x668] sm:$0xff]
    %v2153 = vld [vmem:[%s166 + $0x670] sm:$0xff]
    %v2154 = vld [vmem:[%s166 + $0x678] sm:$0xff]
    %v2155 = vld [vmem:[%s166 + $0x680] sm:$0xff]
    %v2156 = vld [vmem:[%s166 + $0x688] sm:$0xff]
    %v2157 = vld [vmem:[%s166 + $0x690] sm:$0xff]
    %v2158 = vld [vmem:[%s166 + $0x698] sm:$0xff]
    %v2159 = vld [vmem:[%s166 + $0x6a0] sm:$0xff]
    %v2160 = vld [vmem:[%s166 + $0x6a8] sm:$0xff]
    %v2161 = vld [vmem:[%s166 + $0x6b0] sm:$0xff]
    %v2162 = vld [vmem:[%s166 + $0x6b8] sm:$0xff]
    %v2163 = vld [vmem:[%s166 + $0x6c0] sm:$0xff]
    %v2164 = vld [vmem:[%s166 + $0x6c8] sm:$0xff]
    %v2165 = vld [vmem:[%s166 + $0x6d0] sm:$0xff]
    %v2166 = vld [vmem:[%s166 + $0x6d8] sm:$0xff]
    %v2167 = vld [vmem:[%s166 + $0x6e0] sm:$0xff]
    %v2168 = vld [vmem:[%s166 + $0x6e8] sm:$0xff]
    %v2169 = vld [vmem:[%s166 + $0x6f0] sm:$0xff]
    %v2170 = vld [vmem:[%s166 + $0x6f8] sm:$0xff]
    %v2171 = vld [vmem:[%s166 + $0x700] sm:$0xff]
    %v2172 = vld [vmem:[%s166 + $0x708] sm:$0xff]
    %v2173 = vld [vmem:[%s166 + $0x710] sm:$0xff]
    %v2174 = vld [vmem:[%s166 + $0x718] sm:$0xff]
    %v2175 = vld [vmem:[%s166 + $0x720] sm:$0xff]
    %v2176 = vld [vmem:[%s166 + $0x728] sm:$0xff]
    %v2177 = vld [vmem:[%s166 + $0x730] sm:$0xff]
    %v2178 = vld [vmem:[%s166 + $0x738] sm:$0xff]
    %v2179 = vld [vmem:[%s166 + $0x740] sm:$0xff]
    %v2180 = vld [vmem:[%s166 + $0x748] sm:$0xff]
    %v2181 = vld [vmem:[%s166 + $0x750] sm:$0xff]
    %v2182 = vld [vmem:[%s166 + $0x758] sm:$0xff]
    %v2183 = vld [vmem:[%s166 + $0x760] sm:$0xff]
    %v2184 = vld [vmem:[%s166 + $0x768] sm:$0xff]
    %v2185 = vld [vmem:[%s166 + $0x770] sm:$0xff]
    %v2186 = vld [vmem:[%s166 + $0x778] sm:$0xff]
    %v2187 = vld [vmem:[%s166 + $0x780] sm:$0xff]
    %v2188 = vld [vmem:[%s166 + $0x788] sm:$0xff]
    %v2189 = vld [vmem:[%s166 + $0x790] sm:$0xff]
    %v2190 = vld [vmem:[%s166 + $0x798] sm:$0xff]
    %v2191 = vld [vmem:[%s166 + $0x7a0] sm:$0xff]
    %v2192 = vld [vmem:[%s166 + $0x7a8] sm:$0xff]
    %v2193 = vld [vmem:[%s166 + $0x7b0] sm:$0xff]
    %v2194 = vld [vmem:[%s166 + $0x7b8] sm:$0xff]
    %v2195 = vld [vmem:[%s166 + $0x7c0] sm:$0xff]
    %v2196 = vld [vmem:[%s166 + $0x7c8] sm:$0xff]
    %v2197 = vld [vmem:[%s166 + $0x7d0] sm:$0xff]
    %v2198 = vld [vmem:[%s166 + $0x7d8] sm:$0xff]
    %v2199 = vld [vmem:[%s166 + $0x7e0] sm:$0xff]
    %v2200 = vld [vmem:[%s166 + $0x7e8] sm:$0xff]
    %v2201 = vld [vmem:[%s166 + $0x7f0] sm:$0xff]
    %v2202 = vld [vmem:[%s166 + $0x7f8] sm:$0xff]
    %v2205 = vcombine.high %v1945, %v1945
    %v2207 = vunpack.c.l.s4 1966171168
    %v2208 = vunpack.c.0.s8 %v2207
    %v2209 = vlaneseq
    %v2210 = vshrl.u32 %v2209, 7
    %v2211 = vsub.s32 %v2208, %v2210
    %v2212 = vrot.slane %v1945, %v2211
    %v2214 = vunpack.c.l.s4 1966171168
    %v2215 = vunpack.c.0.s8 %v2214
    %v2216 = vlaneseq
    %v2217 = vshrl.u32 %v2216, 7
    %v2218 = vsub.s32 %v2215, %v2217
    %v2219 = vrot.slane %v2205, %v2218
    %v2220 = vcombine.high %v2212, %v2212
    %v2221 = vcombine.high %v2219, %v2219
    %v2223 = vunpack.c.l.s4 1966171168
    %v2224 = vunpack.c.0.s8 %v2223
    %v2225 = vlaneseq
    %v2226 = vshrl.u32 %v2225, 7
    %v2227 = vsub.s32 %v2224, %v2226
    %v2228 = vrot.slane %v2212, %v2227
    %v2230 = vunpack.c.l.s4 1966171168
    %v2231 = vunpack.c.0.s8 %v2230
    %v2232 = vlaneseq
    %v2233 = vshrl.u32 %v2232, 7
    %v2234 = vsub.s32 %v2231, %v2233
    %v2235 = vrot.slane %v2219, %v2234
    %v2237 = vunpack.c.l.s4 1966171168
    %v2238 = vunpack.c.0.s8 %v2237
    %v2239 = vlaneseq
    %v2240 = vshrl.u32 %v2239, 7
    %v2241 = vsub.s32 %v2238, %v2240
    %v2242 = vrot.slane %v2220, %v2241
    %v2244 = vunpack.c.l.s4 1966171168
    %v2245 = vunpack.c.0.s8 %v2244
    %v2246 = vlaneseq
    %v2247 = vshrl.u32 %v2246, 7
    %v2248 = vsub.s32 %v2245, %v2247
    %v2249 = vrot.slane %v2221, %v2248
    %v2250 = vcombine.high %v2228, %v2228
    %v2251 = vcombine.high %v2235, %v2235
    %v2252 = vcombine.high %v2242, %v2242
    %v2253 = vcombine.high %v2249, %v2249
    %v2254 = vcombine.high %v1946, %v1946
    %v2256 = vunpack.c.l.s4 1966171168
    %v2257 = vunpack.c.0.s8 %v2256
    %v2258 = vlaneseq
    %v2259 = vshrl.u32 %v2258, 7
    %v2260 = vsub.s32 %v2257, %v2259
    %v2261 = vrot.slane %v1946, %v2260
    %v2263 = vunpack.c.l.s4 1966171168
    %v2264 = vunpack.c.0.s8 %v2263
    %v2265 = vlaneseq
    %v2266 = vshrl.u32 %v2265, 7
    %v2267 = vsub.s32 %v2264, %v2266
    %v2268 = vrot.slane %v2254, %v2267
    %v2269 = vcombine.high %v2261, %v2261
    %v2270 = vcombine.high %v2268, %v2268
    %v2272 = vunpack.c.l.s4 1966171168
    %v2273 = vunpack.c.0.s8 %v2272
    %v2274 = vlaneseq
    %v2275 = vshrl.u32 %v2274, 7
    %v2276 = vsub.s32 %v2273, %v2275
    %v2277 = vrot.slane %v2261, %v2276
    %v2279 = vunpack.c.l.s4 1966171168
    %v2280 = vunpack.c.0.s8 %v2279
    %v2281 = vlaneseq
    %v2282 = vshrl.u32 %v2281, 7
    %v2283 = vsub.s32 %v2280, %v2282
    %v2284 = vrot.slane %v2268, %v2283
    %v2286 = vunpack.c.l.s4 1966171168
    %v2287 = vunpack.c.0.s8 %v2286
    %v2288 = vlaneseq
    %v2289 = vshrl.u32 %v2288, 7
    %v2290 = vsub.s32 %v2287, %v2289
    %v2291 = vrot.slane %v2269, %v2290
    %v2293 = vunpack.c.l.s4 1966171168
    %v2294 = vunpack.c.0.s8 %v2293
    %v2295 = vlaneseq
    %v2296 = vshrl.u32 %v2295, 7
    %v2297 = vsub.s32 %v2294, %v2296
    %v2298 = vrot.slane %v2270, %v2297
    %v2299 = vcombine.high %v2277, %v2277
    %v2300 = vcombine.high %v2284, %v2284
    %v2301 = vcombine.high %v2291, %v2291
    %v2302 = vcombine.high %v2298, %v2298
    %2319 = vmatprep.subr.bf16.mxu0 %v1948
    %2320 = vmatpush1.bf16.msra.mxu0 %v1947
    %2321 = vmatprep.subr.bf16.mxu0 %v1950
    %2322 = vmatpush1.bf16.msra.mxu0 %v1949
    %2323 = vmatprep.subr.bf16.mxu0 %v1952
    %2324 = vmatpush1.bf16.msra.mxu0 %v1951
    %2325 = vmatprep.subr.bf16.mxu0 %v1954
    %2326 = vmatpush1.bf16.msra.mxu0 %v1953
    %2327 = vmatprep.subr.bf16.mxu0 %v1956
    %2328 = vmatpush1.bf16.msra.mxu0 %v1955
    %2329 = vmatprep.subr.bf16.mxu0 %v1958
    %2330 = vmatpush1.bf16.msra.mxu0 %v1957
    %2331 = vmatprep.subr.bf16.mxu0 %v1960
    %2332 = vmatpush1.bf16.msra.mxu0 %v1959
    %2333 = vmatprep.subr.bf16.mxu0 %v1962
    %2334 = vmatpush1.bf16.msra.mxu0 %v1961
    %2335 = vmatprep.subr.bf16.mxu0 %v1964
    %2336 = vmatpush1.bf16.msra.mxu0 %v1963
    %2337 = vmatprep.subr.bf16.mxu0 %v1966
    %2338 = vmatpush1.bf16.msra.mxu0 %v1965
    %2339 = vmatprep.subr.bf16.mxu0 %v1968
    %2340 = vmatpush1.bf16.msra.mxu0 %v1967
    %2341 = vmatprep.subr.bf16.mxu0 %v1970
    %2342 = vmatpush1.bf16.msra.mxu0 %v1969
    %2343 = vmatprep.subr.bf16.mxu0 %v1972
    %2344 = vmatpush1.bf16.msra.mxu0 %v1971
    %2345 = vmatprep.subr.bf16.mxu0 %v1974
    %2346 = vmatpush1.bf16.msra.mxu0 %v1973
    %2347 = vmatprep.subr.bf16.mxu0 %v1976
    %2348 = vmatpush1.bf16.msra.mxu0 %v1975
    %2349 = vmatprep.subr.bf16.mxu0 %v1978
    %2350 = vmatpush1.bf16.msra.mxu0 %v1977
    %2351 = vmatprep.mubr.bf16.mxu0 %v2242
    %2352 = vmatmul.mubr.bf16.gmra.mrb[0].mxu0 %v2228
    %v2353 = vpop.f32.mrb[0].mxu0
    %v2354 = vadd.f32 0.0, %v2353
    %v2355 = vpop.f32.mrb[0].mxu0
    %v2356 = vadd.f32 0.0, %v2355
    %v2357 = vpop.f32.mrb[0].mxu0
    %v2358 = vpop.f32.mrb[0].mxu0
    %2359 = vdwg.mxu0
    %2360 = vmatprep.subr.bf16.mxu0 %v1980
    %2361 = vmatpush1.bf16.msra.mxu0 %v1979
    %2362 = vmatprep.subr.bf16.mxu0 %v1982
    %2363 = vmatpush1.bf16.msra.mxu0 %v1981
    %2364 = vmatprep.subr.bf16.mxu0 %v1984
    %2365 = vmatpush1.bf16.msra.mxu0 %v1983
    %2366 = vmatprep.subr.bf16.mxu0 %v1986
    %2367 = vmatpush1.bf16.msra.mxu0 %v1985
    %2368 = vmatprep.subr.bf16.mxu0 %v1988
    %2369 = vmatpush1.bf16.msra.mxu0 %v1987
    %2370 = vmatprep.subr.bf16.mxu0 %v1990
    %2371 = vmatpush1.bf16.msra.mxu0 %v1989
    %2372 = vmatprep.subr.bf16.mxu0 %v1992
    %2373 = vmatpush1.bf16.msra.mxu0 %v1991
    %2374 = vmatprep.subr.bf16.mxu0 %v1994
    %2375 = vmatpush1.bf16.msra.mxu0 %v1993
    %2376 = vmatprep.subr.bf16.mxu0 %v1996
    %2377 = vmatpush1.bf16.msra.mxu0 %v1995
    %2378 = vmatprep.subr.bf16.mxu0 %v1998
    %2379 = vmatpush1.bf16.msra.mxu0 %v1997
    %2380 = vmatprep.subr.bf16.mxu0 %v2000
    %2381 = vmatpush1.bf16.msra.mxu0 %v1999
    %2382 = vmatprep.subr.bf16.mxu0 %v2002
    %2383 = vmatpush1.bf16.msra.mxu0 %v2001
    %2384 = vmatprep.subr.bf16.mxu0 %v2004
    %2385 = vmatpush1.bf16.msra.mxu0 %v2003
    %2386 = vmatprep.subr.bf16.mxu0 %v2006
    %2387 = vmatpush1.bf16.msra.mxu0 %v2005
    %2388 = vmatprep.subr.bf16.mxu0 %v2008
    %2389 = vmatpush1.bf16.msra.mxu0 %v2007
    %2390 = vmatprep.subr.bf16.mxu0 %v2010
    %2391 = vmatpush1.bf16.msra.mxu0 %v2009
    %2392 = vmatprep.mubr.bf16.mxu0 %v2252
    %2393 = vmatmul.mubr.bf16.gmra.mrb[0].mxu0 %v2250
    %v2394 = vpop.f32.mrb[0].mxu0
    %v2395 = vadd.f32 %v2354, %v2394
    %v2396 = vpop.f32.mrb[0].mxu0
    %v2397 = vadd.f32 %v2356, %v2396
    %v2398 = vpop.f32.mrb[0].mxu0
    %v2399 = vpop.f32.mrb[0].mxu0
    %2400 = vdwg.mxu0
    %2401 = vmatprep.subr.bf16.mxu0 %v2012
    %2402 = vmatpush1.bf16.msra.mxu0 %v2011
    %2403 = vmatprep.subr.bf16.mxu0 %v2014
    %2404 = vmatpush1.bf16.msra.mxu0 %v2013
    %2405 = vmatprep.subr.bf16.mxu0 %v2016
    %2406 = vmatpush1.bf16.msra.mxu0 %v2015
    %2407 = vmatprep.subr.bf16.mxu0 %v2018
    %2408 = vmatpush1.bf16.msra.mxu0 %v2017
    %2409 = vmatprep.subr.bf16.mxu0 %v2020
    %2410 = vmatpush1.bf16.msra.mxu0 %v2019
    %2411 = vmatprep.subr.bf16.mxu0 %v2022
    %2412 = vmatpush1.bf16.msra.mxu0 %v2021
    %2413 = vmatprep.subr.bf16.mxu0 %v2024
    %2414 = vmatpush1.bf16.msra.mxu0 %v2023
    %2415 = vmatprep.subr.bf16.mxu0 %v2026
    %2416 = vmatpush1.bf16.msra.mxu0 %v2025
    %2417 = vmatprep.subr.bf16.mxu0 %v2028
    %2418 = vmatpush1.bf16.msra.mxu0 %v2027
    %2419 = vmatprep.subr.bf16.mxu0 %v2030
    %2420 = vmatpush1.bf16.msra.mxu0 %v2029
    %2421 = vmatprep.subr.bf16.mxu0 %v2032
    %2422 = vmatpush1.bf16.msra.mxu0 %v2031
    %2423 = vmatprep.subr.bf16.mxu0 %v2034
    %2424 = vmatpush1.bf16.msra.mxu0 %v2033
    %2425 = vmatprep.subr.bf16.mxu0 %v2036
    %2426 = vmatpush1.bf16.msra.mxu0 %v2035
    %2427 = vmatprep.subr.bf16.mxu0 %v2038
    %2428 = vmatpush1.bf16.msra.mxu0 %v2037
    %2429 = vmatprep.subr.bf16.mxu0 %v2040
    %2430 = vmatpush1.bf16.msra.mxu0 %v2039
    %2431 = vmatprep.subr.bf16.mxu0 %v2042
    %2432 = vmatpush1.bf16.msra.mxu0 %v2041
    %2433 = vmatprep.mubr.bf16.mxu0 %v2249
    %2434 = vmatmul.mubr.bf16.gmra.mrb[0].mxu0 %v2235
    %v2435 = vpop.f32.mrb[0].mxu0
    %v2436 = vadd.f32 %v2395, %v2435
    %v2437 = vpop.f32.mrb[0].mxu0
    %v2438 = vadd.f32 %v2397, %v2437
    %v2439 = vpop.f32.mrb[0].mxu0
    %v2440 = vpop.f32.mrb[0].mxu0
    %2441 = vdwg.mxu0
    %2442 = vmatprep.subr.bf16.mxu0 %v2044
    %2443 = vmatpush1.bf16.msra.mxu0 %v2043
    %2444 = vmatprep.subr.bf16.mxu0 %v2046
    %2445 = vmatpush1.bf16.msra.mxu0 %v2045
    %2446 = vmatprep.subr.bf16.mxu0 %v2048
    %2447 = vmatpush1.bf16.msra.mxu0 %v2047
    %2448 = vmatprep.subr.bf16.mxu0 %v2050
    %2449 = vmatpush1.bf16.msra.mxu0 %v2049
    %2450 = vmatprep.subr.bf16.mxu0 %v2052
    %2451 = vmatpush1.bf16.msra.mxu0 %v2051
    %2452 = vmatprep.subr.bf16.mxu0 %v2054
    %2453 = vmatpush1.bf16.msra.mxu0 %v2053
    %2454 = vmatprep.subr.bf16.mxu0 %v2056
    %2455 = vmatpush1.bf16.msra.mxu0 %v2055
    %2456 = vmatprep.subr.bf16.mxu0 %v2058
    %2457 = vmatpush1.bf16.msra.mxu0 %v2057
    %2458 = vmatprep.subr.bf16.mxu0 %v2060
    %2459 = vmatpush1.bf16.msra.mxu0 %v2059
    %2460 = vmatprep.subr.bf16.mxu0 %v2062
    %2461 = vmatpush1.bf16.msra.mxu0 %v2061
    %2462 = vmatprep.subr.bf16.mxu0 %v2064
    %2463 = vmatpush1.bf16.msra.mxu0 %v2063
    %2464 = vmatprep.subr.bf16.mxu0 %v2066
    %2465 = vmatpush1.bf16.msra.mxu0 %v2065
    %2466 = vmatprep.subr.bf16.mxu0 %v2068
    %2467 = vmatpush1.bf16.msra.mxu0 %v2067
    %2468 = vmatprep.subr.bf16.mxu0 %v2070
    %2469 = vmatpush1.bf16.msra.mxu0 %v2069
    %2470 = vmatprep.subr.bf16.mxu0 %v2072
    %2471 = vmatpush1.bf16.msra.mxu0 %v2071
    %2472 = vmatprep.subr.bf16.mxu0 %v2074
    %2473 = vmatpush1.bf16.msra.mxu0 %v2073
    %2474 = vmatprep.mubr.bf16.mxu0 %v2253
    %2475 = vmatmul.mubr.bf16.gmra.mrb[0].mxu0 %v2251
    %v2476 = vpop.f32.mrb[0].mxu0
    %v2477 = vadd.f32 %v2436, %v2476
    %v2478 = vpop.f32.mrb[0].mxu0
    %v2479 = vadd.f32 %v2438, %v2478
    %v2480 = vpop.f32.mrb[0].mxu0
    %v2481 = vpop.f32.mrb[0].mxu0
    %2482 = vdwg.mxu0
    %2483 = vmatprep.subr.bf16.mxu0 %v2076
    %2484 = vmatpush1.bf16.msra.mxu0 %v2075
    %2485 = vmatprep.subr.bf16.mxu0 %v2078
    %2486 = vmatpush1.bf16.msra.mxu0 %v2077
    %2487 = vmatprep.subr.bf16.mxu0 %v2080
    %2488 = vmatpush1.bf16.msra.mxu0 %v2079
    %2489 = vmatprep.subr.bf16.mxu0 %v2082
    %2490 = vmatpush1.bf16.msra.mxu0 %v2081
    %2491 = vmatprep.subr.bf16.mxu0 %v2084
    %2492 = vmatpush1.bf16.msra.mxu0 %v2083
    %2493 = vmatprep.subr.bf16.mxu0 %v2086
    %2494 = vmatpush1.bf16.msra.mxu0 %v2085
    %2495 = vmatprep.subr.bf16.mxu0 %v2088
    %2496 = vmatpush1.bf16.msra.mxu0 %v2087
    %2497 = vmatprep.subr.bf16.mxu0 %v2090
    %2498 = vmatpush1.bf16.msra.mxu0 %v2089
    %2499 = vmatprep.subr.bf16.mxu0 %v2092
    %2500 = vmatpush1.bf16.msra.mxu0 %v2091
    %2501 = vmatprep.subr.bf16.mxu0 %v2094
    %2502 = vmatpush1.bf16.msra.mxu0 %v2093
    %2503 = vmatprep.subr.bf16.mxu0 %v2096
    %2504 = vmatpush1.bf16.msra.mxu0 %v2095
    %2505 = vmatprep.subr.bf16.mxu0 %v2098
    %2506 = vmatpush1.bf16.msra.mxu0 %v2097
    %2507 = vmatprep.subr.bf16.mxu0 %v2100
    %2508 = vmatpush1.bf16.msra.mxu0 %v2099
    %2509 = vmatprep.subr.bf16.mxu0 %v2102
    %2510 = vmatpush1.bf16.msra.mxu0 %v2101
    %2511 = vmatprep.subr.bf16.mxu0 %v2104
    %2512 = vmatpush1.bf16.msra.mxu0 %v2103
    %2513 = vmatprep.subr.bf16.mxu0 %v2106
    %2514 = vmatpush1.bf16.msra.mxu0 %v2105
    %2515 = vmatprep.mubr.bf16.mxu0 %v2291
    %2516 = vmatmul.mubr.bf16.gmra.mrb[0].mxu0 %v2277
    %v2517 = vpop.f32.mrb[0].mxu0
    %v2518 = vadd.f32 %v2477, %v2517
    %v2519 = vpop.f32.mrb[0].mxu0
    %v2520 = vadd.f32 %v2479, %v2519
    %v2521 = vpop.f32.mrb[0].mxu0
    %v2522 = vpop.f32.mrb[0].mxu0
    %2523 = vdwg.mxu0
    %2524 = vmatprep.subr.bf16.mxu0 %v2108
    %2525 = vmatpush1.bf16.msra.mxu0 %v2107
    %2526 = vmatprep.subr.bf16.mxu0 %v2110
    %2527 = vmatpush1.bf16.msra.mxu0 %v2109
    %2528 = vmatprep.subr.bf16.mxu0 %v2112
    %2529 = vmatpush1.bf16.msra.mxu0 %v2111
    %2530 = vmatprep.subr.bf16.mxu0 %v2114
    %2531 = vmatpush1.bf16.msra.mxu0 %v2113
    %2532 = vmatprep.subr.bf16.mxu0 %v2116
    %2533 = vmatpush1.bf16.msra.mxu0 %v2115
    %2534 = vmatprep.subr.bf16.mxu0 %v2118
    %2535 = vmatpush1.bf16.msra.mxu0 %v2117
    %2536 = vmatprep.subr.bf16.mxu0 %v2120
    %2537 = vmatpush1.bf16.msra.mxu0 %v2119
    %2538 = vmatprep.subr.bf16.mxu0 %v2122
    %2539 = vmatpush1.bf16.msra.mxu0 %v2121
    %2540 = vmatprep.subr.bf16.mxu0 %v2124
    %2541 = vmatpush1.bf16.msra.mxu0 %v2123
    %2542 = vmatprep.subr.bf16.mxu0 %v2126
    %2543 = vmatpush1.bf16.msra.mxu0 %v2125
    %2544 = vmatprep.subr.bf16.mxu0 %v2128
    %2545 = vmatpush1.bf16.msra.mxu0 %v2127
    %2546 = vmatprep.subr.bf16.mxu0 %v2130
    %2547 = vmatpush1.bf16.msra.mxu0 %v2129
    %2548 = vmatprep.subr.bf16.mxu0 %v2132
    %2549 = vmatpush1.bf16.msra.mxu0 %v2131
    %2550 = vmatprep.subr.bf16.mxu0 %v2134
    %2551 = vmatpush1.bf16.msra.mxu0 %v2133
    %2552 = vmatprep.subr.bf16.mxu0 %v2136
    %2553 = vmatpush1.bf16.msra.mxu0 %v2135
    %2554 = vmatprep.subr.bf16.mxu0 %v2138
    %2555 = vmatpush1.bf16.msra.mxu0 %v2137
    %2556 = vmatprep.mubr.bf16.mxu0 %v2301
    %2557 = vmatmul.mubr.bf16.gmra.mrb[0].mxu0 %v2299
    %v2558 = vpop.f32.mrb[0].mxu0
    %v2559 = vadd.f32 %v2518, %v2558
    %v2560 = vpop.f32.mrb[0].mxu0
    %v2561 = vadd.f32 %v2520, %v2560
    %v2562 = vpop.f32.mrb[0].mxu0
    %v2563 = vpop.f32.mrb[0].mxu0
    %2564 = vdwg.mxu0
    %2565 = vmatprep.subr.bf16.mxu0 %v2140
    %2566 = vmatpush1.bf16.msra.mxu0 %v2139
    %2567 = vmatprep.subr.bf16.mxu0 %v2142
    %2568 = vmatpush1.bf16.msra.mxu0 %v2141
    %2569 = vmatprep.subr.bf16.mxu0 %v2144
    %2570 = vmatpush1.bf16.msra.mxu0 %v2143
    %2571 = vmatprep.subr.bf16.mxu0 %v2146
    %2572 = vmatpush1.bf16.msra.mxu0 %v2145
    %2573 = vmatprep.subr.bf16.mxu0 %v2148
    %2574 = vmatpush1.bf16.msra.mxu0 %v2147
    %2575 = vmatprep.subr.bf16.mxu0 %v2150
    %2576 = vmatpush1.bf16.msra.mxu0 %v2149
    %2577 = vmatprep.subr.bf16.mxu0 %v2152
    %2578 = vmatpush1.bf16.msra.mxu0 %v2151
    %2579 = vmatprep.subr.bf16.mxu0 %v2154
    %2580 = vmatpush1.bf16.msra.mxu0 %v2153
    %2581 = vmatprep.subr.bf16.mxu0 %v2156
    %2582 = vmatpush1.bf16.msra.mxu0 %v2155
    %2583 = vmatprep.subr.bf16.mxu0 %v2158
    %2584 = vmatpush1.bf16.msra.mxu0 %v2157
    %2585 = vmatprep.subr.bf16.mxu0 %v2160
    %2586 = vmatpush1.bf16.msra.mxu0 %v2159
    %2587 = vmatprep.subr.bf16.mxu0 %v2162
    %2588 = vmatpush1.bf16.msra.mxu0 %v2161
    %2589 = vmatprep.subr.bf16.mxu0 %v2164
    %2590 = vmatpush1.bf16.msra.mxu0 %v2163
    %2591 = vmatprep.subr.bf16.mxu0 %v2166
    %2592 = vmatpush1.bf16.msra.mxu0 %v2165
    %2593 = vmatprep.subr.bf16.mxu0 %v2168
    %2594 = vmatpush1.bf16.msra.mxu0 %v2167
    %2595 = vmatprep.subr.bf16.mxu0 %v2170
    %2596 = vmatpush1.bf16.msra.mxu0 %v2169
    %2597 = vmatprep.mubr.bf16.mxu0 %v2298
    %2598 = vmatmul.mubr.bf16.gmra.mrb[0].mxu0 %v2284
    %v2599 = vpop.f32.mrb[0].mxu0
    %v2600 = vadd.f32 %v2559, %v2599
    %v2601 = vpop.f32.mrb[0].mxu0
    %v2602 = vadd.f32 %v2561, %v2601
    %v2603 = vpop.f32.mrb[0].mxu0
    %v2604 = vpop.f32.mrb[0].mxu0
    %2605 = vdwg.mxu0
    %2606 = vmatprep.subr.bf16.mxu0 %v2172
    %2607 = vmatpush1.bf16.msra.mxu0 %v2171
    %2608 = vmatprep.subr.bf16.mxu0 %v2174
    %2609 = vmatpush1.bf16.msra.mxu0 %v2173
    %2610 = vmatprep.subr.bf16.mxu0 %v2176
    %2611 = vmatpush1.bf16.msra.mxu0 %v2175
    %2612 = vmatprep.subr.bf16.mxu0 %v2178
    %2613 = vmatpush1.bf16.msra.mxu0 %v2177
    %2614 = vmatprep.subr.bf16.mxu0 %v2180
    %2615 = vmatpush1.bf16.msra.mxu0 %v2179
    %2616 = vmatprep.subr.bf16.mxu0 %v2182
    %2617 = vmatpush1.bf16.msra.mxu0 %v2181
    %2618 = vmatprep.subr.bf16.mxu0 %v2184
    %2619 = vmatpush1.bf16.msra.mxu0 %v2183
    %2620 = vmatprep.subr.bf16.mxu0 %v2186
    %2621 = vmatpush1.bf16.msra.mxu0 %v2185
    %2622 = vmatprep.subr.bf16.mxu0 %v2188
    %2623 = vmatpush1.bf16.msra.mxu0 %v2187
    %2624 = vmatprep.subr.bf16.mxu0 %v2190
    %2625 = vmatpush1.bf16.msra.mxu0 %v2189
    %2626 = vmatprep.subr.bf16.mxu0 %v2192
    %2627 = vmatpush1.bf16.msra.mxu0 %v2191
    %2628 = vmatprep.subr.bf16.mxu0 %v2194
    %2629 = vmatpush1.bf16.msra.mxu0 %v2193
    %2630 = vmatprep.subr.bf16.mxu0 %v2196
    %2631 = vmatpush1.bf16.msra.mxu0 %v2195
    %2632 = vmatprep.subr.bf16.mxu0 %v2198
    %2633 = vmatpush1.bf16.msra.mxu0 %v2197
    %2634 = vmatprep.subr.bf16.mxu0 %v2200
    %2635 = vmatpush1.bf16.msra.mxu0 %v2199
    %2636 = vmatprep.subr.bf16.mxu0 %v2202
    %2637 = vmatpush1.bf16.msra.mxu0 %v2201
    %2638 = vmatprep.mubr.bf16.mxu0 %v2302
    %2639 = vmatmul.mubr.bf16.gmra.mrb[0].mxu0 %v2300
    %v2640 = vpop.f32.mrb[0].mxu0
    %v2641 = vadd.f32 %v2600, %v2640
    %v2642 = vpop.f32.mrb[0].mxu0
    %v2643 = vadd.f32 %v2602, %v2642
    %v2644 = vpop.f32.mrb[0].mxu0
    %v2645 = vpop.f32.mrb[0].mxu0
    %2646 = vdwg.mxu0
    %v2649 = vcombine.high %v1685, %v1685
    %v2651 = vunpack.c.l.s4 1966171168
    %v2652 = vunpack.c.0.s8 %v2651
    %v2653 = vlaneseq
    %v2654 = vshrl.u32 %v2653, 7
    %v2655 = vsub.s32 %v2652, %v2654
    %v2656 = vrot.slane %v1685, %v2655
    %v2658 = vunpack.c.l.s4 1966171168
    %v2659 = vunpack.c.0.s8 %v2658
    %v2660 = vlaneseq
    %v2661 = vshrl.u32 %v2660, 7
    %v2662 = vsub.s32 %v2659, %v2661
    %v2663 = vrot.slane %v2649, %v2662
    %v2664 = vcombine.high %v2656, %v2656
    %v2665 = vcombine.high %v2663, %v2663
    %v2667 = vunpack.c.l.s4 1966171168
    %v2668 = vunpack.c.0.s8 %v2667
    %v2669 = vlaneseq
    %v2670 = vshrl.u32 %v2669, 7
    %v2671 = vsub.s32 %v2668, %v2670
    %v2672 = vrot.slane %v2656, %v2671
    %v2674 = vunpack.c.l.s4 1966171168
    %v2675 = vunpack.c.0.s8 %v2674
    %v2676 = vlaneseq
    %v2677 = vshrl.u32 %v2676, 7
    %v2678 = vsub.s32 %v2675, %v2677
    %v2679 = vrot.slane %v2663, %v2678
    %v2681 = vunpack.c.l.s4 1966171168
    %v2682 = vunpack.c.0.s8 %v2681
    %v2683 = vlaneseq
    %v2684 = vshrl.u32 %v2683, 7
    %v2685 = vsub.s32 %v2682, %v2684
    %v2686 = vrot.slane %v2664, %v2685
    %v2688 = vunpack.c.l.s4 1966171168
    %v2689 = vunpack.c.0.s8 %v2688
    %v2690 = vlaneseq
    %v2691 = vshrl.u32 %v2690, 7
    %v2692 = vsub.s32 %v2689, %v2691
    %v2693 = vrot.slane %v2665, %v2692
    %v2694 = vcombine.high %v2672, %v2672
    %v2695 = vcombine.high %v2679, %v2679
    %v2696 = vcombine.high %v2686, %v2686
    %v2697 = vcombine.high %v2693, %v2693
    %v2698 = vcombine.high %v1686, %v1686
    %v2700 = vunpack.c.l.s4 1966171168
    %v2701 = vunpack.c.0.s8 %v2700
    %v2702 = vlaneseq
    %v2703 = vshrl.u32 %v2702, 7
    %v2704 = vsub.s32 %v2701, %v2703
    %v2705 = vrot.slane %v1686, %v2704
    %v2707 = vunpack.c.l.s4 1966171168
    %v2708 = vunpack.c.0.s8 %v2707
    %v2709 = vlaneseq
    %v2710 = vshrl.u32 %v2709, 7
    %v2711 = vsub.s32 %v2708, %v2710
    %v2712 = vrot.slane %v2698, %v2711
    %v2713 = vcombine.high %v2705, %v2705
    %v2714 = vcombine.high %v2712, %v2712
    %v2716 = vunpack.c.l.s4 1966171168
    %v2717 = vunpack.c.0.s8 %v2716
    %v2718 = vlaneseq
    %v2719 = vshrl.u32 %v2718, 7
    %v2720 = vsub.s32 %v2717, %v2719
    %v2721 = vrot.slane %v2705, %v2720
    %v2723 = vunpack.c.l.s4 1966171168
    %v2724 = vunpack.c.0.s8 %v2723
    %v2725 = vlaneseq
    %v2726 = vshrl.u32 %v2725, 7
    %v2727 = vsub.s32 %v2724, %v2726
    %v2728 = vrot.slane %v2712, %v2727
    %v2730 = vunpack.c.l.s4 1966171168
    %v2731 = vunpack.c.0.s8 %v2730
    %v2732 = vlaneseq
    %v2733 = vshrl.u32 %v2732, 7
    %v2734 = vsub.s32 %v2731, %v2733
    %v2735 = vrot.slane %v2713, %v2734
    %v2737 = vunpack.c.l.s4 1966171168
    %v2738 = vunpack.c.0.s8 %v2737
    %v2739 = vlaneseq
    %v2740 = vshrl.u32 %v2739, 7
    %v2741 = vsub.s32 %v2738, %v2740
    %v2742 = vrot.slane %v2714, %v2741
    %v2743 = vcombine.high %v2721, %v2721
    %v2744 = vcombine.high %v2728, %v2728
    %v2745 = vcombine.high %v2735, %v2735
    %v2746 = vcombine.high %v2742, %v2742
    %2763 = vmatprep.subr.bf16.mxu0 %v1688
    %2764 = vmatpush1.bf16.msra.mxu0 %v1687
    %2765 = vmatprep.subr.bf16.mxu0 %v1690
    %2766 = vmatpush1.bf16.msra.mxu0 %v1689
    %2767 = vmatprep.subr.bf16.mxu0 %v1692
    %2768 = vmatpush1.bf16.msra.mxu0 %v1691
    %2769 = vmatprep.subr.bf16.mxu0 %v1694
    %2770 = vmatpush1.bf16.msra.mxu0 %v1693
    %2771 = vmatprep.subr.bf16.mxu0 %v1696
    %2772 = vmatpush1.bf16.msra.mxu0 %v1695
    %2773 = vmatprep.subr.bf16.mxu0 %v1698
    %2774 = vmatpush1.bf16.msra.mxu0 %v1697
    %2775 = vmatprep.subr.bf16.mxu0 %v1700
    %2776 = vmatpush1.bf16.msra.mxu0 %v1699
    %2777 = vmatprep.subr.bf16.mxu0 %v1702
    %2778 = vmatpush1.bf16.msra.mxu0 %v1701
    %2779 = vmatprep.subr.bf16.mxu0 %v1704
    %2780 = vmatpush1.bf16.msra.mxu0 %v1703
    %2781 = vmatprep.subr.bf16.mxu0 %v1706
    %2782 = vmatpush1.bf16.msra.mxu0 %v1705
    %2783 = vmatprep.subr.bf16.mxu0 %v1708
    %2784 = vmatpush1.bf16.msra.mxu0 %v1707
    %2785 = vmatprep.subr.bf16.mxu0 %v1710
    %2786 = vmatpush1.bf16.msra.mxu0 %v1709
    %2787 = vmatprep.subr.bf16.mxu0 %v1712
    %2788 = vmatpush1.bf16.msra.mxu0 %v1711
    %2789 = vmatprep.subr.bf16.mxu0 %v1714
    %2790 = vmatpush1.bf16.msra.mxu0 %v1713
    %2791 = vmatprep.subr.bf16.mxu0 %v1716
    %2792 = vmatpush1.bf16.msra.mxu0 %v1715
    %2793 = vmatprep.subr.bf16.mxu0 %v1718
    %2794 = vmatpush1.bf16.msra.mxu0 %v1717
    %2795 = vmatprep.mubr.bf16.mxu0 %v2686
    %2796 = vmatmul.mubr.bf16.gmra.mrb[0].mxu0 %v2672
    %v2797 = vpop.f32.mrb[0].mxu0
    %v2798 = vadd.f32 %v2641, %v2797
    %v2799 = vpop.f32.mrb[0].mxu0
    %v2800 = vadd.f32 %v2643, %v2799
    %v2801 = vpop.f32.mrb[0].mxu0
    %v2802 = vpop.f32.mrb[0].mxu0
    %2803 = vdwg.mxu0
    %2804 = vmatprep.subr.bf16.mxu0 %v1720
    %2805 = vmatpush1.bf16.msra.mxu0 %v1719
    %2806 = vmatprep.subr.bf16.mxu0 %v1722
    %2807 = vmatpush1.bf16.msra.mxu0 %v1721
    %2808 = vmatprep.subr.bf16.mxu0 %v1724
    %2809 = vmatpush1.bf16.msra.mxu0 %v1723
    %2810 = vmatprep.subr.bf16.mxu0 %v1726
    %2811 = vmatpush1.bf16.msra.mxu0 %v1725
    %2812 = vmatprep.subr.bf16.mxu0 %v1728
    %2813 = vmatpush1.bf16.msra.mxu0 %v1727
    %2814 = vmatprep.subr.bf16.mxu0 %v1730
    %2815 = vmatpush1.bf16.msra.mxu0 %v1729
    %2816 = vmatprep.subr.bf16.mxu0 %v1732
    %2817 = vmatpush1.bf16.msra.mxu0 %v1731
    %2818 = vmatprep.subr.bf16.mxu0 %v1734
    %2819 = vmatpush1.bf16.msra.mxu0 %v1733
    %2820 = vmatprep.subr.bf16.mxu0 %v1736
    %2821 = vmatpush1.bf16.msra.mxu0 %v1735
    %2822 = vmatprep.subr.bf16.mxu0 %v1738
    %2823 = vmatpush1.bf16.msra.mxu0 %v1737
    %2824 = vmatprep.subr.bf16.mxu0 %v1740
    %2825 = vmatpush1.bf16.msra.mxu0 %v1739
    %2826 = vmatprep.subr.bf16.mxu0 %v1742
    %2827 = vmatpush1.bf16.msra.mxu0 %v1741
    %2828 = vmatprep.subr.bf16.mxu0 %v1744
    %2829 = vmatpush1.bf16.msra.mxu0 %v1743
    %2830 = vmatprep.subr.bf16.mxu0 %v1746
    %2831 = vmatpush1.bf16.msra.mxu0 %v1745
    %2832 = vmatprep.subr.bf16.mxu0 %v1748
    %2833 = vmatpush1.bf16.msra.mxu0 %v1747
    %2834 = vmatprep.subr.bf16.mxu0 %v1750
    %2835 = vmatpush1.bf16.msra.mxu0 %v1749
    %2836 = vmatprep.mubr.bf16.mxu0 %v2696
    %2837 = vmatmul.mubr.bf16.gmra.mrb[0].mxu0 %v2694
    %v2838 = vpop.f32.mrb[0].mxu0
    %v2839 = vadd.f32 %v2798, %v2838
    %v2840 = vpop.f32.mrb[0].mxu0
    %v2841 = vadd.f32 %v2800, %v2840
    %v2842 = vpop.f32.mrb[0].mxu0
    %v2843 = vpop.f32.mrb[0].mxu0
    %2844 = vdwg.mxu0
    %2845 = vmatprep.subr.bf16.mxu0 %v1752
    %2846 = vmatpush1.bf16.msra.mxu0 %v1751
    %2847 = vmatprep.subr.bf16.mxu0 %v1754
    %2848 = vmatpush1.bf16.msra.mxu0 %v1753
    %2849 = vmatprep.subr.bf16.mxu0 %v1756
    %2850 = vmatpush1.bf16.msra.mxu0 %v1755
    %2851 = vmatprep.subr.bf16.mxu0 %v1758
    %2852 = vmatpush1.bf16.msra.mxu0 %v1757
    %2853 = vmatprep.subr.bf16.mxu0 %v1760
    %2854 = vmatpush1.bf16.msra.mxu0 %v1759
    %2855 = vmatprep.subr.bf16.mxu0 %v1762
    %2856 = vmatpush1.bf16.msra.mxu0 %v1761
    %2857 = vmatprep.subr.bf16.mxu0 %v1764
    %2858 = vmatpush1.bf16.msra.mxu0 %v1763
    %2859 = vmatprep.subr.bf16.mxu0 %v1766
    %2860 = vmatpush1.bf16.msra.mxu0 %v1765
    %2861 = vmatprep.subr.bf16.mxu0 %v1768
    %2862 = vmatpush1.bf16.msra.mxu0 %v1767
    %2863 = vmatprep.subr.bf16.mxu0 %v1770
    %2864 = vmatpush1.bf16.msra.mxu0 %v1769
    %2865 = vmatprep.subr.bf16.mxu0 %v1772
    %2866 = vmatpush1.bf16.msra.mxu0 %v1771
    %2867 = vmatprep.subr.bf16.mxu0 %v1774
    %2868 = vmatpush1.bf16.msra.mxu0 %v1773
    %2869 = vmatprep.subr.bf16.mxu0 %v1776
    %2870 = vmatpush1.bf16.msra.mxu0 %v1775
    %2871 = vmatprep.subr.bf16.mxu0 %v1778
    %2872 = vmatpush1.bf16.msra.mxu0 %v1777
    %2873 = vmatprep.subr.bf16.mxu0 %v1780
    %2874 = vmatpush1.bf16.msra.mxu0 %v1779
    %2875 = vmatprep.subr.bf16.mxu0 %v1782
    %2876 = vmatpush1.bf16.msra.mxu0 %v1781
    %2877 = vmatprep.mubr.bf16.mxu0 %v2693
    %2878 = vmatmul.mubr.bf16.gmra.mrb[0].mxu0 %v2679
    %v2879 = vpop.f32.mrb[0].mxu0
    %v2880 = vadd.f32 %v2839, %v2879
    %v2881 = vpop.f32.mrb[0].mxu0
    %v2882 = vadd.f32 %v2841, %v2881
    %v2883 = vpop.f32.mrb[0].mxu0
    %v2884 = vpop.f32.mrb[0].mxu0
    %2885 = vdwg.mxu0
    %2886 = vmatprep.subr.bf16.mxu0 %v1784
    %2887 = vmatpush1.bf16.msra.mxu0 %v1783
    %2888 = vmatprep.subr.bf16.mxu0 %v1786
    %2889 = vmatpush1.bf16.msra.mxu0 %v1785
    %2890 = vmatprep.subr.bf16.mxu0 %v1788
    %2891 = vmatpush1.bf16.msra.mxu0 %v1787
    %2892 = vmatprep.subr.bf16.mxu0 %v1790
    %2893 = vmatpush1.bf16.msra.mxu0 %v1789
    %2894 = vmatprep.subr.bf16.mxu0 %v1792
    %2895 = vmatpush1.bf16.msra.mxu0 %v1791
    %2896 = vmatprep.subr.bf16.mxu0 %v1794
    %2897 = vmatpush1.bf16.msra.mxu0 %v1793
    %2898 = vmatprep.subr.bf16.mxu0 %v1796
    %2899 = vmatpush1.bf16.msra.mxu0 %v1795
    %2900 = vmatprep.subr.bf16.mxu0 %v1798
    %2901 = vmatpush1.bf16.msra.mxu0 %v1797
    %2902 = vmatprep.subr.bf16.mxu0 %v1800
    %2903 = vmatpush1.bf16.msra.mxu0 %v1799
    %2904 = vmatprep.subr.bf16.mxu0 %v1802
    %2905 = vmatpush1.bf16.msra.mxu0 %v1801
    %2906 = vmatprep.subr.bf16.mxu0 %v1804
    %2907 = vmatpush1.bf16.msra.mxu0 %v1803
    %2908 = vmatprep.subr.bf16.mxu0 %v1806
    %2909 = vmatpush1.bf16.msra.mxu0 %v1805
    %2910 = vmatprep.subr.bf16.mxu0 %v1808
    %2911 = vmatpush1.bf16.msra.mxu0 %v1807
    %2912 = vmatprep.subr.bf16.mxu0 %v1810
    %2913 = vmatpush1.bf16.msra.mxu0 %v1809
    %2914 = vmatprep.subr.bf16.mxu0 %v1812
    %2915 = vmatpush1.bf16.msra.mxu0 %v1811
    %2916 = vmatprep.subr.bf16.mxu0 %v1814
    %2917 = vmatpush1.bf16.msra.mxu0 %v1813
    %2918 = vmatprep.mubr.bf16.mxu0 %v2697
    %2919 = vmatmul.mubr.bf16.gmra.mrb[0].mxu0 %v2695
    %v2920 = vpop.f32.mrb[0].mxu0
    %v2921 = vadd.f32 %v2880, %v2920
    %v2922 = vpop.f32.mrb[0].mxu0
    %v2923 = vadd.f32 %v2882, %v2922
    %v2924 = vpop.f32.mrb[0].mxu0
    %v2925 = vpop.f32.mrb[0].mxu0
    %2926 = vdwg.mxu0
    %2927 = vmatprep.subr.bf16.mxu0 %v1816
    %2928 = vmatpush1.bf16.msra.mxu0 %v1815
    %2929 = vmatprep.subr.bf16.mxu0 %v1818
    %2930 = vmatpush1.bf16.msra.mxu0 %v1817
    %2931 = vmatprep.subr.bf16.mxu0 %v1820
    %2932 = vmatpush1.bf16.msra.mxu0 %v1819
    %2933 = vmatprep.subr.bf16.mxu0 %v1822
    %2934 = vmatpush1.bf16.msra.mxu0 %v1821
    %2935 = vmatprep.subr.bf16.mxu0 %v1824
    %2936 = vmatpush1.bf16.msra.mxu0 %v1823
    %2937 = vmatprep.subr.bf16.mxu0 %v1826
    %2938 = vmatpush1.bf16.msra.mxu0 %v1825
    %2939 = vmatprep.subr.bf16.mxu0 %v1828
    %2940 = vmatpush1.bf16.msra.mxu0 %v1827
    %2941 = vmatprep.subr.bf16.mxu0 %v1830
    %2942 = vmatpush1.bf16.msra.mxu0 %v1829
    %2943 = vmatprep.subr.bf16.mxu0 %v1832
    %2944 = vmatpush1.bf16.msra.mxu0 %v1831
    %2945 = vmatprep.subr.bf16.mxu0 %v1834
    %2946 = vmatpush1.bf16.msra.mxu0 %v1833
    %2947 = vmatprep.subr.bf16.mxu0 %v1836
    %2948 = vmatpush1.bf16.msra.mxu0 %v1835
    %2949 = vmatprep.subr.bf16.mxu0 %v1838
    %2950 = vmatpush1.bf16.msra.mxu0 %v1837
    %2951 = vmatprep.subr.bf16.mxu0 %v1840
    %2952 = vmatpush1.bf16.msra.mxu0 %v1839
    %2953 = vmatprep.subr.bf16.mxu0 %v1842
    %2954 = vmatpush1.bf16.msra.mxu0 %v1841
    %2955 = vmatprep.subr.bf16.mxu0 %v1844
    %2956 = vmatpush1.bf16.msra.mxu0 %v1843
    %2957 = vmatprep.subr.bf16.mxu0 %v1846
    %2958 = vmatpush1.bf16.msra.mxu0 %v1845
    %2959 = vmatprep.mubr.bf16.mxu0 %v2735
    %2960 = vmatmul.mubr.bf16.gmra.mrb[0].mxu0 %v2721
    %v2961 = vpop.f32.mrb[0].mxu0
    %v2962 = vadd.f32 %v2921, %v2961
    %v2963 = vpop.f32.mrb[0].mxu0
    %v2964 = vadd.f32 %v2923, %v2963
    %v2965 = vpop.f32.mrb[0].mxu0
    %v2966 = vpop.f32.mrb[0].mxu0
    %2967 = vdwg.mxu0
    %2968 = vmatprep.subr.bf16.mxu0 %v1848
    %2969 = vmatpush1.bf16.msra.mxu0 %v1847
    %2970 = vmatprep.subr.bf16.mxu0 %v1850
    %2971 = vmatpush1.bf16.msra.mxu0 %v1849
    %2972 = vmatprep.subr.bf16.mxu0 %v1852
    %2973 = vmatpush1.bf16.msra.mxu0 %v1851
    %2974 = vmatprep.subr.bf16.mxu0 %v1854
    %2975 = vmatpush1.bf16.msra.mxu0 %v1853
    %2976 = vmatprep.subr.bf16.mxu0 %v1856
    %2977 = vmatpush1.bf16.msra.mxu0 %v1855
    %2978 = vmatprep.subr.bf16.mxu0 %v1858
    %2979 = vmatpush1.bf16.msra.mxu0 %v1857
    %2980 = vmatprep.subr.bf16.mxu0 %v1860
    %2981 = vmatpush1.bf16.msra.mxu0 %v1859
    %2982 = vmatprep.subr.bf16.mxu0 %v1862
    %2983 = vmatpush1.bf16.msra.mxu0 %v1861
    %2984 = vmatprep.subr.bf16.mxu0 %v1864
    %2985 = vmatpush1.bf16.msra.mxu0 %v1863
    %2986 = vmatprep.subr.bf16.mxu0 %v1866
    %2987 = vmatpush1.bf16.msra.mxu0 %v1865
    %2988 = vmatprep.subr.bf16.mxu0 %v1868
    %2989 = vmatpush1.bf16.msra.mxu0 %v1867
    %2990 = vmatprep.subr.bf16.mxu0 %v1870
    %2991 = vmatpush1.bf16.msra.mxu0 %v1869
    %2992 = vmatprep.subr.bf16.mxu0 %v1872
    %2993 = vmatpush1.bf16.msra.mxu0 %v1871
    %2994 = vmatprep.subr.bf16.mxu0 %v1874
    %2995 = vmatpush1.bf16.msra.mxu0 %v1873
    %2996 = vmatprep.subr.bf16.mxu0 %v1876
    %2997 = vmatpush1.bf16.msra.mxu0 %v1875
    %2998 = vmatprep.subr.bf16.mxu0 %v1878
    %2999 = vmatpush1.bf16.msra.mxu0 %v1877
    %3000 = vmatprep.mubr.bf16.mxu0 %v2745
    %3001 = vmatmul.mubr.bf16.gmra.mrb[0].mxu0 %v2743
    %v3002 = vpop.f32.mrb[0].mxu0
    %v3003 = vadd.f32 %v2962, %v3002
    %v3004 = vpop.f32.mrb[0].mxu0
    %v3005 = vadd.f32 %v2964, %v3004
    %v3006 = vpop.f32.mrb[0].mxu0
    %v3007 = vpop.f32.mrb[0].mxu0
    %3008 = vdwg.mxu0
    %3009 = vmatprep.subr.bf16.mxu0 %v1880
    %3010 = vmatpush1.bf16.msra.mxu0 %v1879
    %3011 = vmatprep.subr.bf16.mxu0 %v1882
    %3012 = vmatpush1.bf16.msra.mxu0 %v1881
    %3013 = vmatprep.subr.bf16.mxu0 %v1884
    %3014 = vmatpush1.bf16.msra.mxu0 %v1883
    %3015 = vmatprep.subr.bf16.mxu0 %v1886
    %3016 = vmatpush1.bf16.msra.mxu0 %v1885
    %3017 = vmatprep.subr.bf16.mxu0 %v1888
    %3018 = vmatpush1.bf16.msra.mxu0 %v1887
    %3019 = vmatprep.subr.bf16.mxu0 %v1890
    %3020 = vmatpush1.bf16.msra.mxu0 %v1889
    %3021 = vmatprep.subr.bf16.mxu0 %v1892
    %3022 = vmatpush1.bf16.msra.mxu0 %v1891
    %3023 = vmatprep.subr.bf16.mxu0 %v1894
    %3024 = vmatpush1.bf16.msra.mxu0 %v1893
    %3025 = vmatprep.subr.bf16.mxu0 %v1896
    %3026 = vmatpush1.bf16.msra.mxu0 %v1895
    %3027 = vmatprep.subr.bf16.mxu0 %v1898
    %3028 = vmatpush1.bf16.msra.mxu0 %v1897
    %3029 = vmatprep.subr.bf16.mxu0 %v1900
    %3030 = vmatpush1.bf16.msra.mxu0 %v1899
    %3031 = vmatprep.subr.bf16.mxu0 %v1902
    %3032 = vmatpush1.bf16.msra.mxu0 %v1901
    %3033 = vmatprep.subr.bf16.mxu0 %v1904
    %3034 = vmatpush1.bf16.msra.mxu0 %v1903
    %3035 = vmatprep.subr.bf16.mxu0 %v1906
    %3036 = vmatpush1.bf16.msra.mxu0 %v1905
    %3037 = vmatprep.subr.bf16.mxu0 %v1908
    %3038 = vmatpush1.bf16.msra.mxu0 %v1907
    %3039 = vmatprep.subr.bf16.mxu0 %v1910
    %3040 = vmatpush1.bf16.msra.mxu0 %v1909
    %3041 = vmatprep.mubr.bf16.mxu0 %v2742
    %3042 = vmatmul.mubr.bf16.gmra.mrb[0].mxu0 %v2728
    %v3043 = vpop.f32.mrb[0].mxu0
    %v3044 = vadd.f32 %v3003, %v3043
    %v3045 = vpop.f32.mrb[0].mxu0
    %v3046 = vadd.f32 %v3005, %v3045
    %v3047 = vpop.f32.mrb[0].mxu0
    %v3048 = vpop.f32.mrb[0].mxu0
    %3049 = vdwg.mxu0
    %3050 = vmatprep.subr.bf16.mxu0 %v1912
    %3051 = vmatpush1.bf16.msra.mxu0 %v1911
    %3052 = vmatprep.subr.bf16.mxu0 %v1914
    %3053 = vmatpush1.bf16.msra.mxu0 %v1913
    %3054 = vmatprep.subr.bf16.mxu0 %v1916
    %3055 = vmatpush1.bf16.msra.mxu0 %v1915
    %3056 = vmatprep.subr.bf16.mxu0 %v1918
    %3057 = vmatpush1.bf16.msra.mxu0 %v1917
    %3058 = vmatprep.subr.bf16.mxu0 %v1920
    %3059 = vmatpush1.bf16.msra.mxu0 %v1919
    %3060 = vmatprep.subr.bf16.mxu0 %v1922
    %3061 = vmatpush1.bf16.msra.mxu0 %v1921
    %3062 = vmatprep.subr.bf16.mxu0 %v1924
    %3063 = vmatpush1.bf16.msra.mxu0 %v1923
    %3064 = vmatprep.subr.bf16.mxu0 %v1926
    %3065 = vmatpush1.bf16.msra.mxu0 %v1925
    %3066 = vmatprep.subr.bf16.mxu0 %v1928
    %3067 = vmatpush1.bf16.msra.mxu0 %v1927
    %3068 = vmatprep.subr.bf16.mxu0 %v1930
    %3069 = vmatpush1.bf16.msra.mxu0 %v1929
    %3070 = vmatprep.subr.bf16.mxu0 %v1932
    %3071 = vmatpush1.bf16.msra.mxu0 %v1931
    %3072 = vmatprep.subr.bf16.mxu0 %v1934
    %3073 = vmatpush1.bf16.msra.mxu0 %v1933
    %3074 = vmatprep.subr.bf16.mxu0 %v1936
    %3075 = vmatpush1.bf16.msra.mxu0 %v1935
    %3076 = vmatprep.subr.bf16.mxu0 %v1938
    %3077 = vmatpush1.bf16.msra.mxu0 %v1937
    %3078 = vmatprep.subr.bf16.mxu0 %v1940
    %3079 = vmatpush1.bf16.msra.mxu0 %v1939
    %3080 = vmatprep.subr.bf16.mxu0 %v1942
    %3081 = vmatpush1.bf16.msra.mxu0 %v1941
    %3082 = vmatprep.mubr.bf16.mxu0 %v2746
    %3083 = vmatmul.mubr.bf16.gmra.mrb[0].mxu0 %v2744
    %v3084 = vpop.f32.mrb[0].mxu0
    %v3085 = vadd.f32 %v3044, %v3084
    %v3086 = vpop.f32.mrb[0].mxu0
    %v3087 = vadd.f32 %v3046, %v3086
    %v3088 = vpop.f32.mrb[0].mxu0
    %v3089 = vpop.f32.mrb[0].mxu0
    %3090 = vdwg.mxu0
    %s3091 = sshll.u32 %s1682, 4
    %3092 = dma.done %s204, %s3091
    %v3093 = vld [vmem:[#allocation4 + $0x20] sm:$0xff]
    %v3094 = vld [vmem:[#allocation4 + $0x28] sm:$0xff]
    %v3095 = vld [vmem:[%s203] sm:$0xff]
    %v3096 = vld [vmem:[%s203 + $0x8] sm:$0xff]
    %v3097 = vld [vmem:[%s203 + $0x10] sm:$0xff]
    %v3098 = vld [vmem:[%s203 + $0x18] sm:$0xff]
    %v3099 = vld [vmem:[%s203 + $0x20] sm:$0xff]
    %v3100 = vld [vmem:[%s203 + $0x28] sm:$0xff]
    %v3101 = vld [vmem:[%s203 + $0x30] sm:$0xff]
    %v3102 = vld [vmem:[%s203 + $0x38] sm:$0xff]
    %v3103 = vld [vmem:[%s203 + $0x40] sm:$0xff]
    %v3104 = vld [vmem:[%s203 + $0x48] sm:$0xff]
    %v3105 = vld [vmem:[%s203 + $0x50] sm:$0xff]
    %v3106 = vld [vmem:[%s203 + $0x58] sm:$0xff]
    %v3107 = vld [vmem:[%s203 + $0x60] sm:$0xff]
    %v3108 = vld [vmem:[%s203 + $0x68] sm:$0xff]
    %v3109 = vld [vmem:[%s203 + $0x70] sm:$0xff]
    %v3110 = vld [vmem:[%s203 + $0x78] sm:$0xff]
    %v3111 = vld [vmem:[%s203 + $0x80] sm:$0xff]
    %v3112 = vld [vmem:[%s203 + $0x88] sm:$0xff]
    %v3113 = vld [vmem:[%s203 + $0x90] sm:$0xff]
    %v3114 = vld [vmem:[%s203 + $0x98] sm:$0xff]
    %v3115 = vld [vmem:[%s203 + $0xa0] sm:$0xff]
    %v3116 = vld [vmem:[%s203 + $0xa8] sm:$0xff]
    %v3117 = vld [vmem:[%s203 + $0xb0] sm:$0xff]
    %v3118 = vld [vmem:[%s203 + $0xb8] sm:$0xff]
    %v3119 = vld [vmem:[%s203 + $0xc0] sm:$0xff]
    %v3120 = vld [vmem:[%s203 + $0xc8] sm:$0xff]
    %v3121 = vld [vmem:[%s203 + $0xd0] sm:$0xff]
    %v3122 = vld [vmem:[%s203 + $0xd8] sm:$0xff]
    %v3123 = vld [vmem:[%s203 + $0xe0] sm:$0xff]
    %v3124 = vld [vmem:[%s203 + $0xe8] sm:$0xff]
    %v3125 = vld [vmem:[%s203 + $0xf0] sm:$0xff]
    %v3126 = vld [vmem:[%s203 + $0xf8] sm:$0xff]
    %v3127 = vld [vmem:[%s203 + $0x100] sm:$0xff]
    %v3128 = vld [vmem:[%s203 + $0x108] sm:$0xff]
    %v3129 = vld [vmem:[%s203 + $0x110] sm:$0xff]
    %v3130 = vld [vmem:[%s203 + $0x118] sm:$0xff]
    %v3131 = vld [vmem:[%s203 + $0x120] sm:$0xff]
    %v3132 = vld [vmem:[%s203 + $0x128] sm:$0xff]
    %v3133 = vld [vmem:[%s203 + $0x130] sm:$0xff]
    %v3134 = vld [vmem:[%s203 + $0x138] sm:$0xff]
    %v3135 = vld [vmem:[%s203 + $0x140] sm:$0xff]
    %v3136 = vld [vmem:[%s203 + $0x148] sm:$0xff]
    %v3137 = vld [vmem:[%s203 + $0x150] sm:$0xff]
    %v3138 = vld [vmem:[%s203 + $0x158] sm:$0xff]
    %v3139 = vld [vmem:[%s203 + $0x160] sm:$0xff]
    %v3140 = vld [vmem:[%s203 + $0x168] sm:$0xff]
    %v3141 = vld [vmem:[%s203 + $0x170] sm:$0xff]
    %v3142 = vld [vmem:[%s203 + $0x178] sm:$0xff]
    %v3143 = vld [vmem:[%s203 + $0x180] sm:$0xff]
    %v3144 = vld [vmem:[%s203 + $0x188] sm:$0xff]
    %v3145 = vld [vmem:[%s203 + $0x190] sm:$0xff]
    %v3146 = vld [vmem:[%s203 + $0x198] sm:$0xff]
    %v3147 = vld [vmem:[%s203 + $0x1a0] sm:$0xff]
    %v3148 = vld [vmem:[%s203 + $0x1a8] sm:$0xff]
    %v3149 = vld [vmem:[%s203 + $0x1b0] sm:$0xff]
    %v3150 = vld [vmem:[%s203 + $0x1b8] sm:$0xff]
    %v3151 = vld [vmem:[%s203 + $0x1c0] sm:$0xff]
    %v3152 = vld [vmem:[%s203 + $0x1c8] sm:$0xff]
    %v3153 = vld [vmem:[%s203 + $0x1d0] sm:$0xff]
    %v3154 = vld [vmem:[%s203 + $0x1d8] sm:$0xff]
    %v3155 = vld [vmem:[%s203 + $0x1e0] sm:$0xff]
    %v3156 = vld [vmem:[%s203 + $0x1e8] sm:$0xff]
    %v3157 = vld [vmem:[%s203 + $0x1f0] sm:$0xff]
    %v3158 = vld [vmem:[%s203 + $0x1f8] sm:$0xff]
    %v3159 = vld [vmem:[%s203 + $0x200] sm:$0xff]
    %v3160 = vld [vmem:[%s203 + $0x208] sm:$0xff]
    %v3161 = vld [vmem:[%s203 + $0x210] sm:$0xff]
    %v3162 = vld [vmem:[%s203 + $0x218] sm:$0xff]
    %v3163 = vld [vmem:[%s203 + $0x220] sm:$0xff]
    %v3164 = vld [vmem:[%s203 + $0x228] sm:$0xff]
    %v3165 = vld [vmem:[%s203 + $0x230] sm:$0xff]
    %v3166 = vld [vmem:[%s203 + $0x238] sm:$0xff]
    %v3167 = vld [vmem:[%s203 + $0x240] sm:$0xff]
    %v3168 = vld [vmem:[%s203 + $0x248] sm:$0xff]
    %v3169 = vld [vmem:[%s203 + $0x250] sm:$0xff]
    %v3170 = vld [vmem:[%s203 + $0x258] sm:$0xff]
    %v3171 = vld [vmem:[%s203 + $0x260] sm:$0xff]
    %v3172 = vld [vmem:[%s203 + $0x268] sm:$0xff]
    %v3173 = vld [vmem:[%s203 + $0x270] sm:$0xff]
    %v3174 = vld [vmem:[%s203 + $0x278] sm:$0xff]
    %v3175 = vld [vmem:[%s203 + $0x280] sm:$0xff]
    %v3176 = vld [vmem:[%s203 + $0x288] sm:$0xff]
    %v3177 = vld [vmem:[%s203 + $0x290] sm:$0xff]
    %v3178 = vld [vmem:[%s203 + $0x298] sm:$0xff]
    %v3179 = vld [vmem:[%s203 + $0x2a0] sm:$0xff]
    %v3180 = vld [vmem:[%s203 + $0x2a8] sm:$0xff]
    %v3181 = vld [vmem:[%s203 + $0x2b0] sm:$0xff]
    %v3182 = vld [vmem:[%s203 + $0x2b8] sm:$0xff]
    %v3183 = vld [vmem:[%s203 + $0x2c0] sm:$0xff]
    %v3184 = vld [vmem:[%s203 + $0x2c8] sm:$0xff]
    %v3185 = vld [vmem:[%s203 + $0x2d0] sm:$0xff]
    %v3186 = vld [vmem:[%s203 + $0x2d8] sm:$0xff]
    %v3187 = vld [vmem:[%s203 + $0x2e0] sm:$0xff]
    %v3188 = vld [vmem:[%s203 + $0x2e8] sm:$0xff]
    %v3189 = vld [vmem:[%s203 + $0x2f0] sm:$0xff]
    %v3190 = vld [vmem:[%s203 + $0x2f8] sm:$0xff]
    %v3191 = vld [vmem:[%s203 + $0x300] sm:$0xff]
    %v3192 = vld [vmem:[%s203 + $0x308] sm:$0xff]
    %v3193 = vld [vmem:[%s203 + $0x310] sm:$0xff]
    %v3194 = vld [vmem:[%s203 + $0x318] sm:$0xff]
    %v3195 = vld [vmem:[%s203 + $0x320] sm:$0xff]
    %v3196 = vld [vmem:[%s203 + $0x328] sm:$0xff]
    %v3197 = vld [vmem:[%s203 + $0x330] sm:$0xff]
    %v3198 = vld [vmem:[%s203 + $0x338] sm:$0xff]
    %v3199 = vld [vmem:[%s203 + $0x340] sm:$0xff]
    %v3200 = vld [vmem:[%s203 + $0x348] sm:$0xff]
    %v3201 = vld [vmem:[%s203 + $0x350] sm:$0xff]
    %v3202 = vld [vmem:[%s203 + $0x358] sm:$0xff]
    %v3203 = vld [vmem:[%s203 + $0x360] sm:$0xff]
    %v3204 = vld [vmem:[%s203 + $0x368] sm:$0xff]
    %v3205 = vld [vmem:[%s203 + $0x370] sm:$0xff]
    %v3206 = vld [vmem:[%s203 + $0x378] sm:$0xff]
    %v3207 = vld [vmem:[%s203 + $0x380] sm:$0xff]
    %v3208 = vld [vmem:[%s203 + $0x388] sm:$0xff]
    %v3209 = vld [vmem:[%s203 + $0x390] sm:$0xff]
    %v3210 = vld [vmem:[%s203 + $0x398] sm:$0xff]
    %v3211 = vld [vmem:[%s203 + $0x3a0] sm:$0xff]
    %v3212 = vld [vmem:[%s203 + $0x3a8] sm:$0xff]
    %v3213 = vld [vmem:[%s203 + $0x3b0] sm:$0xff]
    %v3214 = vld [vmem:[%s203 + $0x3b8] sm:$0xff]
    %v3215 = vld [vmem:[%s203 + $0x3c0] sm:$0xff]
    %v3216 = vld [vmem:[%s203 + $0x3c8] sm:$0xff]
    %v3217 = vld [vmem:[%s203 + $0x3d0] sm:$0xff]
    %v3218 = vld [vmem:[%s203 + $0x3d8] sm:$0xff]
    %v3219 = vld [vmem:[%s203 + $0x3e0] sm:$0xff]
    %v3220 = vld [vmem:[%s203 + $0x3e8] sm:$0xff]
    %v3221 = vld [vmem:[%s203 + $0x3f0] sm:$0xff]
    %v3222 = vld [vmem:[%s203 + $0x3f8] sm:$0xff]
    %v3223 = vld [vmem:[%s203 + $0x400] sm:$0xff]
    %v3224 = vld [vmem:[%s203 + $0x408] sm:$0xff]
    %v3225 = vld [vmem:[%s203 + $0x410] sm:$0xff]
    %v3226 = vld [vmem:[%s203 + $0x418] sm:$0xff]
    %v3227 = vld [vmem:[%s203 + $0x420] sm:$0xff]
    %v3228 = vld [vmem:[%s203 + $0x428] sm:$0xff]
    %v3229 = vld [vmem:[%s203 + $0x430] sm:$0xff]
    %v3230 = vld [vmem:[%s203 + $0x438] sm:$0xff]
    %v3231 = vld [vmem:[%s203 + $0x440] sm:$0xff]
    %v3232 = vld [vmem:[%s203 + $0x448] sm:$0xff]
    %v3233 = vld [vmem:[%s203 + $0x450] sm:$0xff]
    %v3234 = vld [vmem:[%s203 + $0x458] sm:$0xff]
    %v3235 = vld [vmem:[%s203 + $0x460] sm:$0xff]
    %v3236 = vld [vmem:[%s203 + $0x468] sm:$0xff]
    %v3237 = vld [vmem:[%s203 + $0x470] sm:$0xff]
    %v3238 = vld [vmem:[%s203 + $0x478] sm:$0xff]
    %v3239 = vld [vmem:[%s203 + $0x480] sm:$0xff]
    %v3240 = vld [vmem:[%s203 + $0x488] sm:$0xff]
    %v3241 = vld [vmem:[%s203 + $0x490] sm:$0xff]
    %v3242 = vld [vmem:[%s203 + $0x498] sm:$0xff]
    %v3243 = vld [vmem:[%s203 + $0x4a0] sm:$0xff]
    %v3244 = vld [vmem:[%s203 + $0x4a8] sm:$0xff]
    %v3245 = vld [vmem:[%s203 + $0x4b0] sm:$0xff]
    %v3246 = vld [vmem:[%s203 + $0x4b8] sm:$0xff]
    %v3247 = vld [vmem:[%s203 + $0x4c0] sm:$0xff]
    %v3248 = vld [vmem:[%s203 + $0x4c8] sm:$0xff]
    %v3249 = vld [vmem:[%s203 + $0x4d0] sm:$0xff]
    %v3250 = vld [vmem:[%s203 + $0x4d8] sm:$0xff]
    %v3251 = vld [vmem:[%s203 + $0x4e0] sm:$0xff]
    %v3252 = vld [vmem:[%s203 + $0x4e8] sm:$0xff]
    %v3253 = vld [vmem:[%s203 + $0x4f0] sm:$0xff]
    %v3254 = vld [vmem:[%s203 + $0x4f8] sm:$0xff]
    %v3255 = vld [vmem:[%s203 + $0x500] sm:$0xff]
    %v3256 = vld [vmem:[%s203 + $0x508] sm:$0xff]
    %v3257 = vld [vmem:[%s203 + $0x510] sm:$0xff]
    %v3258 = vld [vmem:[%s203 + $0x518] sm:$0xff]
    %v3259 = vld [vmem:[%s203 + $0x520] sm:$0xff]
    %v3260 = vld [vmem:[%s203 + $0x528] sm:$0xff]
    %v3261 = vld [vmem:[%s203 + $0x530] sm:$0xff]
    %v3262 = vld [vmem:[%s203 + $0x538] sm:$0xff]
    %v3263 = vld [vmem:[%s203 + $0x540] sm:$0xff]
    %v3264 = vld [vmem:[%s203 + $0x548] sm:$0xff]
    %v3265 = vld [vmem:[%s203 + $0x550] sm:$0xff]
    %v3266 = vld [vmem:[%s203 + $0x558] sm:$0xff]
    %v3267 = vld [vmem:[%s203 + $0x560] sm:$0xff]
    %v3268 = vld [vmem:[%s203 + $0x568] sm:$0xff]
    %v3269 = vld [vmem:[%s203 + $0x570] sm:$0xff]
    %v3270 = vld [vmem:[%s203 + $0x578] sm:$0xff]
    %v3271 = vld [vmem:[%s203 + $0x580] sm:$0xff]
    %v3272 = vld [vmem:[%s203 + $0x588] sm:$0xff]
    %v3273 = vld [vmem:[%s203 + $0x590] sm:$0xff]
    %v3274 = vld [vmem:[%s203 + $0x598] sm:$0xff]
    %v3275 = vld [vmem:[%s203 + $0x5a0] sm:$0xff]
    %v3276 = vld [vmem:[%s203 + $0x5a8] sm:$0xff]
    %v3277 = vld [vmem:[%s203 + $0x5b0] sm:$0xff]
    %v3278 = vld [vmem:[%s203 + $0x5b8] sm:$0xff]
    %v3279 = vld [vmem:[%s203 + $0x5c0] sm:$0xff]
    %v3280 = vld [vmem:[%s203 + $0x5c8] sm:$0xff]
    %v3281 = vld [vmem:[%s203 + $0x5d0] sm:$0xff]
    %v3282 = vld [vmem:[%s203 + $0x5d8] sm:$0xff]
    %v3283 = vld [vmem:[%s203 + $0x5e0] sm:$0xff]
    %v3284 = vld [vmem:[%s203 + $0x5e8] sm:$0xff]
    %v3285 = vld [vmem:[%s203 + $0x5f0] sm:$0xff]
    %v3286 = vld [vmem:[%s203 + $0x5f8] sm:$0xff]
    %v3287 = vld [vmem:[%s203 + $0x600] sm:$0xff]
    %v3288 = vld [vmem:[%s203 + $0x608] sm:$0xff]
    %v3289 = vld [vmem:[%s203 + $0x610] sm:$0xff]
    %v3290 = vld [vmem:[%s203 + $0x618] sm:$0xff]
    %v3291 = vld [vmem:[%s203 + $0x620] sm:$0xff]
    %v3292 = vld [vmem:[%s203 + $0x628] sm:$0xff]
    %v3293 = vld [vmem:[%s203 + $0x630] sm:$0xff]
    %v3294 = vld [vmem:[%s203 + $0x638] sm:$0xff]
    %v3295 = vld [vmem:[%s203 + $0x640] sm:$0xff]
    %v3296 = vld [vmem:[%s203 + $0x648] sm:$0xff]
    %v3297 = vld [vmem:[%s203 + $0x650] sm:$0xff]
    %v3298 = vld [vmem:[%s203 + $0x658] sm:$0xff]
    %v3299 = vld [vmem:[%s203 + $0x660] sm:$0xff]
    %v3300 = vld [vmem:[%s203 + $0x668] sm:$0xff]
    %v3301 = vld [vmem:[%s203 + $0x670] sm:$0xff]
    %v3302 = vld [vmem:[%s203 + $0x678] sm:$0xff]
    %v3303 = vld [vmem:[%s203 + $0x680] sm:$0xff]
    %v3304 = vld [vmem:[%s203 + $0x688] sm:$0xff]
    %v3305 = vld [vmem:[%s203 + $0x690] sm:$0xff]
    %v3306 = vld [vmem:[%s203 + $0x698] sm:$0xff]
    %v3307 = vld [vmem:[%s203 + $0x6a0] sm:$0xff]
    %v3308 = vld [vmem:[%s203 + $0x6a8] sm:$0xff]
    %v3309 = vld [vmem:[%s203 + $0x6b0] sm:$0xff]
    %v3310 = vld [vmem:[%s203 + $0x6b8] sm:$0xff]
    %v3311 = vld [vmem:[%s203 + $0x6c0] sm:$0xff]
    %v3312 = vld [vmem:[%s203 + $0x6c8] sm:$0xff]
    %v3313 = vld [vmem:[%s203 + $0x6d0] sm:$0xff]
    %v3314 = vld [vmem:[%s203 + $0x6d8] sm:$0xff]
    %v3315 = vld [vmem:[%s203 + $0x6e0] sm:$0xff]
    %v3316 = vld [vmem:[%s203 + $0x6e8] sm:$0xff]
    %v3317 = vld [vmem:[%s203 + $0x6f0] sm:$0xff]
    %v3318 = vld [vmem:[%s203 + $0x6f8] sm:$0xff]
    %v3319 = vld [vmem:[%s203 + $0x700] sm:$0xff]
    %v3320 = vld [vmem:[%s203 + $0x708] sm:$0xff]
    %v3321 = vld [vmem:[%s203 + $0x710] sm:$0xff]
    %v3322 = vld [vmem:[%s203 + $0x718] sm:$0xff]
    %v3323 = vld [vmem:[%s203 + $0x720] sm:$0xff]
    %v3324 = vld [vmem:[%s203 + $0x728] sm:$0xff]
    %v3325 = vld [vmem:[%s203 + $0x730] sm:$0xff]
    %v3326 = vld [vmem:[%s203 + $0x738] sm:$0xff]
    %v3327 = vld [vmem:[%s203 + $0x740] sm:$0xff]
    %v3328 = vld [vmem:[%s203 + $0x748] sm:$0xff]
    %v3329 = vld [vmem:[%s203 + $0x750] sm:$0xff]
    %v3330 = vld [vmem:[%s203 + $0x758] sm:$0xff]
    %v3331 = vld [vmem:[%s203 + $0x760] sm:$0xff]
    %v3332 = vld [vmem:[%s203 + $0x768] sm:$0xff]
    %v3333 = vld [vmem:[%s203 + $0x770] sm:$0xff]
    %v3334 = vld [vmem:[%s203 + $0x778] sm:$0xff]
    %v3335 = vld [vmem:[%s203 + $0x780] sm:$0xff]
    %v3336 = vld [vmem:[%s203 + $0x788] sm:$0xff]
    %v3337 = vld [vmem:[%s203 + $0x790] sm:$0xff]
    %v3338 = vld [vmem:[%s203 + $0x798] sm:$0xff]
    %v3339 = vld [vmem:[%s203 + $0x7a0] sm:$0xff]
    %v3340 = vld [vmem:[%s203 + $0x7a8] sm:$0xff]
    %v3341 = vld [vmem:[%s203 + $0x7b0] sm:$0xff]
    %v3342 = vld [vmem:[%s203 + $0x7b8] sm:$0xff]
    %v3343 = vld [vmem:[%s203 + $0x7c0] sm:$0xff]
    %v3344 = vld [vmem:[%s203 + $0x7c8] sm:$0xff]
    %v3345 = vld [vmem:[%s203 + $0x7d0] sm:$0xff]
    %v3346 = vld [vmem:[%s203 + $0x7d8] sm:$0xff]
    %v3347 = vld [vmem:[%s203 + $0x7e0] sm:$0xff]
    %v3348 = vld [vmem:[%s203 + $0x7e8] sm:$0xff]
    %v3349 = vld [vmem:[%s203 + $0x7f0] sm:$0xff]
    %v3350 = vld [vmem:[%s203 + $0x7f8] sm:$0xff]
    %v3353 = vcombine.high %v3093, %v3093
    %v3355 = vunpack.c.l.s4 1966171168
    %v3356 = vunpack.c.0.s8 %v3355
    %v3357 = vlaneseq
    %v3358 = vshrl.u32 %v3357, 7
    %v3359 = vsub.s32 %v3356, %v3358
    %v3360 = vrot.slane %v3093, %v3359
    %v3362 = vunpack.c.l.s4 1966171168
    %v3363 = vunpack.c.0.s8 %v3362
    %v3364 = vlaneseq
    %v3365 = vshrl.u32 %v3364, 7
    %v3366 = vsub.s32 %v3363, %v3365
    %v3367 = vrot.slane %v3353, %v3366
    %v3368 = vcombine.high %v3360, %v3360
    %v3369 = vcombine.high %v3367, %v3367
    %v3371 = vunpack.c.l.s4 1966171168
    %v3372 = vunpack.c.0.s8 %v3371
    %v3373 = vlaneseq
    %v3374 = vshrl.u32 %v3373, 7
    %v3375 = vsub.s32 %v3372, %v3374
    %v3376 = vrot.slane %v3360, %v3375
    %v3378 = vunpack.c.l.s4 1966171168
    %v3379 = vunpack.c.0.s8 %v3378
    %v3380 = vlaneseq
    %v3381 = vshrl.u32 %v3380, 7
    %v3382 = vsub.s32 %v3379, %v3381
    %v3383 = vrot.slane %v3367, %v3382
    %v3385 = vunpack.c.l.s4 1966171168
    %v3386 = vunpack.c.0.s8 %v3385
    %v3387 = vlaneseq
    %v3388 = vshrl.u32 %v3387, 7
    %v3389 = vsub.s32 %v3386, %v3388
    %v3390 = vrot.slane %v3368, %v3389
    %v3392 = vunpack.c.l.s4 1966171168
    %v3393 = vunpack.c.0.s8 %v3392
    %v3394 = vlaneseq
    %v3395 = vshrl.u32 %v3394, 7
    %v3396 = vsub.s32 %v3393, %v3395
    %v3397 = vrot.slane %v3369, %v3396
    %v3398 = vcombine.high %v3376, %v3376
    %v3399 = vcombine.high %v3383, %v3383
    %v3400 = vcombine.high %v3390, %v3390
    %v3401 = vcombine.high %v3397, %v3397
    %v3402 = vcombine.high %v3094, %v3094
    %v3404 = vunpack.c.l.s4 1966171168
    %v3405 = vunpack.c.0.s8 %v3404
    %v3406 = vlaneseq
    %v3407 = vshrl.u32 %v3406, 7
    %v3408 = vsub.s32 %v3405, %v3407
    %v3409 = vrot.slane %v3094, %v3408
    %v3411 = vunpack.c.l.s4 1966171168
    %v3412 = vunpack.c.0.s8 %v3411
    %v3413 = vlaneseq
    %v3414 = vshrl.u32 %v3413, 7
    %v3415 = vsub.s32 %v3412, %v3414
    %v3416 = vrot.slane %v3402, %v3415
    %v3417 = vcombine.high %v3409, %v3409
    %v3418 = vcombine.high %v3416, %v3416
    %v3420 = vunpack.c.l.s4 1966171168
    %v3421 = vunpack.c.0.s8 %v3420
    %v3422 = vlaneseq
    %v3423 = vshrl.u32 %v3422, 7
    %v3424 = vsub.s32 %v3421, %v3423
    %v3425 = vrot.slane %v3409, %v3424
    %v3427 = vunpack.c.l.s4 1966171168
    %v3428 = vunpack.c.0.s8 %v3427
    %v3429 = vlaneseq
    %v3430 = vshrl.u32 %v3429, 7
    %v3431 = vsub.s32 %v3428, %v3430
    %v3432 = vrot.slane %v3416, %v3431
    %v3434 = vunpack.c.l.s4 1966171168
    %v3435 = vunpack.c.0.s8 %v3434
    %v3436 = vlaneseq
    %v3437 = vshrl.u32 %v3436, 7
    %v3438 = vsub.s32 %v3435, %v3437
    %v3439 = vrot.slane %v3417, %v3438
    %v3441 = vunpack.c.l.s4 1966171168
    %v3442 = vunpack.c.0.s8 %v3441
    %v3443 = vlaneseq
    %v3444 = vshrl.u32 %v3443, 7
    %v3445 = vsub.s32 %v3442, %v3444
    %v3446 = vrot.slane %v3418, %v3445
    %v3447 = vcombine.high %v3425, %v3425
    %v3448 = vcombine.high %v3432, %v3432
    %v3449 = vcombine.high %v3439, %v3439
    %v3450 = vcombine.high %v3446, %v3446
    %3467 = vmatprep.subr.bf16.mxu0 %v3096
    %3468 = vmatpush1.bf16.msra.mxu0 %v3095
    %3469 = vmatprep.subr.bf16.mxu0 %v3098
    %3470 = vmatpush1.bf16.msra.mxu0 %v3097
    %3471 = vmatprep.subr.bf16.mxu0 %v3100
    %3472 = vmatpush1.bf16.msra.mxu0 %v3099
    %3473 = vmatprep.subr.bf16.mxu0 %v3102
    %3474 = vmatpush1.bf16.msra.mxu0 %v3101
    %3475 = vmatprep.subr.bf16.mxu0 %v3104
    %3476 = vmatpush1.bf16.msra.mxu0 %v3103
    %3477 = vmatprep.subr.bf16.mxu0 %v3106
    %3478 = vmatpush1.bf16.msra.mxu0 %v3105
    %3479 = vmatprep.subr.bf16.mxu0 %v3108
    %3480 = vmatpush1.bf16.msra.mxu0 %v3107
    %3481 = vmatprep.subr.bf16.mxu0 %v3110
    %3482 = vmatpush1.bf16.msra.mxu0 %v3109
    %3483 = vmatprep.subr.bf16.mxu0 %v3112
    %3484 = vmatpush1.bf16.msra.mxu0 %v3111
    %3485 = vmatprep.subr.bf16.mxu0 %v3114
    %3486 = vmatpush1.bf16.msra.mxu0 %v3113
    %3487 = vmatprep.subr.bf16.mxu0 %v3116
    %3488 = vmatpush1.bf16.msra.mxu0 %v3115
    %3489 = vmatprep.subr.bf16.mxu0 %v3118
    %3490 = vmatpush1.bf16.msra.mxu0 %v3117
    %3491 = vmatprep.subr.bf16.mxu0 %v3120
    %3492 = vmatpush1.bf16.msra.mxu0 %v3119
    %3493 = vmatprep.subr.bf16.mxu0 %v3122
    %3494 = vmatpush1.bf16.msra.mxu0 %v3121
    %3495 = vmatprep.subr.bf16.mxu0 %v3124
    %3496 = vmatpush1.bf16.msra.mxu0 %v3123
    %3497 = vmatprep.subr.bf16.mxu0 %v3126
    %3498 = vmatpush1.bf16.msra.mxu0 %v3125
    %3499 = vmatprep.mubr.bf16.mxu0 %v3390
    %3500 = vmatmul.mubr.bf16.gmra.mrb[0].mxu0 %v3376
    %v3501 = vpop.f32.mrb[0].mxu0
    %v3502 = vadd.f32 0.0, %v3501
    %v3503 = vpop.f32.mrb[0].mxu0
    %v3504 = vadd.f32 0.0, %v3503
    %v3505 = vpop.f32.mrb[0].mxu0
    %v3506 = vpop.f32.mrb[0].mxu0
    %3507 = vdwg.mxu0
    %3508 = vmatprep.subr.bf16.mxu0 %v3128
    %3509 = vmatpush1.bf16.msra.mxu0 %v3127
    %3510 = vmatprep.subr.bf16.mxu0 %v3130
    %3511 = vmatpush1.bf16.msra.mxu0 %v3129
    %3512 = vmatprep.subr.bf16.mxu0 %v3132
    %3513 = vmatpush1.bf16.msra.mxu0 %v3131
    %3514 = vmatprep.subr.bf16.mxu0 %v3134
    %3515 = vmatpush1.bf16.msra.mxu0 %v3133
    %3516 = vmatprep.subr.bf16.mxu0 %v3136
    %3517 = vmatpush1.bf16.msra.mxu0 %v3135
    %3518 = vmatprep.subr.bf16.mxu0 %v3138
    %3519 = vmatpush1.bf16.msra.mxu0 %v3137
    %3520 = vmatprep.subr.bf16.mxu0 %v3140
    %3521 = vmatpush1.bf16.msra.mxu0 %v3139
    %3522 = vmatprep.subr.bf16.mxu0 %v3142
    %3523 = vmatpush1.bf16.msra.mxu0 %v3141
    %3524 = vmatprep.subr.bf16.mxu0 %v3144
    %3525 = vmatpush1.bf16.msra.mxu0 %v3143
    %3526 = vmatprep.subr.bf16.mxu0 %v3146
    %3527 = vmatpush1.bf16.msra.mxu0 %v3145
    %3528 = vmatprep.subr.bf16.mxu0 %v3148
    %3529 = vmatpush1.bf16.msra.mxu0 %v3147
    %3530 = vmatprep.subr.bf16.mxu0 %v3150
    %3531 = vmatpush1.bf16.msra.mxu0 %v3149
    %3532 = vmatprep.subr.bf16.mxu0 %v3152
    %3533 = vmatpush1.bf16.msra.mxu0 %v3151
    %3534 = vmatprep.subr.bf16.mxu0 %v3154
    %3535 = vmatpush1.bf16.msra.mxu0 %v3153
    %3536 = vmatprep.subr.bf16.mxu0 %v3156
    %3537 = vmatpush1.bf16.msra.mxu0 %v3155
    %3538 = vmatprep.subr.bf16.mxu0 %v3158
    %3539 = vmatpush1.bf16.msra.mxu0 %v3157
    %3540 = vmatprep.mubr.bf16.mxu0 %v3400
    %3541 = vmatmul.mubr.bf16.gmra.mrb[0].mxu0 %v3398
    %v3542 = vpop.f32.mrb[0].mxu0
    %v3543 = vadd.f32 %v3502, %v3542
    %v3544 = vpop.f32.mrb[0].mxu0
    %v3545 = vadd.f32 %v3504, %v3544
    %v3546 = vpop.f32.mrb[0].mxu0
    %v3547 = vpop.f32.mrb[0].mxu0
    %3548 = vdwg.mxu0
    %3549 = vmatprep.subr.bf16.mxu0 %v3160
    %3550 = vmatpush1.bf16.msra.mxu0 %v3159
    %3551 = vmatprep.subr.bf16.mxu0 %v3162
    %3552 = vmatpush1.bf16.msra.mxu0 %v3161
    %3553 = vmatprep.subr.bf16.mxu0 %v3164
    %3554 = vmatpush1.bf16.msra.mxu0 %v3163
    %3555 = vmatprep.subr.bf16.mxu0 %v3166
    %3556 = vmatpush1.bf16.msra.mxu0 %v3165
    %3557 = vmatprep.subr.bf16.mxu0 %v3168
    %3558 = vmatpush1.bf16.msra.mxu0 %v3167
    %3559 = vmatprep.subr.bf16.mxu0 %v3170
    %3560 = vmatpush1.bf16.msra.mxu0 %v3169
    %3561 = vmatprep.subr.bf16.mxu0 %v3172
    %3562 = vmatpush1.bf16.msra.mxu0 %v3171
    %3563 = vmatprep.subr.bf16.mxu0 %v3174
    %3564 = vmatpush1.bf16.msra.mxu0 %v3173
    %3565 = vmatprep.subr.bf16.mxu0 %v3176
    %3566 = vmatpush1.bf16.msra.mxu0 %v3175
    %3567 = vmatprep.subr.bf16.mxu0 %v3178
    %3568 = vmatpush1.bf16.msra.mxu0 %v3177
    %3569 = vmatprep.subr.bf16.mxu0 %v3180
    %3570 = vmatpush1.bf16.msra.mxu0 %v3179
    %3571 = vmatprep.subr.bf16.mxu0 %v3182
    %3572 = vmatpush1.bf16.msra.mxu0 %v3181
    %3573 = vmatprep.subr.bf16.mxu0 %v3184
    %3574 = vmatpush1.bf16.msra.mxu0 %v3183
    %3575 = vmatprep.subr.bf16.mxu0 %v3186
    %3576 = vmatpush1.bf16.msra.mxu0 %v3185
    %3577 = vmatprep.subr.bf16.mxu0 %v3188
    %3578 = vmatpush1.bf16.msra.mxu0 %v3187
    %3579 = vmatprep.subr.bf16.mxu0 %v3190
    %3580 = vmatpush1.bf16.msra.mxu0 %v3189
    %3581 = vmatprep.mubr.bf16.mxu0 %v3397
    %3582 = vmatmul.mubr.bf16.gmra.mrb[0].mxu0 %v3383
    %v3583 = vpop.f32.mrb[0].mxu0
    %v3584 = vadd.f32 %v3543, %v3583
    %v3585 = vpop.f32.mrb[0].mxu0
    %v3586 = vadd.f32 %v3545, %v3585
    %v3587 = vpop.f32.mrb[0].mxu0
    %v3588 = vpop.f32.mrb[0].mxu0
    %3589 = vdwg.mxu0
    %3590 = vmatprep.subr.bf16.mxu0 %v3192
    %3591 = vmatpush1.bf16.msra.mxu0 %v3191
    %3592 = vmatprep.subr.bf16.mxu0 %v3194
    %3593 = vmatpush1.bf16.msra.mxu0 %v3193
    %3594 = vmatprep.subr.bf16.mxu0 %v3196
    %3595 = vmatpush1.bf16.msra.mxu0 %v3195
    %3596 = vmatprep.subr.bf16.mxu0 %v3198
    %3597 = vmatpush1.bf16.msra.mxu0 %v3197
    %3598 = vmatprep.subr.bf16.mxu0 %v3200
    %3599 = vmatpush1.bf16.msra.mxu0 %v3199
    %3600 = vmatprep.subr.bf16.mxu0 %v3202
    %3601 = vmatpush1.bf16.msra.mxu0 %v3201
    %3602 = vmatprep.subr.bf16.mxu0 %v3204
    %3603 = vmatpush1.bf16.msra.mxu0 %v3203
    %3604 = vmatprep.subr.bf16.mxu0 %v3206
    %3605 = vmatpush1.bf16.msra.mxu0 %v3205
    %3606 = vmatprep.subr.bf16.mxu0 %v3208
    %3607 = vmatpush1.bf16.msra.mxu0 %v3207
    %3608 = vmatprep.subr.bf16.mxu0 %v3210
    %3609 = vmatpush1.bf16.msra.mxu0 %v3209
    %3610 = vmatprep.subr.bf16.mxu0 %v3212
    %3611 = vmatpush1.bf16.msra.mxu0 %v3211
    %3612 = vmatprep.subr.bf16.mxu0 %v3214
    %3613 = vmatpush1.bf16.msra.mxu0 %v3213
    %3614 = vmatprep.subr.bf16.mxu0 %v3216
    %3615 = vmatpush1.bf16.msra.mxu0 %v3215
    %3616 = vmatprep.subr.bf16.mxu0 %v3218
    %3617 = vmatpush1.bf16.msra.mxu0 %v3217
    %3618 = vmatprep.subr.bf16.mxu0 %v3220
    %3619 = vmatpush1.bf16.msra.mxu0 %v3219
    %3620 = vmatprep.subr.bf16.mxu0 %v3222
    %3621 = vmatpush1.bf16.msra.mxu0 %v3221
    %3622 = vmatprep.mubr.bf16.mxu0 %v3401
    %3623 = vmatmul.mubr.bf16.gmra.mrb[0].mxu0 %v3399
    %v3624 = vpop.f32.mrb[0].mxu0
    %v3625 = vadd.f32 %v3584, %v3624
    %v3626 = vpop.f32.mrb[0].mxu0
    %v3627 = vadd.f32 %v3586, %v3626
    %v3628 = vpop.f32.mrb[0].mxu0
    %v3629 = vpop.f32.mrb[0].mxu0
    %3630 = vdwg.mxu0
    %3631 = vmatprep.subr.bf16.mxu0 %v3224
    %3632 = vmatpush1.bf16.msra.mxu0 %v3223
    %3633 = vmatprep.subr.bf16.mxu0 %v3226
    %3634 = vmatpush1.bf16.msra.mxu0 %v3225
    %3635 = vmatprep.subr.bf16.mxu0 %v3228
    %3636 = vmatpush1.bf16.msra.mxu0 %v3227
    %3637 = vmatprep.subr.bf16.mxu0 %v3230
    %3638 = vmatpush1.bf16.msra.mxu0 %v3229
    %3639 = vmatprep.subr.bf16.mxu0 %v3232
    %3640 = vmatpush1.bf16.msra.mxu0 %v3231
    %3641 = vmatprep.subr.bf16.mxu0 %v3234
    %3642 = vmatpush1.bf16.msra.mxu0 %v3233
    %3643 = vmatprep.subr.bf16.mxu0 %v3236
    %3644 = vmatpush1.bf16.msra.mxu0 %v3235
    %3645 = vmatprep.subr.bf16.mxu0 %v3238
    %3646 = vmatpush1.bf16.msra.mxu0 %v3237
    %3647 = vmatprep.subr.bf16.mxu0 %v3240
    %3648 = vmatpush1.bf16.msra.mxu0 %v3239
    %3649 = vmatprep.subr.bf16.mxu0 %v3242
    %3650 = vmatpush1.bf16.msra.mxu0 %v3241
    %3651 = vmatprep.subr.bf16.mxu0 %v3244
    %3652 = vmatpush1.bf16.msra.mxu0 %v3243
    %3653 = vmatprep.subr.bf16.mxu0 %v3246
    %3654 = vmatpush1.bf16.msra.mxu0 %v3245
    %3655 = vmatprep.subr.bf16.mxu0 %v3248
    %3656 = vmatpush1.bf16.msra.mxu0 %v3247
    %3657 = vmatprep.subr.bf16.mxu0 %v3250
    %3658 = vmatpush1.bf16.msra.mxu0 %v3249
    %3659 = vmatprep.subr.bf16.mxu0 %v3252
    %3660 = vmatpush1.bf16.msra.mxu0 %v3251
    %3661 = vmatprep.subr.bf16.mxu0 %v3254
    %3662 = vmatpush1.bf16.msra.mxu0 %v3253
    %3663 = vmatprep.mubr.bf16.mxu0 %v3439
    %3664 = vmatmul.mubr.bf16.gmra.mrb[0].mxu0 %v3425
    %v3665 = vpop.f32.mrb[0].mxu0
    %v3666 = vadd.f32 %v3625, %v3665
    %v3667 = vpop.f32.mrb[0].mxu0
    %v3668 = vadd.f32 %v3627, %v3667
    %v3669 = vpop.f32.mrb[0].mxu0
    %v3670 = vpop.f32.mrb[0].mxu0
    %3671 = vdwg.mxu0
    %3672 = vmatprep.subr.bf16.mxu0 %v3256
    %3673 = vmatpush1.bf16.msra.mxu0 %v3255
    %3674 = vmatprep.subr.bf16.mxu0 %v3258
    %3675 = vmatpush1.bf16.msra.mxu0 %v3257
    %3676 = vmatprep.subr.bf16.mxu0 %v3260
    %3677 = vmatpush1.bf16.msra.mxu0 %v3259
    %3678 = vmatprep.subr.bf16.mxu0 %v3262
    %3679 = vmatpush1.bf16.msra.mxu0 %v3261
    %3680 = vmatprep.subr.bf16.mxu0 %v3264
    %3681 = vmatpush1.bf16.msra.mxu0 %v3263
    %3682 = vmatprep.subr.bf16.mxu0 %v3266
    %3683 = vmatpush1.bf16.msra.mxu0 %v3265
    %3684 = vmatprep.subr.bf16.mxu0 %v3268
    %3685 = vmatpush1.bf16.msra.mxu0 %v3267
    %3686 = vmatprep.subr.bf16.mxu0 %v3270
    %3687 = vmatpush1.bf16.msra.mxu0 %v3269
    %3688 = vmatprep.subr.bf16.mxu0 %v3272
    %3689 = vmatpush1.bf16.msra.mxu0 %v3271
    %3690 = vmatprep.subr.bf16.mxu0 %v3274
    %3691 = vmatpush1.bf16.msra.mxu0 %v3273
    %3692 = vmatprep.subr.bf16.mxu0 %v3276
    %3693 = vmatpush1.bf16.msra.mxu0 %v3275
    %3694 = vmatprep.subr.bf16.mxu0 %v3278
    %3695 = vmatpush1.bf16.msra.mxu0 %v3277
    %3696 = vmatprep.subr.bf16.mxu0 %v3280
    %3697 = vmatpush1.bf16.msra.mxu0 %v3279
    %3698 = vmatprep.subr.bf16.mxu0 %v3282
    %3699 = vmatpush1.bf16.msra.mxu0 %v3281
    %3700 = vmatprep.subr.bf16.mxu0 %v3284
    %3701 = vmatpush1.bf16.msra.mxu0 %v3283
    %3702 = vmatprep.subr.bf16.mxu0 %v3286
    %3703 = vmatpush1.bf16.msra.mxu0 %v3285
    %3704 = vmatprep.mubr.bf16.mxu0 %v3449
    %3705 = vmatmul.mubr.bf16.gmra.mrb[0].mxu0 %v3447
    %v3706 = vpop.f32.mrb[0].mxu0
    %v3707 = vadd.f32 %v3666, %v3706
    %v3708 = vpop.f32.mrb[0].mxu0
    %v3709 = vadd.f32 %v3668, %v3708
    %v3710 = vpop.f32.mrb[0].mxu0
    %v3711 = vpop.f32.mrb[0].mxu0
    %3712 = vdwg.mxu0
    %3713 = vmatprep.subr.bf16.mxu0 %v3288
    %3714 = vmatpush1.bf16.msra.mxu0 %v3287
    %3715 = vmatprep.subr.bf16.mxu0 %v3290
    %3716 = vmatpush1.bf16.msra.mxu0 %v3289
    %3717 = vmatprep.subr.bf16.mxu0 %v3292
    %3718 = vmatpush1.bf16.msra.mxu0 %v3291
    %3719 = vmatprep.subr.bf16.mxu0 %v3294
    %3720 = vmatpush1.bf16.msra.mxu0 %v3293
    %3721 = vmatprep.subr.bf16.mxu0 %v3296
    %3722 = vmatpush1.bf16.msra.mxu0 %v3295
    %3723 = vmatprep.subr.bf16.mxu0 %v3298
    %3724 = vmatpush1.bf16.msra.mxu0 %v3297
    %3725 = vmatprep.subr.bf16.mxu0 %v3300
    %3726 = vmatpush1.bf16.msra.mxu0 %v3299
    %3727 = vmatprep.subr.bf16.mxu0 %v3302
    %3728 = vmatpush1.bf16.msra.mxu0 %v3301
    %3729 = vmatprep.subr.bf16.mxu0 %v3304
    %3730 = vmatpush1.bf16.msra.mxu0 %v3303
    %3731 = vmatprep.subr.bf16.mxu0 %v3306
    %3732 = vmatpush1.bf16.msra.mxu0 %v3305
    %3733 = vmatprep.subr.bf16.mxu0 %v3308
    %3734 = vmatpush1.bf16.msra.mxu0 %v3307
    %3735 = vmatprep.subr.bf16.mxu0 %v3310
    %3736 = vmatpush1.bf16.msra.mxu0 %v3309
    %3737 = vmatprep.subr.bf16.mxu0 %v3312
    %3738 = vmatpush1.bf16.msra.mxu0 %v3311
    %3739 = vmatprep.subr.bf16.mxu0 %v3314
    %3740 = vmatpush1.bf16.msra.mxu0 %v3313
    %3741 = vmatprep.subr.bf16.mxu0 %v3316
    %3742 = vmatpush1.bf16.msra.mxu0 %v3315
    %3743 = vmatprep.subr.bf16.mxu0 %v3318
    %3744 = vmatpush1.bf16.msra.mxu0 %v3317
    %3745 = vmatprep.mubr.bf16.mxu0 %v3446
    %3746 = vmatmul.mubr.bf16.gmra.mrb[0].mxu0 %v3432
    %v3747 = vpop.f32.mrb[0].mxu0
    %v3748 = vadd.f32 %v3707, %v3747
    %v3749 = vpop.f32.mrb[0].mxu0
    %v3750 = vadd.f32 %v3709, %v3749
    %v3751 = vpop.f32.mrb[0].mxu0
    %v3752 = vpop.f32.mrb[0].mxu0
    %3753 = vdwg.mxu0
    %3754 = vmatprep.subr.bf16.mxu0 %v3320
    %3755 = vmatpush1.bf16.msra.mxu0 %v3319
    %3756 = vmatprep.subr.bf16.mxu0 %v3322
    %3757 = vmatpush1.bf16.msra.mxu0 %v3321
    %3758 = vmatprep.subr.bf16.mxu0 %v3324
    %3759 = vmatpush1.bf16.msra.mxu0 %v3323
    %3760 = vmatprep.subr.bf16.mxu0 %v3326
    %3761 = vmatpush1.bf16.msra.mxu0 %v3325
    %3762 = vmatprep.subr.bf16.mxu0 %v3328
    %3763 = vmatpush1.bf16.msra.mxu0 %v3327
    %3764 = vmatprep.subr.bf16.mxu0 %v3330
    %3765 = vmatpush1.bf16.msra.mxu0 %v3329
    %3766 = vmatprep.subr.bf16.mxu0 %v3332
    %3767 = vmatpush1.bf16.msra.mxu0 %v3331
    %3768 = vmatprep.subr.bf16.mxu0 %v3334
    %3769 = vmatpush1.bf16.msra.mxu0 %v3333
    %3770 = vmatprep.subr.bf16.mxu0 %v3336
    %3771 = vmatpush1.bf16.msra.mxu0 %v3335
    %3772 = vmatprep.subr.bf16.mxu0 %v3338
    %3773 = vmatpush1.bf16.msra.mxu0 %v3337
    %3774 = vmatprep.subr.bf16.mxu0 %v3340
    %3775 = vmatpush1.bf16.msra.mxu0 %v3339
    %3776 = vmatprep.subr.bf16.mxu0 %v3342
    %3777 = vmatpush1.bf16.msra.mxu0 %v3341
    %3778 = vmatprep.subr.bf16.mxu0 %v3344
    %3779 = vmatpush1.bf16.msra.mxu0 %v3343
    %3780 = vmatprep.subr.bf16.mxu0 %v3346
    %3781 = vmatpush1.bf16.msra.mxu0 %v3345
    %3782 = vmatprep.subr.bf16.mxu0 %v3348
    %3783 = vmatpush1.bf16.msra.mxu0 %v3347
    %3784 = vmatprep.subr.bf16.mxu0 %v3350
    %3785 = vmatpush1.bf16.msra.mxu0 %v3349
    %3786 = vmatprep.mubr.bf16.mxu0 %v3450
    %3787 = vmatmul.mubr.bf16.gmra.mrb[0].mxu0 %v3448
    %v3788 = vpop.f32.mrb[0].mxu0
    %v3789 = vadd.f32 %v3748, %v3788
    %v3790 = vpop.f32.mrb[0].mxu0
    %v3791 = vadd.f32 %v3750, %v3790
    %v3792 = vpop.f32.mrb[0].mxu0
    %v3793 = vpop.f32.mrb[0].mxu0
    %3794 = vdwg.mxu0
    %v3795 = vadd.f32 %v3085, %v3789
    %v3796 = vadd.f32 %v3087, %v3791
    %s3797 = sshll.u32 %s1682, 4
    %3798 = dma.done %s241, %s3797
    %v3799 = vld [vmem:[#allocation4 + $0x30] sm:$0xff]
    %v3800 = vld [vmem:[#allocation4 + $0x38] sm:$0xff]
    %v3801 = vld [vmem:[%s240] sm:$0xff]
    %v3802 = vld [vmem:[%s240 + $0x8] sm:$0xff]
    %v3803 = vld [vmem:[%s240 + $0x10] sm:$0xff]
    %v3804 = vld [vmem:[%s240 + $0x18] sm:$0xff]
    %v3805 = vld [vmem:[%s240 + $0x20] sm:$0xff]
    %v3806 = vld [vmem:[%s240 + $0x28] sm:$0xff]
    %v3807 = vld [vmem:[%s240 + $0x30] sm:$0xff]
    %v3808 = vld [vmem:[%s240 + $0x38] sm:$0xff]
    %v3809 = vld [vmem:[%s240 + $0x40] sm:$0xff]
    %v3810 = vld [vmem:[%s240 + $0x48] sm:$0xff]
    %v3811 = vld [vmem:[%s240 + $0x50] sm:$0xff]
    %v3812 = vld [vmem:[%s240 + $0x58] sm:$0xff]
    %v3813 = vld [vmem:[%s240 + $0x60] sm:$0xff]
    %v3814 = vld [vmem:[%s240 + $0x68] sm:$0xff]
    %v3815 = vld [vmem:[%s240 + $0x70] sm:$0xff]
    %v3816 = vld [vmem:[%s240 + $0x78] sm:$0xff]
    %v3817 = vld [vmem:[%s240 + $0x80] sm:$0xff]
    %v3818 = vld [vmem:[%s240 + $0x88] sm:$0xff]
    %v3819 = vld [vmem:[%s240 + $0x90] sm:$0xff]
    %v3820 = vld [vmem:[%s240 + $0x98] sm:$0xff]
    %v3821 = vld [vmem:[%s240 + $0xa0] sm:$0xff]
    %v3822 = vld [vmem:[%s240 + $0xa8] sm:$0xff]
    %v3823 = vld [vmem:[%s240 + $0xb0] sm:$0xff]
    %v3824 = vld [vmem:[%s240 + $0xb8] sm:$0xff]
    %v3825 = vld [vmem:[%s240 + $0xc0] sm:$0xff]
    %v3826 = vld [vmem:[%s240 + $0xc8] sm:$0xff]
    %v3827 = vld [vmem:[%s240 + $0xd0] sm:$0xff]
    %v3828 = vld [vmem:[%s240 + $0xd8] sm:$0xff]
    %v3829 = vld [vmem:[%s240 + $0xe0] sm:$0xff]
    %v3830 = vld [vmem:[%s240 + $0xe8] sm:$0xff]
    %v3831 = vld [vmem:[%s240 + $0xf0] sm:$0xff]
    %v3832 = vld [vmem:[%s240 + $0xf8] sm:$0xff]
    %v3833 = vld [vmem:[%s240 + $0x100] sm:$0xff]
    %v3834 = vld [vmem:[%s240 + $0x108] sm:$0xff]
    %v3835 = vld [vmem:[%s240 + $0x110] sm:$0xff]
    %v3836 = vld [vmem:[%s240 + $0x118] sm:$0xff]
    %v3837 = vld [vmem:[%s240 + $0x120] sm:$0xff]
    %v3838 = vld [vmem:[%s240 + $0x128] sm:$0xff]
    %v3839 = vld [vmem:[%s240 + $0x130] sm:$0xff]
    %v3840 = vld [vmem:[%s240 + $0x138] sm:$0xff]
    %v3841 = vld [vmem:[%s240 + $0x140] sm:$0xff]
    %v3842 = vld [vmem:[%s240 + $0x148] sm:$0xff]
    %v3843 = vld [vmem:[%s240 + $0x150] sm:$0xff]
    %v3844 = vld [vmem:[%s240 + $0x158] sm:$0xff]
    %v3845 = vld [vmem:[%s240 + $0x160] sm:$0xff]
    %v3846 = vld [vmem:[%s240 + $0x168] sm:$0xff]
    %v3847 = vld [vmem:[%s240 + $0x170] sm:$0xff]
    %v3848 = vld [vmem:[%s240 + $0x178] sm:$0xff]
    %v3849 = vld [vmem:[%s240 + $0x180] sm:$0xff]
    %v3850 = vld [vmem:[%s240 + $0x188] sm:$0xff]
    %v3851 = vld [vmem:[%s240 + $0x190] sm:$0xff]
    %v3852 = vld [vmem:[%s240 + $0x198] sm:$0xff]
    %v3853 = vld [vmem:[%s240 + $0x1a0] sm:$0xff]
    %v3854 = vld [vmem:[%s240 + $0x1a8] sm:$0xff]
    %v3855 = vld [vmem:[%s240 + $0x1b0] sm:$0xff]
    %v3856 = vld [vmem:[%s240 + $0x1b8] sm:$0xff]
    %v3857 = vld [vmem:[%s240 + $0x1c0] sm:$0xff]
    %v3858 = vld [vmem:[%s240 + $0x1c8] sm:$0xff]
    %v3859 = vld [vmem:[%s240 + $0x1d0] sm:$0xff]
    %v3860 = vld [vmem:[%s240 + $0x1d8] sm:$0xff]
    %v3861 = vld [vmem:[%s240 + $0x1e0] sm:$0xff]
    %v3862 = vld [vmem:[%s240 + $0x1e8] sm:$0xff]
    %v3863 = vld [vmem:[%s240 + $0x1f0] sm:$0xff]
    %v3864 = vld [vmem:[%s240 + $0x1f8] sm:$0xff]
    %v3865 = vld [vmem:[%s240 + $0x200] sm:$0xff]
    %v3866 = vld [vmem:[%s240 + $0x208] sm:$0xff]
    %v3867 = vld [vmem:[%s240 + $0x210] sm:$0xff]
    %v3868 = vld [vmem:[%s240 + $0x218] sm:$0xff]
    %v3869 = vld [vmem:[%s240 + $0x220] sm:$0xff]
    %v3870 = vld [vmem:[%s240 + $0x228] sm:$0xff]
    %v3871 = vld [vmem:[%s240 + $0x230] sm:$0xff]
    %v3872 = vld [vmem:[%s240 + $0x238] sm:$0xff]
    %v3873 = vld [vmem:[%s240 + $0x240] sm:$0xff]
    %v3874 = vld [vmem:[%s240 + $0x248] sm:$0xff]
    %v3875 = vld [vmem:[%s240 + $0x250] sm:$0xff]
    %v3876 = vld [vmem:[%s240 + $0x258] sm:$0xff]
    %v3877 = vld [vmem:[%s240 + $0x260] sm:$0xff]
    %v3878 = vld [vmem:[%s240 + $0x268] sm:$0xff]
    %v3879 = vld [vmem:[%s240 + $0x270] sm:$0xff]
    %v3880 = vld [vmem:[%s240 + $0x278] sm:$0xff]
    %v3881 = vld [vmem:[%s240 + $0x280] sm:$0xff]
    %v3882 = vld [vmem:[%s240 + $0x288] sm:$0xff]
    %v3883 = vld [vmem:[%s240 + $0x290] sm:$0xff]
    %v3884 = vld [vmem:[%s240 + $0x298] sm:$0xff]
    %v3885 = vld [vmem:[%s240 + $0x2a0] sm:$0xff]
    %v3886 = vld [vmem:[%s240 + $0x2a8] sm:$0xff]
    %v3887 = vld [vmem:[%s240 + $0x2b0] sm:$0xff]
    %v3888 = vld [vmem:[%s240 + $0x2b8] sm:$0xff]
    %v3889 = vld [vmem:[%s240 + $0x2c0] sm:$0xff]
    %v3890 = vld [vmem:[%s240 + $0x2c8] sm:$0xff]
    %v3891 = vld [vmem:[%s240 + $0x2d0] sm:$0xff]
    %v3892 = vld [vmem:[%s240 + $0x2d8] sm:$0xff]
    %v3893 = vld [vmem:[%s240 + $0x2e0] sm:$0xff]
    %v3894 = vld [vmem:[%s240 + $0x2e8] sm:$0xff]
    %v3895 = vld [vmem:[%s240 + $0x2f0] sm:$0xff]
    %v3896 = vld [vmem:[%s240 + $0x2f8] sm:$0xff]
    %v3897 = vld [vmem:[%s240 + $0x300] sm:$0xff]
    %v3898 = vld [vmem:[%s240 + $0x308] sm:$0xff]
    %v3899 = vld [vmem:[%s240 + $0x310] sm:$0xff]
    %v3900 = vld [vmem:[%s240 + $0x318] sm:$0xff]
    %v3901 = vld [vmem:[%s240 + $0x320] sm:$0xff]
    %v3902 = vld [vmem:[%s240 + $0x328] sm:$0xff]
    %v3903 = vld [vmem:[%s240 + $0x330] sm:$0xff]
    %v3904 = vld [vmem:[%s240 + $0x338] sm:$0xff]
    %v3905 = vld [vmem:[%s240 + $0x340] sm:$0xff]
    %v3906 = vld [vmem:[%s240 + $0x348] sm:$0xff]
    %v3907 = vld [vmem:[%s240 + $0x350] sm:$0xff]
    %v3908 = vld [vmem:[%s240 + $0x358] sm:$0xff]
    %v3909 = vld [vmem:[%s240 + $0x360] sm:$0xff]
    %v3910 = vld [vmem:[%s240 + $0x368] sm:$0xff]
    %v3911 = vld [vmem:[%s240 + $0x370] sm:$0xff]
    %v3912 = vld [vmem:[%s240 + $0x378] sm:$0xff]
    %v3913 = vld [vmem:[%s240 + $0x380] sm:$0xff]
    %v3914 = vld [vmem:[%s240 + $0x388] sm:$0xff]
    %v3915 = vld [vmem:[%s240 + $0x390] sm:$0xff]
    %v3916 = vld [vmem:[%s240 + $0x398] sm:$0xff]
    %v3917 = vld [vmem:[%s240 + $0x3a0] sm:$0xff]
    %v3918 = vld [vmem:[%s240 + $0x3a8] sm:$0xff]
    %v3919 = vld [vmem:[%s240 + $0x3b0] sm:$0xff]
    %v3920 = vld [vmem:[%s240 + $0x3b8] sm:$0xff]
    %v3921 = vld [vmem:[%s240 + $0x3c0] sm:$0xff]
    %v3922 = vld [vmem:[%s240 + $0x3c8] sm:$0xff]
    %v3923 = vld [vmem:[%s240 + $0x3d0] sm:$0xff]
    %v3924 = vld [vmem:[%s240 + $0x3d8] sm:$0xff]
    %v3925 = vld [vmem:[%s240 + $0x3e0] sm:$0xff]
    %v3926 = vld [vmem:[%s240 + $0x3e8] sm:$0xff]
    %v3927 = vld [vmem:[%s240 + $0x3f0] sm:$0xff]
    %v3928 = vld [vmem:[%s240 + $0x3f8] sm:$0xff]
    %v3929 = vld [vmem:[%s240 + $0x400] sm:$0xff]
    %v3930 = vld [vmem:[%s240 + $0x408] sm:$0xff]
    %v3931 = vld [vmem:[%s240 + $0x410] sm:$0xff]
    %v3932 = vld [vmem:[%s240 + $0x418] sm:$0xff]
    %v3933 = vld [vmem:[%s240 + $0x420] sm:$0xff]
    %v3934 = vld [vmem:[%s240 + $0x428] sm:$0xff]
    %v3935 = vld [vmem:[%s240 + $0x430] sm:$0xff]
    %v3936 = vld [vmem:[%s240 + $0x438] sm:$0xff]
    %v3937 = vld [vmem:[%s240 + $0x440] sm:$0xff]
    %v3938 = vld [vmem:[%s240 + $0x448] sm:$0xff]
    %v3939 = vld [vmem:[%s240 + $0x450] sm:$0xff]
    %v3940 = vld [vmem:[%s240 + $0x458] sm:$0xff]
    %v3941 = vld [vmem:[%s240 + $0x460] sm:$0xff]
    %v3942 = vld [vmem:[%s240 + $0x468] sm:$0xff]
    %v3943 = vld [vmem:[%s240 + $0x470] sm:$0xff]
    %v3944 = vld [vmem:[%s240 + $0x478] sm:$0xff]
    %v3945 = vld [vmem:[%s240 + $0x480] sm:$0xff]
    %v3946 = vld [vmem:[%s240 + $0x488] sm:$0xff]
    %v3947 = vld [vmem:[%s240 + $0x490] sm:$0xff]
    %v3948 = vld [vmem:[%s240 + $0x498] sm:$0xff]
    %v3949 = vld [vmem:[%s240 + $0x4a0] sm:$0xff]
    %v3950 = vld [vmem:[%s240 + $0x4a8] sm:$0xff]
    %v3951 = vld [vmem:[%s240 + $0x4b0] sm:$0xff]
    %v3952 = vld [vmem:[%s240 + $0x4b8] sm:$0xff]
    %v3953 = vld [vmem:[%s240 + $0x4c0] sm:$0xff]
    %v3954 = vld [vmem:[%s240 + $0x4c8] sm:$0xff]
    %v3955 = vld [vmem:[%s240 + $0x4d0] sm:$0xff]
    %v3956 = vld [vmem:[%s240 + $0x4d8] sm:$0xff]
    %v3957 = vld [vmem:[%s240 + $0x4e0] sm:$0xff]
    %v3958 = vld [vmem:[%s240 + $0x4e8] sm:$0xff]
    %v3959 = vld [vmem:[%s240 + $0x4f0] sm:$0xff]
    %v3960 = vld [vmem:[%s240 + $0x4f8] sm:$0xff]
    %v3961 = vld [vmem:[%s240 + $0x500] sm:$0xff]
    %v3962 = vld [vmem:[%s240 + $0x508] sm:$0xff]
    %v3963 = vld [vmem:[%s240 + $0x510] sm:$0xff]
    %v3964 = vld [vmem:[%s240 + $0x518] sm:$0xff]
    %v3965 = vld [vmem:[%s240 + $0x520] sm:$0xff]
    %v3966 = vld [vmem:[%s240 + $0x528] sm:$0xff]
    %v3967 = vld [vmem:[%s240 + $0x530] sm:$0xff]
    %v3968 = vld [vmem:[%s240 + $0x538] sm:$0xff]
    %v3969 = vld [vmem:[%s240 + $0x540] sm:$0xff]
    %v3970 = vld [vmem:[%s240 + $0x548] sm:$0xff]
    %v3971 = vld [vmem:[%s240 + $0x550] sm:$0xff]
    %v3972 = vld [vmem:[%s240 + $0x558] sm:$0xff]
    %v3973 = vld [vmem:[%s240 + $0x560] sm:$0xff]
    %v3974 = vld [vmem:[%s240 + $0x568] sm:$0xff]
    %v3975 = vld [vmem:[%s240 + $0x570] sm:$0xff]
    %v3976 = vld [vmem:[%s240 + $0x578] sm:$0xff]
    %v3977 = vld [vmem:[%s240 + $0x580] sm:$0xff]
    %v3978 = vld [vmem:[%s240 + $0x588] sm:$0xff]
    %v3979 = vld [vmem:[%s240 + $0x590] sm:$0xff]
    %v3980 = vld [vmem:[%s240 + $0x598] sm:$0xff]
    %v3981 = vld [vmem:[%s240 + $0x5a0] sm:$0xff]
    %v3982 = vld [vmem:[%s240 + $0x5a8] sm:$0xff]
    %v3983 = vld [vmem:[%s240 + $0x5b0] sm:$0xff]
    %v3984 = vld [vmem:[%s240 + $0x5b8] sm:$0xff]
    %v3985 = vld [vmem:[%s240 + $0x5c0] sm:$0xff]
    %v3986 = vld [vmem:[%s240 + $0x5c8] sm:$0xff]
    %v3987 = vld [vmem:[%s240 + $0x5d0] sm:$0xff]
    %v3988 = vld [vmem:[%s240 + $0x5d8] sm:$0xff]
    %v3989 = vld [vmem:[%s240 + $0x5e0] sm:$0xff]
    %v3990 = vld [vmem:[%s240 + $0x5e8] sm:$0xff]
    %v3991 = vld [vmem:[%s240 + $0x5f0] sm:$0xff]
    %v3992 = vld [vmem:[%s240 + $0x5f8] sm:$0xff]
    %v3993 = vld [vmem:[%s240 + $0x600] sm:$0xff]
    %v3994 = vld [vmem:[%s240 + $0x608] sm:$0xff]
    %v3995 = vld [vmem:[%s240 + $0x610] sm:$0xff]
    %v3996 = vld [vmem:[%s240 + $0x618] sm:$0xff]
    %v3997 = vld [vmem:[%s240 + $0x620] sm:$0xff]
    %v3998 = vld [vmem:[%s240 + $0x628] sm:$0xff]
    %v3999 = vld [vmem:[%s240 + $0x630] sm:$0xff]
    %v4000 = vld [vmem:[%s240 + $0x638] sm:$0xff]
    %v4001 = vld [vmem:[%s240 + $0x640] sm:$0xff]
    %v4002 = vld [vmem:[%s240 + $0x648] sm:$0xff]
    %v4003 = vld [vmem:[%s240 + $0x650] sm:$0xff]
    %v4004 = vld [vmem:[%s240 + $0x658] sm:$0xff]
    %v4005 = vld [vmem:[%s240 + $0x660] sm:$0xff]
    %v4006 = vld [vmem:[%s240 + $0x668] sm:$0xff]
    %v4007 = vld [vmem:[%s240 + $0x670] sm:$0xff]
    %v4008 = vld [vmem:[%s240 + $0x678] sm:$0xff]
    %v4009 = vld [vmem:[%s240 + $0x680] sm:$0xff]
    %v4010 = vld [vmem:[%s240 + $0x688] sm:$0xff]
    %v4011 = vld [vmem:[%s240 + $0x690] sm:$0xff]
    %v4012 = vld [vmem:[%s240 + $0x698] sm:$0xff]
    %v4013 = vld [vmem:[%s240 + $0x6a0] sm:$0xff]
    %v4014 = vld [vmem:[%s240 + $0x6a8] sm:$0xff]
    %v4015 = vld [vmem:[%s240 + $0x6b0] sm:$0xff]
    %v4016 = vld [vmem:[%s240 + $0x6b8] sm:$0xff]
    %v4017 = vld [vmem:[%s240 + $0x6c0] sm:$0xff]
    %v4018 = vld [vmem:[%s240 + $0x6c8] sm:$0xff]
    %v4019 = vld [vmem:[%s240 + $0x6d0] sm:$0xff]
    %v4020 = vld [vmem:[%s240 + $0x6d8] sm:$0xff]
    %v4021 = vld [vmem:[%s240 + $0x6e0] sm:$0xff]
    %v4022 = vld [vmem:[%s240 + $0x6e8] sm:$0xff]
    %v4023 = vld [vmem:[%s240 + $0x6f0] sm:$0xff]
    %v4024 = vld [vmem:[%s240 + $0x6f8] sm:$0xff]
    %v4025 = vld [vmem:[%s240 + $0x700] sm:$0xff]
    %v4026 = vld [vmem:[%s240 + $0x708] sm:$0xff]
    %v4027 = vld [vmem:[%s240 + $0x710] sm:$0xff]
    %v4028 = vld [vmem:[%s240 + $0x718] sm:$0xff]
    %v4029 = vld [vmem:[%s240 + $0x720] sm:$0xff]
    %v4030 = vld [vmem:[%s240 + $0x728] sm:$0xff]
    %v4031 = vld [vmem:[%s240 + $0x730] sm:$0xff]
    %v4032 = vld [vmem:[%s240 + $0x738] sm:$0xff]
    %v4033 = vld [vmem:[%s240 + $0x740] sm:$0xff]
    %v4034 = vld [vmem:[%s240 + $0x748] sm:$0xff]
    %v4035 = vld [vmem:[%s240 + $0x750] sm:$0xff]
    %v4036 = vld [vmem:[%s240 + $0x758] sm:$0xff]
    %v4037 = vld [vmem:[%s240 + $0x760] sm:$0xff]
    %v4038 = vld [vmem:[%s240 + $0x768] sm:$0xff]
    %v4039 = vld [vmem:[%s240 + $0x770] sm:$0xff]
    %v4040 = vld [vmem:[%s240 + $0x778] sm:$0xff]
    %v4041 = vld [vmem:[%s240 + $0x780] sm:$0xff]
    %v4042 = vld [vmem:[%s240 + $0x788] sm:$0xff]
    %v4043 = vld [vmem:[%s240 + $0x790] sm:$0xff]
    %v4044 = vld [vmem:[%s240 + $0x798] sm:$0xff]
    %v4045 = vld [vmem:[%s240 + $0x7a0] sm:$0xff]
    %v4046 = vld [vmem:[%s240 + $0x7a8] sm:$0xff]
    %v4047 = vld [vmem:[%s240 + $0x7b0] sm:$0xff]
    %v4048 = vld [vmem:[%s240 + $0x7b8] sm:$0xff]
    %v4049 = vld [vmem:[%s240 + $0x7c0] sm:$0xff]
    %v4050 = vld [vmem:[%s240 + $0x7c8] sm:$0xff]
    %v4051 = vld [vmem:[%s240 + $0x7d0] sm:$0xff]
    %v4052 = vld [vmem:[%s240 + $0x7d8] sm:$0xff]
    %v4053 = vld [vmem:[%s240 + $0x7e0] sm:$0xff]
    %v4054 = vld [vmem:[%s240 + $0x7e8] sm:$0xff]
    %v4055 = vld [vmem:[%s240 + $0x7f0] sm:$0xff]
    %v4056 = vld [vmem:[%s240 + $0x7f8] sm:$0xff]
    %v4059 = vcombine.high %v3799, %v3799
    %v4061 = vunpack.c.l.s4 1966171168
    %v4062 = vunpack.c.0.s8 %v4061
    %v4063 = vlaneseq
    %v4064 = vshrl.u32 %v4063, 7
    %v4065 = vsub.s32 %v4062, %v4064
    %v4066 = vrot.slane %v3799, %v4065
    %v4068 = vunpack.c.l.s4 1966171168
    %v4069 = vunpack.c.0.s8 %v4068
    %v4070 = vlaneseq
    %v4071 = vshrl.u32 %v4070, 7
    %v4072 = vsub.s32 %v4069, %v4071
    %v4073 = vrot.slane %v4059, %v4072
    %v4074 = vcombine.high %v4066, %v4066
    %v4075 = vcombine.high %v4073, %v4073
    %v4077 = vunpack.c.l.s4 1966171168
    %v4078 = vunpack.c.0.s8 %v4077
    %v4079 = vlaneseq
    %v4080 = vshrl.u32 %v4079, 7
    %v4081 = vsub.s32 %v4078, %v4080
    %v4082 = vrot.slane %v4066, %v4081
    %v4084 = vunpack.c.l.s4 1966171168
    %v4085 = vunpack.c.0.s8 %v4084
    %v4086 = vlaneseq
    %v4087 = vshrl.u32 %v4086, 7
    %v4088 = vsub.s32 %v4085, %v4087
    %v4089 = vrot.slane %v4073, %v4088
    %v4091 = vunpack.c.l.s4 1966171168
    %v4092 = vunpack.c.0.s8 %v4091
    %v4093 = vlaneseq
    %v4094 = vshrl.u32 %v4093, 7
    %v4095 = vsub.s32 %v4092, %v4094
    %v4096 = vrot.slane %v4074, %v4095
    %v4098 = vunpack.c.l.s4 1966171168
    %v4099 = vunpack.c.0.s8 %v4098
    %v4100 = vlaneseq
    %v4101 = vshrl.u32 %v4100, 7
    %v4102 = vsub.s32 %v4099, %v4101
    %v4103 = vrot.slane %v4075, %v4102
    %v4104 = vcombine.high %v4082, %v4082
    %v4105 = vcombine.high %v4089, %v4089
    %v4106 = vcombine.high %v4096, %v4096
    %v4107 = vcombine.high %v4103, %v4103
    %v4108 = vcombine.high %v3800, %v3800
    %v4110 = vunpack.c.l.s4 1966171168
    %v4111 = vunpack.c.0.s8 %v4110
    %v4112 = vlaneseq
    %v4113 = vshrl.u32 %v4112, 7
    %v4114 = vsub.s32 %v4111, %v4113
    %v4115 = vrot.slane %v3800, %v4114
    %v4117 = vunpack.c.l.s4 1966171168
    %v4118 = vunpack.c.0.s8 %v4117
    %v4119 = vlaneseq
    %v4120 = vshrl.u32 %v4119, 7
    %v4121 = vsub.s32 %v4118, %v4120
    %v4122 = vrot.slane %v4108, %v4121
    %v4123 = vcombine.high %v4115, %v4115
    %v4124 = vcombine.high %v4122, %v4122
    %v4126 = vunpack.c.l.s4 1966171168
    %v4127 = vunpack.c.0.s8 %v4126
    %v4128 = vlaneseq
    %v4129 = vshrl.u32 %v4128, 7
    %v4130 = vsub.s32 %v4127, %v4129
    %v4131 = vrot.slane %v4115, %v4130
    %v4133 = vunpack.c.l.s4 1966171168
    %v4134 = vunpack.c.0.s8 %v4133
    %v4135 = vlaneseq
    %v4136 = vshrl.u32 %v4135, 7
    %v4137 = vsub.s32 %v4134, %v4136
    %v4138 = vrot.slane %v4122, %v4137
    %v4140 = vunpack.c.l.s4 1966171168
    %v4141 = vunpack.c.0.s8 %v4140
    %v4142 = vlaneseq
    %v4143 = vshrl.u32 %v4142, 7
    %v4144 = vsub.s32 %v4141, %v4143
    %v4145 = vrot.slane %v4123, %v4144
    %v4147 = vunpack.c.l.s4 1966171168
    %v4148 = vunpack.c.0.s8 %v4147
    %v4149 = vlaneseq
    %v4150 = vshrl.u32 %v4149, 7
    %v4151 = vsub.s32 %v4148, %v4150
    %v4152 = vrot.slane %v4124, %v4151
    %v4153 = vcombine.high %v4131, %v4131
    %v4154 = vcombine.high %v4138, %v4138
    %v4155 = vcombine.high %v4145, %v4145
    %v4156 = vcombine.high %v4152, %v4152
    %4173 = vmatprep.subr.bf16.mxu0 %v3802
    %4174 = vmatpush1.bf16.msra.mxu0 %v3801
    %4175 = vmatprep.subr.bf16.mxu0 %v3804
    %4176 = vmatpush1.bf16.msra.mxu0 %v3803
    %4177 = vmatprep.subr.bf16.mxu0 %v3806
    %4178 = vmatpush1.bf16.msra.mxu0 %v3805
    %4179 = vmatprep.subr.bf16.mxu0 %v3808
    %4180 = vmatpush1.bf16.msra.mxu0 %v3807
    %4181 = vmatprep.subr.bf16.mxu0 %v3810
    %4182 = vmatpush1.bf16.msra.mxu0 %v3809
    %4183 = vmatprep.subr.bf16.mxu0 %v3812
    %4184 = vmatpush1.bf16.msra.mxu0 %v3811
    %4185 = vmatprep.subr.bf16.mxu0 %v3814
    %4186 = vmatpush1.bf16.msra.mxu0 %v3813
    %4187 = vmatprep.subr.bf16.mxu0 %v3816
    %4188 = vmatpush1.bf16.msra.mxu0 %v3815
    %4189 = vmatprep.subr.bf16.mxu0 %v3818
    %4190 = vmatpush1.bf16.msra.mxu0 %v3817
    %4191 = vmatprep.subr.bf16.mxu0 %v3820
    %4192 = vmatpush1.bf16.msra.mxu0 %v3819
    %4193 = vmatprep.subr.bf16.mxu0 %v3822
    %4194 = vmatpush1.bf16.msra.mxu0 %v3821
    %4195 = vmatprep.subr.bf16.mxu0 %v3824
    %4196 = vmatpush1.bf16.msra.mxu0 %v3823
    %4197 = vmatprep.subr.bf16.mxu0 %v3826
    %4198 = vmatpush1.bf16.msra.mxu0 %v3825
    %4199 = vmatprep.subr.bf16.mxu0 %v3828
    %4200 = vmatpush1.bf16.msra.mxu0 %v3827
    %4201 = vmatprep.subr.bf16.mxu0 %v3830
    %4202 = vmatpush1.bf16.msra.mxu0 %v3829
    %4203 = vmatprep.subr.bf16.mxu0 %v3832
    %4204 = vmatpush1.bf16.msra.mxu0 %v3831
    %4205 = vmatprep.mubr.bf16.mxu0 %v4096
    %4206 = vmatmul.mubr.bf16.gmra.mrb[0].mxu0 %v4082
    %v4207 = vpop.f32.mrb[0].mxu0
    %v4208 = vadd.f32 0.0, %v4207
    %v4209 = vpop.f32.mrb[0].mxu0
    %v4210 = vadd.f32 0.0, %v4209
    %v4211 = vpop.f32.mrb[0].mxu0
    %v4212 = vpop.f32.mrb[0].mxu0
    %4213 = vdwg.mxu0
    %4214 = vmatprep.subr.bf16.mxu0 %v3834
    %4215 = vmatpush1.bf16.msra.mxu0 %v3833
    %4216 = vmatprep.subr.bf16.mxu0 %v3836
    %4217 = vmatpush1.bf16.msra.mxu0 %v3835
    %4218 = vmatprep.subr.bf16.mxu0 %v3838
    %4219 = vmatpush1.bf16.msra.mxu0 %v3837
    %4220 = vmatprep.subr.bf16.mxu0 %v3840
    %4221 = vmatpush1.bf16.msra.mxu0 %v3839
    %4222 = vmatprep.subr.bf16.mxu0 %v3842
    %4223 = vmatpush1.bf16.msra.mxu0 %v3841
    %4224 = vmatprep.subr.bf16.mxu0 %v3844
    %4225 = vmatpush1.bf16.msra.mxu0 %v3843
    %4226 = vmatprep.subr.bf16.mxu0 %v3846
    %4227 = vmatpush1.bf16.msra.mxu0 %v3845
    %4228 = vmatprep.subr.bf16.mxu0 %v3848
    %4229 = vmatpush1.bf16.msra.mxu0 %v3847
    %4230 = vmatprep.subr.bf16.mxu0 %v3850
    %4231 = vmatpush1.bf16.msra.mxu0 %v3849
    %4232 = vmatprep.subr.bf16.mxu0 %v3852
    %4233 = vmatpush1.bf16.msra.mxu0 %v3851
    %4234 = vmatprep.subr.bf16.mxu0 %v3854
    %4235 = vmatpush1.bf16.msra.mxu0 %v3853
    %4236 = vmatprep.subr.bf16.mxu0 %v3856
    %4237 = vmatpush1.bf16.msra.mxu0 %v3855
    %4238 = vmatprep.subr.bf16.mxu0 %v3858
    %4239 = vmatpush1.bf16.msra.mxu0 %v3857
    %4240 = vmatprep.subr.bf16.mxu0 %v3860
    %4241 = vmatpush1.bf16.msra.mxu0 %v3859
    %4242 = vmatprep.subr.bf16.mxu0 %v3862
    %4243 = vmatpush1.bf16.msra.mxu0 %v3861
    %4244 = vmatprep.subr.bf16.mxu0 %v3864
    %4245 = vmatpush1.bf16.msra.mxu0 %v3863
    %4246 = vmatprep.mubr.bf16.mxu0 %v4106
    %4247 = vmatmul.mubr.bf16.gmra.mrb[0].mxu0 %v4104
    %v4248 = vpop.f32.mrb[0].mxu0
    %v4249 = vadd.f32 %v4208, %v4248
    %v4250 = vpop.f32.mrb[0].mxu0
    %v4251 = vadd.f32 %v4210, %v4250
    %v4252 = vpop.f32.mrb[0].mxu0
    %v4253 = vpop.f32.mrb[0].mxu0
    %4254 = vdwg.mxu0
    %4255 = vmatprep.subr.bf16.mxu0 %v3866
    %4256 = vmatpush1.bf16.msra.mxu0 %v3865
    %4257 = vmatprep.subr.bf16.mxu0 %v3868
    %4258 = vmatpush1.bf16.msra.mxu0 %v3867
    %4259 = vmatprep.subr.bf16.mxu0 %v3870
    %4260 = vmatpush1.bf16.msra.mxu0 %v3869
    %4261 = vmatprep.subr.bf16.mxu0 %v3872
    %4262 = vmatpush1.bf16.msra.mxu0 %v3871
    %4263 = vmatprep.subr.bf16.mxu0 %v3874
    %4264 = vmatpush1.bf16.msra.mxu0 %v3873
    %4265 = vmatprep.subr.bf16.mxu0 %v3876
    %4266 = vmatpush1.bf16.msra.mxu0 %v3875
    %4267 = vmatprep.subr.bf16.mxu0 %v3878
    %4268 = vmatpush1.bf16.msra.mxu0 %v3877
    %4269 = vmatprep.subr.bf16.mxu0 %v3880
    %4270 = vmatpush1.bf16.msra.mxu0 %v3879
    %4271 = vmatprep.subr.bf16.mxu0 %v3882
    %4272 = vmatpush1.bf16.msra.mxu0 %v3881
    %4273 = vmatprep.subr.bf16.mxu0 %v3884
    %4274 = vmatpush1.bf16.msra.mxu0 %v3883
    %4275 = vmatprep.subr.bf16.mxu0 %v3886
    %4276 = vmatpush1.bf16.msra.mxu0 %v3885
    %4277 = vmatprep.subr.bf16.mxu0 %v3888
    %4278 = vmatpush1.bf16.msra.mxu0 %v3887
    %4279 = vmatprep.subr.bf16.mxu0 %v3890
    %4280 = vmatpush1.bf16.msra.mxu0 %v3889
    %4281 = vmatprep.subr.bf16.mxu0 %v3892
    %4282 = vmatpush1.bf16.msra.mxu0 %v3891
    %4283 = vmatprep.subr.bf16.mxu0 %v3894
    %4284 = vmatpush1.bf16.msra.mxu0 %v3893
    %4285 = vmatprep.subr.bf16.mxu0 %v3896
    %4286 = vmatpush1.bf16.msra.mxu0 %v3895
    %4287 = vmatprep.mubr.bf16.mxu0 %v4103
    %4288 = vmatmul.mubr.bf16.gmra.mrb[0].mxu0 %v4089
    %v4289 = vpop.f32.mrb[0].mxu0
    %v4290 = vadd.f32 %v4249, %v4289
    %v4291 = vpop.f32.mrb[0].mxu0
    %v4292 = vadd.f32 %v4251, %v4291
    %v4293 = vpop.f32.mrb[0].mxu0
    %v4294 = vpop.f32.mrb[0].mxu0
    %4295 = vdwg.mxu0
    %4296 = vmatprep.subr.bf16.mxu0 %v3898
    %4297 = vmatpush1.bf16.msra.mxu0 %v3897
    %4298 = vmatprep.subr.bf16.mxu0 %v3900
    %4299 = vmatpush1.bf16.msra.mxu0 %v3899
    %4300 = vmatprep.subr.bf16.mxu0 %v3902
    %4301 = vmatpush1.bf16.msra.mxu0 %v3901
    %4302 = vmatprep.subr.bf16.mxu0 %v3904
    %4303 = vmatpush1.bf16.msra.mxu0 %v3903
    %4304 = vmatprep.subr.bf16.mxu0 %v3906
    %4305 = vmatpush1.bf16.msra.mxu0 %v3905
    %4306 = vmatprep.subr.bf16.mxu0 %v3908
    %4307 = vmatpush1.bf16.msra.mxu0 %v3907
    %4308 = vmatprep.subr.bf16.mxu0 %v3910
    %4309 = vmatpush1.bf16.msra.mxu0 %v3909
    %4310 = vmatprep.subr.bf16.mxu0 %v3912
    %4311 = vmatpush1.bf16.msra.mxu0 %v3911
    %4312 = vmatprep.subr.bf16.mxu0 %v3914
    %4313 = vmatpush1.bf16.msra.mxu0 %v3913
    %4314 = vmatprep.subr.bf16.mxu0 %v3916
    %4315 = vmatpush1.bf16.msra.mxu0 %v3915
    %4316 = vmatprep.subr.bf16.mxu0 %v3918
    %4317 = vmatpush1.bf16.msra.mxu0 %v3917
    %4318 = vmatprep.subr.bf16.mxu0 %v3920
    %4319 = vmatpush1.bf16.msra.mxu0 %v3919
    %4320 = vmatprep.subr.bf16.mxu0 %v3922
    %4321 = vmatpush1.bf16.msra.mxu0 %v3921
    %4322 = vmatprep.subr.bf16.mxu0 %v3924
    %4323 = vmatpush1.bf16.msra.mxu0 %v3923
    %4324 = vmatprep.subr.bf16.mxu0 %v3926
    %4325 = vmatpush1.bf16.msra.mxu0 %v3925
    %4326 = vmatprep.subr.bf16.mxu0 %v3928
    %4327 = vmatpush1.bf16.msra.mxu0 %v3927
    %4328 = vmatprep.mubr.bf16.mxu0 %v4107
    %4329 = vmatmul.mubr.bf16.gmra.mrb[0].mxu0 %v4105
    %v4330 = vpop.f32.mrb[0].mxu0
    %v4331 = vadd.f32 %v4290, %v4330
    %v4332 = vpop.f32.mrb[0].mxu0
    %v4333 = vadd.f32 %v4292, %v4332
    %v4334 = vpop.f32.mrb[0].mxu0
    %v4335 = vpop.f32.mrb[0].mxu0
    %4336 = vdwg.mxu0
    %4337 = vmatprep.subr.bf16.mxu0 %v3930
    %4338 = vmatpush1.bf16.msra.mxu0 %v3929
    %4339 = vmatprep.subr.bf16.mxu0 %v3932
    %4340 = vmatpush1.bf16.msra.mxu0 %v3931
    %4341 = vmatprep.subr.bf16.mxu0 %v3934
    %4342 = vmatpush1.bf16.msra.mxu0 %v3933
    %4343 = vmatprep.subr.bf16.mxu0 %v3936
    %4344 = vmatpush1.bf16.msra.mxu0 %v3935
    %4345 = vmatprep.subr.bf16.mxu0 %v3938
    %4346 = vmatpush1.bf16.msra.mxu0 %v3937
    %4347 = vmatprep.subr.bf16.mxu0 %v3940
    %4348 = vmatpush1.bf16.msra.mxu0 %v3939
    %4349 = vmatprep.subr.bf16.mxu0 %v3942
    %4350 = vmatpush1.bf16.msra.mxu0 %v3941
    %4351 = vmatprep.subr.bf16.mxu0 %v3944
    %4352 = vmatpush1.bf16.msra.mxu0 %v3943
    %4353 = vmatprep.subr.bf16.mxu0 %v3946
    %4354 = vmatpush1.bf16.msra.mxu0 %v3945
    %4355 = vmatprep.subr.bf16.mxu0 %v3948
    %4356 = vmatpush1.bf16.msra.mxu0 %v3947
    %4357 = vmatprep.subr.bf16.mxu0 %v3950
    %4358 = vmatpush1.bf16.msra.mxu0 %v3949
    %4359 = vmatprep.subr.bf16.mxu0 %v3952
    %4360 = vmatpush1.bf16.msra.mxu0 %v3951
    %4361 = vmatprep.subr.bf16.mxu0 %v3954
    %4362 = vmatpush1.bf16.msra.mxu0 %v3953
    %4363 = vmatprep.subr.bf16.mxu0 %v3956
    %4364 = vmatpush1.bf16.msra.mxu0 %v3955
    %4365 = vmatprep.subr.bf16.mxu0 %v3958
    %4366 = vmatpush1.bf16.msra.mxu0 %v3957
    %4367 = vmatprep.subr.bf16.mxu0 %v3960
    %4368 = vmatpush1.bf16.msra.mxu0 %v3959
    %4369 = vmatprep.mubr.bf16.mxu0 %v4145
    %4370 = vmatmul.mubr.bf16.gmra.mrb[0].mxu0 %v4131
    %v4371 = vpop.f32.mrb[0].mxu0
    %v4372 = vadd.f32 %v4331, %v4371
    %v4373 = vpop.f32.mrb[0].mxu0
    %v4374 = vadd.f32 %v4333, %v4373
    %v4375 = vpop.f32.mrb[0].mxu0
    %v4376 = vpop.f32.mrb[0].mxu0
    %4377 = vdwg.mxu0
    %4378 = vmatprep.subr.bf16.mxu0 %v3962
    %4379 = vmatpush1.bf16.msra.mxu0 %v3961
    %4380 = vmatprep.subr.bf16.mxu0 %v3964
    %4381 = vmatpush1.bf16.msra.mxu0 %v3963
    %4382 = vmatprep.subr.bf16.mxu0 %v3966
    %4383 = vmatpush1.bf16.msra.mxu0 %v3965
    %4384 = vmatprep.subr.bf16.mxu0 %v3968
    %4385 = vmatpush1.bf16.msra.mxu0 %v3967
    %4386 = vmatprep.subr.bf16.mxu0 %v3970
    %4387 = vmatpush1.bf16.msra.mxu0 %v3969
    %4388 = vmatprep.subr.bf16.mxu0 %v3972
    %4389 = vmatpush1.bf16.msra.mxu0 %v3971
    %4390 = vmatprep.subr.bf16.mxu0 %v3974
    %4391 = vmatpush1.bf16.msra.mxu0 %v3973
    %4392 = vmatprep.subr.bf16.mxu0 %v3976
    %4393 = vmatpush1.bf16.msra.mxu0 %v3975
    %4394 = vmatprep.subr.bf16.mxu0 %v3978
    %4395 = vmatpush1.bf16.msra.mxu0 %v3977
    %4396 = vmatprep.subr.bf16.mxu0 %v3980
    %4397 = vmatpush1.bf16.msra.mxu0 %v3979
    %4398 = vmatprep.subr.bf16.mxu0 %v3982
    %4399 = vmatpush1.bf16.msra.mxu0 %v3981
    %4400 = vmatprep.subr.bf16.mxu0 %v3984
    %4401 = vmatpush1.bf16.msra.mxu0 %v3983
    %4402 = vmatprep.subr.bf16.mxu0 %v3986
    %4403 = vmatpush1.bf16.msra.mxu0 %v3985
    %4404 = vmatprep.subr.bf16.mxu0 %v3988
    %4405 = vmatpush1.bf16.msra.mxu0 %v3987
    %4406 = vmatprep.subr.bf16.mxu0 %v3990
    %4407 = vmatpush1.bf16.msra.mxu0 %v3989
    %4408 = vmatprep.subr.bf16.mxu0 %v3992
    %4409 = vmatpush1.bf16.msra.mxu0 %v3991
    %4410 = vmatprep.mubr.bf16.mxu0 %v4155
    %4411 = vmatmul.mubr.bf16.gmra.mrb[0].mxu0 %v4153
    %v4412 = vpop.f32.mrb[0].mxu0
    %v4413 = vadd.f32 %v4372, %v4412
    %v4414 = vpop.f32.mrb[0].mxu0
    %v4415 = vadd.f32 %v4374, %v4414
    %v4416 = vpop.f32.mrb[0].mxu0
    %v4417 = vpop.f32.mrb[0].mxu0
    %4418 = vdwg.mxu0
    %4419 = vmatprep.subr.bf16.mxu0 %v3994
    %4420 = vmatpush1.bf16.msra.mxu0 %v3993
    %4421 = vmatprep.subr.bf16.mxu0 %v3996
    %4422 = vmatpush1.bf16.msra.mxu0 %v3995
    %4423 = vmatprep.subr.bf16.mxu0 %v3998
    %4424 = vmatpush1.bf16.msra.mxu0 %v3997
    %4425 = vmatprep.subr.bf16.mxu0 %v4000
    %4426 = vmatpush1.bf16.msra.mxu0 %v3999
    %4427 = vmatprep.subr.bf16.mxu0 %v4002
    %4428 = vmatpush1.bf16.msra.mxu0 %v4001
    %4429 = vmatprep.subr.bf16.mxu0 %v4004
    %4430 = vmatpush1.bf16.msra.mxu0 %v4003
    %4431 = vmatprep.subr.bf16.mxu0 %v4006
    %4432 = vmatpush1.bf16.msra.mxu0 %v4005
    %4433 = vmatprep.subr.bf16.mxu0 %v4008
    %4434 = vmatpush1.bf16.msra.mxu0 %v4007
    %4435 = vmatprep.subr.bf16.mxu0 %v4010
    %4436 = vmatpush1.bf16.msra.mxu0 %v4009
    %4437 = vmatprep.subr.bf16.mxu0 %v4012
    %4438 = vmatpush1.bf16.msra.mxu0 %v4011
    %4439 = vmatprep.subr.bf16.mxu0 %v4014
    %4440 = vmatpush1.bf16.msra.mxu0 %v4013
    %4441 = vmatprep.subr.bf16.mxu0 %v4016
    %4442 = vmatpush1.bf16.msra.mxu0 %v4015
    %4443 = vmatprep.subr.bf16.mxu0 %v4018
    %4444 = vmatpush1.bf16.msra.mxu0 %v4017
    %4445 = vmatprep.subr.bf16.mxu0 %v4020
    %4446 = vmatpush1.bf16.msra.mxu0 %v4019
    %4447 = vmatprep.subr.bf16.mxu0 %v4022
    %4448 = vmatpush1.bf16.msra.mxu0 %v4021
    %4449 = vmatprep.subr.bf16.mxu0 %v4024
    %4450 = vmatpush1.bf16.msra.mxu0 %v4023
    %4451 = vmatprep.mubr.bf16.mxu0 %v4152
    %4452 = vmatmul.mubr.bf16.gmra.mrb[0].mxu0 %v4138
    %v4453 = vpop.f32.mrb[0].mxu0
    %v4454 = vadd.f32 %v4413, %v4453
    %v4455 = vpop.f32.mrb[0].mxu0
    %v4456 = vadd.f32 %v4415, %v4455
    %v4457 = vpop.f32.mrb[0].mxu0
    %v4458 = vpop.f32.mrb[0].mxu0
    %4459 = vdwg.mxu0
    %4460 = vmatprep.subr.bf16.mxu0 %v4026
    %4461 = vmatpush1.bf16.msra.mxu0 %v4025
    %4462 = vmatprep.subr.bf16.mxu0 %v4028
    %4463 = vmatpush1.bf16.msra.mxu0 %v4027
    %4464 = vmatprep.subr.bf16.mxu0 %v4030
    %4465 = vmatpush1.bf16.msra.mxu0 %v4029
    %4466 = vmatprep.subr.bf16.mxu0 %v4032
    %4467 = vmatpush1.bf16.msra.mxu0 %v4031
    %4468 = vmatprep.subr.bf16.mxu0 %v4034
    %4469 = vmatpush1.bf16.msra.mxu0 %v4033
    %4470 = vmatprep.subr.bf16.mxu0 %v4036
    %4471 = vmatpush1.bf16.msra.mxu0 %v4035
    %4472 = vmatprep.subr.bf16.mxu0 %v4038
    %4473 = vmatpush1.bf16.msra.mxu0 %v4037
    %4474 = vmatprep.subr.bf16.mxu0 %v4040
    %4475 = vmatpush1.bf16.msra.mxu0 %v4039
    %4476 = vmatprep.subr.bf16.mxu0 %v4042
    %4477 = vmatpush1.bf16.msra.mxu0 %v4041
    %4478 = vmatprep.subr.bf16.mxu0 %v4044
    %4479 = vmatpush1.bf16.msra.mxu0 %v4043
    %4480 = vmatprep.subr.bf16.mxu0 %v4046
    %4481 = vmatpush1.bf16.msra.mxu0 %v4045
    %4482 = vmatprep.subr.bf16.mxu0 %v4048
    %4483 = vmatpush1.bf16.msra.mxu0 %v4047
    %4484 = vmatprep.subr.bf16.mxu0 %v4050
    %4485 = vmatpush1.bf16.msra.mxu0 %v4049
    %4486 = vmatprep.subr.bf16.mxu0 %v4052
    %4487 = vmatpush1.bf16.msra.mxu0 %v4051
    %4488 = vmatprep.subr.bf16.mxu0 %v4054
    %4489 = vmatpush1.bf16.msra.mxu0 %v4053
    %4490 = vmatprep.subr.bf16.mxu0 %v4056
    %4491 = vmatpush1.bf16.msra.mxu0 %v4055
    %4492 = vmatprep.mubr.bf16.mxu0 %v4156
    %4493 = vmatmul.mubr.bf16.gmra.mrb[0].mxu0 %v4154
    %v4494 = vpop.f32.mrb[0].mxu0
    %v4495 = vadd.f32 %v4454, %v4494
    %v4496 = vpop.f32.mrb[0].mxu0
    %v4497 = vadd.f32 %v4456, %v4496
    %v4498 = vpop.f32.mrb[0].mxu0
    %v4499 = vpop.f32.mrb[0].mxu0
    %4500 = vdwg.mxu0
    %v4501 = vadd.f32 %v3795, %v4495
    %v4502 = vadd.f32 %v3796, %v4497
    %v4503 = vld [vmem:[#allocation14] sm:$0x3]
    %v4505 = vlaneseq
    %v4506 = vshrl.u32 %v4505, 7
    %v4507 = vsub.s32 0, %v4506
    %v4508 = vrot.slane %v4503, %v4507
    %v4509 = vlaneseq
    %v4510 = vshrl.u32 %v4509, 7
    %v4511 = vsub.s32 1, %v4510
    %v4512 = vrot.slane %v4503, %v4511
    %v4515 = vadd.f32 %v4501, %v4508
    %v4516 = vadd.f32 %v4502, %v4512
    %v4517 = vmax.f32 %v4515, 0.0
    %v4518 = vmax.f32 %v4516, 0.0
    %v4519 = vld [vmem:[%s11] sm:$0xff]
    %v4520 = vld [vmem:[%s11 + $0x8] sm:$0xff]
    %v4521 = vld [vmem:[%s11 + $0x10] sm:$0xff]
    %v4522 = vld [vmem:[%s11 + $0x18] sm:$0xff]
    %v4523 = vld [vmem:[%s11 + $0x20] sm:$0xff]
    %v4524 = vld [vmem:[%s11 + $0x28] sm:$0xff]
    %v4525 = vld [vmem:[%s11 + $0x30] sm:$0xff]
    %v4526 = vld [vmem:[%s11 + $0x38] sm:$0xff]
    %v4527 = vld [vmem:[%s11 + $0x40] sm:$0xff]
    %v4528 = vld [vmem:[%s11 + $0x48] sm:$0xff]
    %v4529 = vld [vmem:[%s11 + $0x50] sm:$0xff]
    %v4530 = vld [vmem:[%s11 + $0x58] sm:$0xff]
    %v4531 = vld [vmem:[%s11 + $0x60] sm:$0xff]
    %v4532 = vld [vmem:[%s11 + $0x68] sm:$0xff]
    %v4533 = vld [vmem:[%s11 + $0x70] sm:$0xff]
    %v4534 = vld [vmem:[%s11 + $0x78] sm:$0xff]
    %v4535 = vld [vmem:[%s11 + $0x80] sm:$0xff]
    %v4536 = vld [vmem:[%s11 + $0x88] sm:$0xff]
    %v4537 = vld [vmem:[%s11 + $0x90] sm:$0xff]
    %v4538 = vld [vmem:[%s11 + $0x98] sm:$0xff]
    %v4539 = vld [vmem:[%s11 + $0xa0] sm:$0xff]
    %v4540 = vld [vmem:[%s11 + $0xa8] sm:$0xff]
    %v4541 = vld [vmem:[%s11 + $0xb0] sm:$0xff]
    %v4542 = vld [vmem:[%s11 + $0xb8] sm:$0xff]
    %v4543 = vld [vmem:[%s11 + $0xc0] sm:$0xff]
    %v4544 = vld [vmem:[%s11 + $0xc8] sm:$0xff]
    %v4545 = vld [vmem:[%s11 + $0xd0] sm:$0xff]
    %v4546 = vld [vmem:[%s11 + $0xd8] sm:$0xff]
    %v4547 = vld [vmem:[%s11 + $0xe0] sm:$0xff]
    %v4548 = vld [vmem:[%s11 + $0xe8] sm:$0xff]
    %v4549 = vld [vmem:[%s11 + $0xf0] sm:$0xff]
    %v4550 = vld [vmem:[%s11 + $0xf8] sm:$0xff]
    %v4551 = vld [vmem:[#allocation16] sm:$0x1]
    %v4553 = vlaneseq
    %v4554 = vshrl.u32 %v4553, 7
    %v4555 = vsub.s32 0, %v4554
    %v4556 = vrot.slane %v4551, %v4555
    %4558 = vmatprep.subr.mxu0 0.0
    %4559 = vmatpush1.msra.mxu0 %v4519
    %4560 = vmatprep.subr.mxu0 0.0
    %4561 = vmatpush1.msra.mxu0 %v4520
    %4562 = vmatprep.subr.mxu0 0.0
    %4563 = vmatpush1.msra.mxu0 %v4521
    %4564 = vmatprep.subr.mxu0 0.0
    %4565 = vmatpush1.msra.mxu0 %v4522
    %4566 = vmatprep.subr.mxu0 0.0
    %4567 = vmatpush1.msra.mxu0 %v4523
    %4568 = vmatprep.subr.mxu0 0.0
    %4569 = vmatpush1.msra.mxu0 %v4524
    %4570 = vmatprep.subr.mxu0 0.0
    %4571 = vmatpush1.msra.mxu0 %v4525
    %4572 = vmatprep.subr.mxu0 0.0
    %4573 = vmatpush1.msra.mxu0 %v4526
    %4574 = vmatprep.subr.mxu0 0.0
    %4575 = vmatpush1.msra.mxu0 %v4527
    %4576 = vmatprep.subr.mxu0 0.0
    %4577 = vmatpush1.msra.mxu0 %v4528
    %4578 = vmatprep.subr.mxu0 0.0
    %4579 = vmatpush1.msra.mxu0 %v4529
    %4580 = vmatprep.subr.mxu0 0.0
    %4581 = vmatpush1.msra.mxu0 %v4530
    %4582 = vmatprep.subr.mxu0 0.0
    %4583 = vmatpush1.msra.mxu0 %v4531
    %4584 = vmatprep.subr.mxu0 0.0
    %4585 = vmatpush1.msra.mxu0 %v4532
    %4586 = vmatprep.subr.mxu0 0.0
    %4587 = vmatpush1.msra.mxu0 %v4533
    %4588 = vmatprep.subr.mxu0 0.0
    %4589 = vmatpush1.msra.mxu0 %v4534
    %4590 = vmatprep.subr.mxu0 0.0
    %4591 = vmatpush1.msra.mxu0 %v4535
    %4592 = vmatprep.subr.mxu0 0.0
    %4593 = vmatpush1.msra.mxu0 %v4536
    %4594 = vmatprep.subr.mxu0 0.0
    %4595 = vmatpush1.msra.mxu0 %v4537
    %4596 = vmatprep.subr.mxu0 0.0
    %4597 = vmatpush1.msra.mxu0 %v4538
    %4598 = vmatprep.subr.mxu0 0.0
    %4599 = vmatpush1.msra.mxu0 %v4539
    %4600 = vmatprep.subr.mxu0 0.0
    %4601 = vmatpush1.msra.mxu0 %v4540
    %4602 = vmatprep.subr.mxu0 0.0
    %4603 = vmatpush1.msra.mxu0 %v4541
    %4604 = vmatprep.subr.mxu0 0.0
    %4605 = vmatpush1.msra.mxu0 %v4542
    %4606 = vmatprep.subr.mxu0 0.0
    %4607 = vmatpush1.msra.mxu0 %v4543
    %4608 = vmatprep.subr.mxu0 0.0
    %4609 = vmatpush1.msra.mxu0 %v4544
    %4610 = vmatprep.subr.mxu0 0.0
    %4611 = vmatpush1.msra.mxu0 %v4545
    %4612 = vmatprep.subr.mxu0 0.0
    %4613 = vmatpush1.msra.mxu0 %v4546
    %4614 = vmatprep.subr.mxu0 0.0
    %4615 = vmatpush1.msra.mxu0 %v4547
    %4616 = vmatprep.subr.mxu0 0.0
    %4617 = vmatpush1.msra.mxu0 %v4548
    %4618 = vmatprep.subr.mxu0 0.0
    %4619 = vmatpush1.msra.mxu0 %v4549
    %4620 = vmatprep.subr.mxu0 0.0
    %4621 = vmatpush1.msra.mxu0 %v4550
    %4622 = vmatprep.mubr.f32.mxu0 %v4518
    %4623 = vmatmul.mubr.f32.gmra.mrb[0].mxu0 %v4517
    %v4624 = vpop.f32.mrb[0].mxu0
    %v4625 = vadd.f32 %v4556, %v4624
    %v4626 = vpop.f32.mrb[0].mxu0
    %4627 = vdwg.mxu0
    %vm4628 = vcmask 517120
    %4629 = vst.msk [vmem:[#allocation17] sm:$0x3] %vm4628, %v4625
    // Predicated region
    $region78: #{tpu_custom_call.1} parent=1 // pred_check
      _
    $region79: #{tpu_custom_call.1} parent=1 // pred_check_branch
      %4631 = sbr.rel (0) target = $region81
    $region80: #{tpu_custom_call.1} parent=1 // pred_region
      %s4633 = ssub.s32 32, 32
      %4634 = vsyncadd [#allocation7], %s4633
      %s4636 = sshll.u32 [#allocation17], 4
      %s4637 = int_to_ptr.vmem [resolvable:$true] %s4636
      %4639 = dma.vmem_to_hbm [thread:$0]  %s4637, 32, %s13, [#allocation7]
    $region81: #{tpu_custom_call.1} parent=1 // pred_fallthru
      _
    // Predicated region
    $region82: #{tpu_custom_call.1} parent=1 // pred_check
      _
    $region83: #{tpu_custom_call.1} parent=1 // pred_check_branch
      %4641 = sbr.rel (0) target = $region85
    $region84: #{tpu_custom_call.1} parent=1 // pred_region
      %4642 = dma.done [#allocation7], 32
    $region85: #{tpu_custom_call.1} parent=1 // pred_fallthru
      _
    %4643 = vsyncpa [#allocation6], 1
    %4644 = vsyncpa [#allocation9], 1
    %4645 = vsyncpa [#allocation12], 1
    %4646 = vsyncpa [#allocation15], 1
    %4647 = vsyncpa [#allocation7], 1
  %4648 = vsyncmov [#allocation3]
  %s4649 = vpop.sfrf %4648
  %p4650 = scmp.eq.s32.totalorder %s4649, 0
  %p4651 = pneg %p4650
  %4653 = shalt.err (%p4651)
  %s4654 = scalar_lea.sflag [#allocation3], 1
  %4655 = vsyncmov %s4654
  %s4656 = vpop.sfrf %4655
  %p4657 = scmp.eq.s32.totalorder %s4656, 0
  %p4658 = pneg %p4657
  %4660 = shalt.err (%p4658)
  %s4661 = scalar_lea.sflag [#allocation3], 2
  %4662 = vsyncmov %s4661
  %s4663 = vpop.sfrf %4662
  %p4664 = scmp.eq.s32.totalorder %s4663, 0
  %p4665 = pneg %p4664
  %4667 = shalt.err (%p4665)
  %s4668 = scalar_lea.sflag [#allocation3], 3
  %4669 = vsyncmov %s4668
  %s4670 = vpop.sfrf %4669
  %p4671 = scmp.eq.s32.totalorder %s4670, 0
  %p4672 = pneg %p4671
  %4674 = shalt.err (%p4672)

</llo_original>
